<compile_context>
chip_gen: v6e
topology: v6e:2x2x1
jax: 0.10.0
libtpu: 0.0.40
codegen_flags: <defaults>
</compile_context>

<pallas_src>
import functools

import jax
import jax.numpy as jnp
import numpy as np
from jax.experimental import pallas as pl
from jax.experimental.pallas import tpu as pltpu

F32 = jnp.float32
BF16 = jnp.bfloat16
LANE = 128


def seq2seq_kernel(tf_ref,        # (trg_len,) int32   SMEM  teacher-force flags
                   src_emb_ref,   # (src_len*B, Ep)    VMEM  bf16 pre-gathered enc_emb[src]
                   trg_emb_ref,   # (trg_len*B, Ep)    VMEM  bf16 pre-gathered dec_emb[trg]
                   enc_wi_ref,    # (Ep, 3Hp)  bf16   gate order r|z|n
                   enc_wh_ref,    # (Hp, 3Hp)  bf16
                   enc_bi_ref,    # (1, 3Hp)   f32
                   enc_bh_ref,    # (1, 3Hp)   f32
                   dec_emb_ref,   # (TVp, Ep)  bf16
                   dec_w_ref,     # (Ep+Hp, 4Hp) bf16  fused [x|h] -> [r_sum|z_sum|gi_n|gh_n]
                   dec_b_ref,     # (1, 4Hp)   f32     [bi_r+bh_r | bi_z+bh_z | bi_n | bh_n]
                   fc_w_ref,      # (Hp, TVp)  bf16
                   fc_b_ref,      # (1, TVp)   f32
                   out_ref,       # (trg_len, B, TVp) f32   VMEM output
                   x_ref,         # (B, Ep) f32 scratch: current decoder input embedding
                   *, tv_real):
    trg_len, batch, tv_p = out_ref.shape
    hid_p = enc_wh_ref.shape[0]
    src_len = src_emb_ref.shape[0] // batch

    # ---- hoisted loads: everything time-invariant read once, outside the loops ----
    enc_wh = enc_wh_ref[...]
    enc_bh = enc_bh_ref[...]
    dec_emb = dec_emb_ref[...]
    dec_w = dec_w_ref[...]
    dec_b = dec_b_ref[...]
    fc_w = fc_w_ref[...]
    fc_b = fc_b_ref[...]

    # ---- encoder: input-side gate projection lifted off the serial chain ----
    enc_gi_all = jnp.dot(src_emb_ref[...], enc_wi_ref[...],
                         preferred_element_type=F32) + enc_bi_ref[...]   # (src_len*B, 3Hp)
    h = jnp.zeros((batch, hid_p), F32)
    for t in range(src_len):   # short fixed trip count -> unrolled; lax.fori_loop at scale
        gi = enc_gi_all[t * batch:(t + 1) * batch, :]
        gh = jnp.dot(h.astype(BF16), enc_wh, preferred_element_type=F32) + enc_bh
        r = jax.nn.sigmoid(gi[:, :hid_p] + gh[:, :hid_p])
        z = jax.nn.sigmoid(gi[:, hid_p:2 * hid_p] + gh[:, hid_p:2 * hid_p])
        n = jnp.tanh(gi[:, 2 * hid_p:] + r * gh[:, 2 * hid_p:])
        h = (1.0 - z) * n + z * h

    # ---- decoder: fused-gate GRU + fc, teacher forcing vs. (gated) argmax feedback ----
    out_ref[0] = jnp.zeros((batch, tv_p), F32)     # outputs[0] stays zeros (as in torch)
    col = jax.lax.broadcasted_iota(jnp.int32, (batch, tv_p), 1)
    valid = col < tv_real                          # mask lane padding out of the argmax

    x_ref[...] = trg_emb_ref[0:batch, :].astype(F32)   # input = emb(trg[0, :])
    for t in range(1, trg_len):
        # one MXU issue for all gates of both sides
        xh = jnp.concatenate([x_ref[...].astype(BF16), h.astype(BF16)], axis=1)  # (B, Ep+Hp)
        g = jnp.dot(xh, dec_w, preferred_element_type=F32) + dec_b               # (B, 4Hp)
        r = jax.nn.sigmoid(g[:, :hid_p])
        z = jax.nn.sigmoid(g[:, hid_p:2 * hid_p])
        n = jnp.tanh(g[:, 2 * hid_p:3 * hid_p] + r * g[:, 3 * hid_p:])
        h = (1.0 - z) * n + z * h

        logits = jnp.dot(h.astype(BF16), fc_w, preferred_element_type=F32) + fc_b
        out_ref[t] = logits

        tf = tf_ref[t]

        @pl.when(tf == 1)
        def _():
            # teacher forcing: next input is emb(trg[t]); no argmax / feedback work
            x_ref[...] = trg_emb_ref[t * batch:(t + 1) * batch, :].astype(F32)

        @pl.when(tf == 0)
        def _():
            # greedy feedback: argmax over the real vocab (first-max tie break, matches
            # jnp.argmax), then one-hot @ dec_emb on the MXU.
            lm = jnp.where(valid, logits, -1e30)
            mx = jnp.max(lm, axis=1, keepdims=True)
            idx = jnp.min(jnp.where(lm == mx, col, tv_p), axis=1, keepdims=True)
            argmax_oh = (col == idx).astype(BF16)
            # TODO(synk): at real vocab sizes replace this one-hot matmul with an
            # SMEM-index row gather / small DMA gather of dec_emb.
            x_ref[...] = jnp.dot(argmax_oh, dec_emb, preferred_element_type=F32)


# ------------------------- wrapper: packing + pallas_call -------------------------
def _rup(n):
    return ((n + LANE - 1) // LANE) * LANE


def _pad_to(x, shape, dtype=None):
    y = jnp.pad(x, [(0, s - d) for d, s in zip(x.shape, shape)])
    return y.astype(dtype) if dtype is not None else y


def _pack_gate_weight(w3, in_p, hid_p, dtype):   # (3, In, H) -> (In_p, 3*Hp), order r|z|n
    _, d_in, hid = w3.shape
    out = jnp.zeros((in_p, 3 * hid_p), F32)
    for g in range(3):
        out = out.at[:d_in, g * hid_p:g * hid_p + hid].set(w3[g])
    return out.astype(dtype)


def _pack_gate_bias(b3, hid_p):                  # (3, 1, H) -> (1, 3*Hp)
    hid = b3.shape[2]
    out = jnp.zeros((1, 3 * hid_p), F32)
    for g in range(3):
        out = out.at[:, g * hid_p:g * hid_p + hid].set(b3[g])
    return out


def _pack_dec_fused_weight(wi3, wh3, emb_p, hid_p):
    # (3,E,H)+(3,H,H) -> (Ep+Hp, 4Hp): [r: Wi_r/Wh_r | z: Wi_z/Wh_z | gi_n: Wi_n | gh_n: Wh_n]
    _, emb, hid = wi3.shape
    w = jnp.zeros((emb_p + hid_p, 4 * hid_p), F32)
    w = w.at[:emb, 0:hid].set(wi3[0])
    w = w.at[emb_p:emb_p + hid, 0:hid].set(wh3[0])
    w = w.at[:emb, hid_p:hid_p + hid].set(wi3[1])
    w = w.at[emb_p:emb_p + hid, hid_p:hid_p + hid].set(wh3[1])
    w = w.at[:emb, 2 * hid_p:2 * hid_p + hid].set(wi3[2])
    w = w.at[emb_p:emb_p + hid, 3 * hid_p:3 * hid_p + hid].set(wh3[2])
    return w.astype(BF16)


def _pack_dec_fused_bias(bi3, bh3, hid_p):
    hid = bi3.shape[2]
    b = jnp.zeros((1, 4 * hid_p), F32)
    b = b.at[:, 0:hid].set(bi3[0] + bh3[0])
    b = b.at[:, hid_p:hid_p + hid].set(bi3[1] + bh3[1])
    b = b.at[:, 2 * hid_p:2 * hid_p + hid].set(bi3[2])
    b = b.at[:, 3 * hid_p:3 * hid_p + hid].set(bh3[2])
    return b


def seq2seq_forward(tf_flags, src_tok, trg_tok, params):
    (enc_emb, enc_wi, enc_wh, enc_bi, enc_bh,
     dec_emb, dec_wi, dec_wh, dec_bi, dec_bh, fc_w, fc_b) = params
    src_len, batch = src_tok.shape
    trg_len = trg_tok.shape[0]
    emb = enc_emb.shape[1]
    tv = dec_emb.shape[0]
    hid = enc_wh.shape[2]

    emb_p, hid_p, tv_p = _rup(emb), _rup(hid), _rup(tv)

    # pre-gathered, lane-padded, bf16 input embeddings (no one-hot arrays enter the kernel)
    src_emb = _pad_to(jnp.take(enc_emb, src_tok.reshape(-1), axis=0),
                      (src_len * batch, emb_p), BF16)
    trg_emb = _pad_to(jnp.take(dec_emb, trg_tok.reshape(-1), axis=0),
                      (trg_len * batch, emb_p), BF16)

    packed = (
        _pack_gate_weight(enc_wi, emb_p, hid_p, BF16),      # enc_wi (Ep, 3Hp)
        _pack_gate_weight(enc_wh, hid_p, hid_p, BF16),      # enc_wh (Hp, 3Hp)
        _pack_gate_bias(enc_bi, hid_p),                     # enc_bi (1, 3Hp) f32
        _pack_gate_bias(enc_bh, hid_p),                     # enc_bh (1, 3Hp) f32
        _pad_to(dec_emb, (tv_p, emb_p), BF16),              # dec_emb (TVp, Ep)
        _pack_dec_fused_weight(dec_wi, dec_wh, emb_p, hid_p),   # dec_w (Ep+Hp, 4Hp)
        _pack_dec_fused_bias(dec_bi, dec_bh, hid_p),            # dec_b (1, 4Hp) f32
        _pad_to(fc_w, (hid_p, tv_p), BF16),                 # fc_w (Hp, TVp)
        _pad_to(fc_b, (1, tv_p)),                           # fc_b (1, TVp) f32
    )

    vmem = pl.BlockSpec(memory_space=pltpu.MemorySpace.VMEM)
    smem = pl.BlockSpec(memory_space=pltpu.MemorySpace.SMEM)
    out_p = pl.pallas_call(
        functools.partial(seq2seq_kernel, tv_real=tv),
        out_shape=jax.ShapeDtypeStruct((trg_len, batch, tv_p), F32),
        in_specs=[smem, vmem, vmem] + [vmem] * len(packed),
        out_specs=vmem,
        scratch_shapes=[pltpu.VMEM((batch, emb_p), F32)],   # decoder input x
        compiler_params=pltpu.CompilerParams(vmem_limit_bytes=32 * 1024 * 1024),
        # TODO(synk): at real scale add a grid over trg_len (streamed output slab,
        # h/x carried in scratch, encoder under pl.when(t==0)) and a "parallel" batch
        # axis for v7x's two TensorCores; re-derive vmem_limit_bytes for 64 MiB VMEM.
    )(tf_flags, src_emb, trg_emb, *packed)
    return out_p[:, :, :tv]


# ------------------------- pure-JAX reference -------------------------
def seq2seq_reference(tf_flags, src_tok, trg_tok, params):
    (enc_emb, enc_wi, enc_wh, enc_bi, enc_bh,
     dec_emb, dec_wi, dec_wh, dec_bi, dec_bh, fc_w, fc_b) = params

    def mm(a, b):   # mirror the kernel's bf16 MXU path so the greedy feedback stays aligned
        return jnp.dot(a.astype(BF16), b.astype(BF16), preferred_element_type=F32)

    def gru(x, h, wi, wh, bi, bh):
        gi = [mm(x, wi[g]) + bi[g] for g in range(3)]
        gh = [mm(h, wh[g]) + bh[g] for g in range(3)]
        r = jax.nn.sigmoid(gi[0] + gh[0])
        z = jax.nn.sigmoid(gi[1] + gh[1])
        n = jnp.tanh(gi[2] + r * gh[2])
        return (1.0 - z) * n + z * h

    src_len, batch = src_tok.shape
    trg_len = trg_tok.shape[0]
    tv = dec_emb.shape[0]
    hid = enc_wh.shape[2]

    h = jnp.zeros((batch, hid), F32)
    for t in range(src_len):
        h = gru(enc_emb[src_tok[t]], h, enc_wi, enc_wh, enc_bi, enc_bh)

    outs = [jnp.zeros((batch, tv), F32)]
    inp = dec_emb[trg_tok[0]]
    for t in range(1, trg_len):
        h = gru(inp, h, dec_wi, dec_wh, dec_bi, dec_bh)
        logits = mm(h, fc_w) + fc_b
        outs.append(logits)
        top1 = jnp.argmax(logits, axis=1)
        inp = jnp.where(tf_flags[t] == 1, dec_emb[trg_tok[t]], dec_emb[top1])
    return jnp.stack(outs, axis=0)


if __name__ == "__main__":
    SRC_LEN, TRG_LEN, BATCH = 8, 8, 8
    SRC_VOCAB, TRG_VOCAB, EMB, HID = 16, 16, 32, 32

    key = jax.random.PRNGKey(0)
    ks = jax.random.split(key, 16)

    src_tok = jax.random.randint(ks[0], (SRC_LEN, BATCH), 0, SRC_VOCAB)
    trg_tok = jax.random.randint(ks[1], (TRG_LEN, BATCH), 0, TRG_VOCAB)
    # torch.rand(1).item() < teacher_forcing_ratio, drawn deterministically here
    tf_flags = (jax.random.uniform(ks[2], (TRG_LEN,)) < 0.5).astype(jnp.int32)

    s = 0.1
    params = (
        s * jax.random.normal(ks[3], (SRC_VOCAB, EMB), F32),     # enc embedding
        s * jax.random.normal(ks[4], (3, EMB, HID), F32),        # enc W_ih (r,z,n)
        s * jax.random.normal(ks[5], (3, HID, HID), F32),        # enc W_hh
        s * jax.random.normal(ks[6], (3, 1, HID), F32),          # enc b_ih
        s * jax.random.normal(ks[7], (3, 1, HID), F32),          # enc b_hh
        s * jax.random.normal(ks[8], (TRG_VOCAB, EMB), F32),     # dec embedding
        s * jax.random.normal(ks[9], (3, EMB, HID), F32),        # dec W_ih
        s * jax.random.normal(ks[10], (3, HID, HID), F32),       # dec W_hh
        s * jax.random.normal(ks[11], (3, 1, HID), F32),         # dec b_ih
        s * jax.random.normal(ks[12], (3, 1, HID), F32),         # dec b_hh
        s * jax.random.normal(ks[13], (HID, TRG_VOCAB), F32),    # fc_out weight
        s * jax.random.normal(ks[14], (1, TRG_VOCAB), F32),      # fc_out bias
    )

    out = seq2seq_forward(tf_flags, src_tok, trg_tok, params)
    out = jax.block_until_ready(out)

    ref = jax.block_until_ready(seq2seq_reference(tf_flags, src_tok, trg_tok, params))
    assert out.shape == (TRG_LEN, BATCH, TRG_VOCAB)
    np.testing.assert_allclose(np.asarray(out), np.asarray(ref), rtol=2e-3, atol=2e-3)

    print("KERNEL_OK")
</pallas_src>

<mosaic_0001>
module attributes {stable_mosaic.version = 11 : i64} {
  func.func @seq2seq_kernel(%arg0: memref<8xi32, #tpu.memory_space<smem>>, %arg1: memref<64x128xbf16, #tpu.memory_space<vmem>>, %arg2: memref<64x128xbf16, #tpu.memory_space<vmem>>, %arg3: memref<128x384xbf16, #tpu.memory_space<vmem>>, %arg4: memref<128x384xbf16, #tpu.memory_space<vmem>>, %arg5: memref<1x384xf32, #tpu.memory_space<vmem>>, %arg6: memref<1x384xf32, #tpu.memory_space<vmem>>, %arg7: memref<128x128xbf16, #tpu.memory_space<vmem>>, %arg8: memref<256x512xbf16, #tpu.memory_space<vmem>>, %arg9: memref<1x512xf32, #tpu.memory_space<vmem>>, %arg10: memref<128x128xbf16, #tpu.memory_space<vmem>>, %arg11: memref<1x128xf32, #tpu.memory_space<vmem>>, %arg12: memref<8x8x128xf32, #tpu.memory_space<vmem>>, %arg13: memref<8x128xf32, #tpu.memory_space<vmem>>) attributes {dimension_semantics = [], scalar_prefetch = 0 : i64, scratch_operands = 1 : i64, tpu.core_type = #tpu.core_type<tc>} {
    %c0 = arith.constant 0 : index
    %c0_0 = arith.constant 0 : index
    %0 = vector.load %arg4[%c0, %c0_0] : memref<128x384xbf16, #tpu.memory_space<vmem>>, vector<128x384xbf16>
    %c0_1 = arith.constant 0 : index
    %c0_2 = arith.constant 0 : index
    %1 = vector.load %arg6[%c0_1, %c0_2] : memref<1x384xf32, #tpu.memory_space<vmem>>, vector<1x384xf32>
    %c0_3 = arith.constant 0 : index
    %c0_4 = arith.constant 0 : index
    %2 = vector.load %arg7[%c0_3, %c0_4] : memref<128x128xbf16, #tpu.memory_space<vmem>>, vector<128x128xbf16>
    %c0_5 = arith.constant 0 : index
    %c0_6 = arith.constant 0 : index
    %3 = vector.load %arg8[%c0_5, %c0_6] : memref<256x512xbf16, #tpu.memory_space<vmem>>, vector<256x512xbf16>
    %c0_7 = arith.constant 0 : index
    %c0_8 = arith.constant 0 : index
    %4 = vector.load %arg9[%c0_7, %c0_8] : memref<1x512xf32, #tpu.memory_space<vmem>>, vector<1x512xf32>
    %c0_9 = arith.constant 0 : index
    %c0_10 = arith.constant 0 : index
    %5 = vector.load %arg10[%c0_9, %c0_10] : memref<128x128xbf16, #tpu.memory_space<vmem>>, vector<128x128xbf16>
    %c0_11 = arith.constant 0 : index
    %c0_12 = arith.constant 0 : index
    %6 = vector.load %arg11[%c0_11, %c0_12] : memref<1x128xf32, #tpu.memory_space<vmem>>, vector<1x128xf32>
    %c0_13 = arith.constant 0 : index
    %c0_14 = arith.constant 0 : index
    %7 = vector.load %arg1[%c0_13, %c0_14] : memref<64x128xbf16, #tpu.memory_space<vmem>>, vector<64x128xbf16>
    %c0_15 = arith.constant 0 : index
    %c0_16 = arith.constant 0 : index
    %8 = vector.load %arg3[%c0_15, %c0_16] : memref<128x384xbf16, #tpu.memory_space<vmem>>, vector<128x384xbf16>
    %cst = arith.constant dense<0.000000e+00> : vector<64x384xf32>
    %9 = tpu.matmul %7, %8, %cst {dimension_numbers = #tpu.dot_dimension_numbers<[1], [0], [0], [1], [0, 0, 1, 1], [], []>} : vector<64x128xbf16>, vector<128x384xbf16>, vector<64x384xf32> -> vector<64x384xf32>
    %c0_17 = arith.constant 0 : index
    %c0_18 = arith.constant 0 : index
    %10 = vector.load %arg5[%c0_17, %c0_18] : memref<1x384xf32, #tpu.memory_space<vmem>>, vector<1x384xf32>
    %11 = vector.broadcast %10 : vector<1x384xf32> to vector<64x384xf32>
    %12 = arith.addf %9, %11 : vector<64x384xf32>
    %cst_19 = arith.constant 0.000000e+00 : f32
    %13 = vector.broadcast %cst_19 : f32 to vector<8x128xf32>
    %14 = vector.extract_strided_slice %12 {offsets = [0, 0], sizes = [8, 384], strides = [1, 1]} : vector<64x384xf32> to vector<8x384xf32>
    %15 = arith.truncf %13 : vector<8x128xf32> to vector<8x128xbf16>
    %cst_20 = arith.constant dense<0.000000e+00> : vector<8x384xf32>
    %16 = tpu.matmul %15, %0, %cst_20 {dimension_numbers = #tpu.dot_dimension_numbers<[1], [0], [0], [1], [0, 0, 1, 1], [], []>} : vector<8x128xbf16>, vector<128x384xbf16>, vector<8x384xf32> -> vector<8x384xf32>
    %17 = vector.broadcast %1 : vector<1x384xf32> to vector<8x384xf32>
    %18 = arith.addf %16, %17 : vector<8x384xf32>
    %19 = vector.extract_strided_slice %14 {offsets = [0, 0], sizes = [8, 128], strides = [1, 1]} : vector<8x384xf32> to vector<8x128xf32>
    %20 = vector.extract_strided_slice %18 {offsets = [0, 0], sizes = [8, 128], strides = [1, 1]} : vector<8x384xf32> to vector<8x128xf32>
    %21 = arith.addf %19, %20 : vector<8x128xf32>
    %22 = arith.negf %21 : vector<8x128xf32>
    %23 = math.exp %22 : vector<8x128xf32>
    %cst_21 = arith.constant 1.000000e+00 : f32
    %24 = vector.broadcast %cst_21 : f32 to vector<8x128xf32>
    %25 = arith.addf %24, %23 : vector<8x128xf32>
    %26 = arith.divf %24, %25 : vector<8x128xf32>
    %27 = vector.extract_strided_slice %14 {offsets = [0, 128], sizes = [8, 128], strides = [1, 1]} : vector<8x384xf32> to vector<8x128xf32>
    %28 = vector.extract_strided_slice %18 {offsets = [0, 128], sizes = [8, 128], strides = [1, 1]} : vector<8x384xf32> to vector<8x128xf32>
    %29 = arith.addf %27, %28 : vector<8x128xf32>
    %30 = arith.negf %29 : vector<8x128xf32>
    %31 = math.exp %30 : vector<8x128xf32>
    %cst_22 = arith.constant 1.000000e+00 : f32
    %32 = vector.broadcast %cst_22 : f32 to vector<8x128xf32>
    %33 = arith.addf %32, %31 : vector<8x128xf32>
    %34 = arith.divf %32, %33 : vector<8x128xf32>
    %35 = vector.extract_strided_slice %14 {offsets = [0, 256], sizes = [8, 128], strides = [1, 1]} : vector<8x384xf32> to vector<8x128xf32>
    %36 = vector.extract_strided_slice %18 {offsets = [0, 256], sizes = [8, 128], strides = [1, 1]} : vector<8x384xf32> to vector<8x128xf32>
    %37 = arith.mulf %26, %36 : vector<8x128xf32>
    %38 = arith.addf %35, %37 : vector<8x128xf32>
    %39 = math.tanh %38 : vector<8x128xf32>
    %cst_23 = arith.constant 1.000000e+00 : f32
    %40 = vector.broadcast %cst_23 : f32 to vector<8x128xf32>
    %41 = arith.subf %40, %34 : vector<8x128xf32>
    %42 = arith.mulf %41, %39 : vector<8x128xf32>
    %43 = arith.mulf %34, %13 : vector<8x128xf32>
    %44 = arith.addf %42, %43 : vector<8x128xf32>
    %45 = vector.extract_strided_slice %12 {offsets = [8, 0], sizes = [8, 384], strides = [1, 1]} : vector<64x384xf32> to vector<8x384xf32>
    %46 = arith.truncf %44 : vector<8x128xf32> to vector<8x128xbf16>
    %cst_24 = arith.constant dense<0.000000e+00> : vector<8x384xf32>
    %47 = tpu.matmul %46, %0, %cst_24 {dimension_numbers = #tpu.dot_dimension_numbers<[1], [0], [0], [1], [0, 0, 1, 1], [], []>} : vector<8x128xbf16>, vector<128x384xbf16>, vector<8x384xf32> -> vector<8x384xf32>
    %48 = vector.broadcast %1 : vector<1x384xf32> to vector<8x384xf32>
    %49 = arith.addf %47, %48 : vector<8x384xf32>
    %50 = vector.extract_strided_slice %45 {offsets = [0, 0], sizes = [8, 128], strides = [1, 1]} : vector<8x384xf32> to vector<8x128xf32>
    %51 = vector.extract_strided_slice %49 {offsets = [0, 0], sizes = [8, 128], strides = [1, 1]} : vector<8x384xf32> to vector<8x128xf32>
    %52 = arith.addf %50, %51 : vector<8x128xf32>
    %53 = arith.negf %52 : vector<8x128xf32>
    %54 = math.exp %53 : vector<8x128xf32>
    %cst_25 = arith.constant 1.000000e+00 : f32
    %55 = vector.broadcast %cst_25 : f32 to vector<8x128xf32>
    %56 = arith.addf %55, %54 : vector<8x128xf32>
    %57 = arith.divf %55, %56 : vector<8x128xf32>
    %58 = vector.extract_strided_slice %45 {offsets = [0, 128], sizes = [8, 128], strides = [1, 1]} : vector<8x384xf32> to vector<8x128xf32>
    %59 = vector.extract_strided_slice %49 {offsets = [0, 128], sizes = [8, 128], strides = [1, 1]} : vector<8x384xf32> to vector<8x128xf32>
    %60 = arith.addf %58, %59 : vector<8x128xf32>
    %61 = arith.negf %60 : vector<8x128xf32>
    %62 = math.exp %61 : vector<8x128xf32>
    %cst_26 = arith.constant 1.000000e+00 : f32
    %63 = vector.broadcast %cst_26 : f32 to vector<8x128xf32>
    %64 = arith.addf %63, %62 : vector<8x128xf32>
    %65 = arith.divf %63, %64 : vector<8x128xf32>
    %66 = vector.extract_strided_slice %45 {offsets = [0, 256], sizes = [8, 128], strides = [1, 1]} : vector<8x384xf32> to vector<8x128xf32>
    %67 = vector.extract_strided_slice %49 {offsets = [0, 256], sizes = [8, 128], strides = [1, 1]} : vector<8x384xf32> to vector<8x128xf32>
    %68 = arith.mulf %57, %67 : vector<8x128xf32>
    %69 = arith.addf %66, %68 : vector<8x128xf32>
    %70 = math.tanh %69 : vector<8x128xf32>
    %cst_27 = arith.constant 1.000000e+00 : f32
    %71 = vector.broadcast %cst_27 : f32 to vector<8x128xf32>
    %72 = arith.subf %71, %65 : vector<8x128xf32>
    %73 = arith.mulf %72, %70 : vector<8x128xf32>
    %74 = arith.mulf %65, %44 : vector<8x128xf32>
    %75 = arith.addf %73, %74 : vector<8x128xf32>
    %76 = vector.extract_strided_slice %12 {offsets = [16, 0], sizes = [8, 384], strides = [1, 1]} : vector<64x384xf32> to vector<8x384xf32>
    %77 = arith.truncf %75 : vector<8x128xf32> to vector<8x128xbf16>
    %cst_28 = arith.constant dense<0.000000e+00> : vector<8x384xf32>
    %78 = tpu.matmul %77, %0, %cst_28 {dimension_numbers = #tpu.dot_dimension_numbers<[1], [0], [0], [1], [0, 0, 1, 1], [], []>} : vector<8x128xbf16>, vector<128x384xbf16>, vector<8x384xf32> -> vector<8x384xf32>
    %79 = vector.broadcast %1 : vector<1x384xf32> to vector<8x384xf32>
    %80 = arith.addf %78, %79 : vector<8x384xf32>
    %81 = vector.extract_strided_slice %76 {offsets = [0, 0], sizes = [8, 128], strides = [1, 1]} : vector<8x384xf32> to vector<8x128xf32>
    %82 = vector.extract_strided_slice %80 {offsets = [0, 0], sizes = [8, 128], strides = [1, 1]} : vector<8x384xf32> to vector<8x128xf32>
    %83 = arith.addf %81, %82 : vector<8x128xf32>
    %84 = arith.negf %83 : vector<8x128xf32>
    %85 = math.exp %84 : vector<8x128xf32>
    %cst_29 = arith.constant 1.000000e+00 : f32
    %86 = vector.broadcast %cst_29 : f32 to vector<8x128xf32>
    %87 = arith.addf %86, %85 : vector<8x128xf32>
    %88 = arith.divf %86, %87 : vector<8x128xf32>
    %89 = vector.extract_strided_slice %76 {offsets = [0, 128], sizes = [8, 128], strides = [1, 1]} : vector<8x384xf32> to vector<8x128xf32>
    %90 = vector.extract_strided_slice %80 {offsets = [0, 128], sizes = [8, 128], strides = [1, 1]} : vector<8x384xf32> to vector<8x128xf32>
    %91 = arith.addf %89, %90 : vector<8x128xf32>
    %92 = arith.negf %91 : vector<8x128xf32>
    %93 = math.exp %92 : vector<8x128xf32>
    %cst_30 = arith.constant 1.000000e+00 : f32
    %94 = vector.broadcast %cst_30 : f32 to vector<8x128xf32>
    %95 = arith.addf %94, %93 : vector<8x128xf32>
    %96 = arith.divf %94, %95 : vector<8x128xf32>
    %97 = vector.extract_strided_slice %76 {offsets = [0, 256], sizes = [8, 128], strides = [1, 1]} : vector<8x384xf32> to vector<8x128xf32>
    %98 = vector.extract_strided_slice %80 {offsets = [0, 256], sizes = [8, 128], strides = [1, 1]} : vector<8x384xf32> to vector<8x128xf32>
    %99 = arith.mulf %88, %98 : vector<8x128xf32>
    %100 = arith.addf %97, %99 : vector<8x128xf32>
    %101 = math.tanh %100 : vector<8x128xf32>
    %cst_31 = arith.constant 1.000000e+00 : f32
    %102 = vector.broadcast %cst_31 : f32 to vector<8x128xf32>
    %103 = arith.subf %102, %96 : vector<8x128xf32>
    %104 = arith.mulf %103, %101 : vector<8x128xf32>
    %105 = arith.mulf %96, %75 : vector<8x128xf32>
    %106 = arith.addf %104, %105 : vector<8x128xf32>
    %107 = vector.extract_strided_slice %12 {offsets = [24, 0], sizes = [8, 384], strides = [1, 1]} : vector<64x384xf32> to vector<8x384xf32>
    %108 = arith.truncf %106 : vector<8x128xf32> to vector<8x128xbf16>
    %cst_32 = arith.constant dense<0.000000e+00> : vector<8x384xf32>
    %109 = tpu.matmul %108, %0, %cst_32 {dimension_numbers = #tpu.dot_dimension_numbers<[1], [0], [0], [1], [0, 0, 1, 1], [], []>} : vector<8x128xbf16>, vector<128x384xbf16>, vector<8x384xf32> -> vector<8x384xf32>
    %110 = vector.broadcast %1 : vector<1x384xf32> to vector<8x384xf32>
    %111 = arith.addf %109, %110 : vector<8x384xf32>
    %112 = vector.extract_strided_slice %107 {offsets = [0, 0], sizes = [8, 128], strides = [1, 1]} : vector<8x384xf32> to vector<8x128xf32>
    %113 = vector.extract_strided_slice %111 {offsets = [0, 0], sizes = [8, 128], strides = [1, 1]} : vector<8x384xf32> to vector<8x128xf32>
    %114 = arith.addf %112, %113 : vector<8x128xf32>
    %115 = arith.negf %114 : vector<8x128xf32>
    %116 = math.exp %115 : vector<8x128xf32>
    %cst_33 = arith.constant 1.000000e+00 : f32
    %117 = vector.broadcast %cst_33 : f32 to vector<8x128xf32>
    %118 = arith.addf %117, %116 : vector<8x128xf32>
    %119 = arith.divf %117, %118 : vector<8x128xf32>
    %120 = vector.extract_strided_slice %107 {offsets = [0, 128], sizes = [8, 128], strides = [1, 1]} : vector<8x384xf32> to vector<8x128xf32>
    %121 = vector.extract_strided_slice %111 {offsets = [0, 128], sizes = [8, 128], strides = [1, 1]} : vector<8x384xf32> to vector<8x128xf32>
    %122 = arith.addf %120, %121 : vector<8x128xf32>
    %123 = arith.negf %122 : vector<8x128xf32>
    %124 = math.exp %123 : vector<8x128xf32>
    %cst_34 = arith.constant 1.000000e+00 : f32
    %125 = vector.broadcast %cst_34 : f32 to vector<8x128xf32>
    %126 = arith.addf %125, %124 : vector<8x128xf32>
    %127 = arith.divf %125, %126 : vector<8x128xf32>
    %128 = vector.extract_strided_slice %107 {offsets = [0, 256], sizes = [8, 128], strides = [1, 1]} : vector<8x384xf32> to vector<8x128xf32>
    %129 = vector.extract_strided_slice %111 {offsets = [0, 256], sizes = [8, 128], strides = [1, 1]} : vector<8x384xf32> to vector<8x128xf32>
    %130 = arith.mulf %119, %129 : vector<8x128xf32>
    %131 = arith.addf %128, %130 : vector<8x128xf32>
    %132 = math.tanh %131 : vector<8x128xf32>
    %cst_35 = arith.constant 1.000000e+00 : f32
    %133 = vector.broadcast %cst_35 : f32 to vector<8x128xf32>
    %134 = arith.subf %133, %127 : vector<8x128xf32>
    %135 = arith.mulf %134, %132 : vector<8x128xf32>
    %136 = arith.mulf %127, %106 : vector<8x128xf32>
    %137 = arith.addf %135, %136 : vector<8x128xf32>
    %138 = vector.extract_strided_slice %12 {offsets = [32, 0], sizes = [8, 384], strides = [1, 1]} : vector<64x384xf32> to vector<8x384xf32>
    %139 = arith.truncf %137 : vector<8x128xf32> to vector<8x128xbf16>
    %cst_36 = arith.constant dense<0.000000e+00> : vector<8x384xf32>
    %140 = tpu.matmul %139, %0, %cst_36 {dimension_numbers = #tpu.dot_dimension_numbers<[1], [0], [0], [1], [0, 0, 1, 1], [], []>} : vector<8x128xbf16>, vector<128x384xbf16>, vector<8x384xf32> -> vector<8x384xf32>
    %141 = vector.broadcast %1 : vector<1x384xf32> to vector<8x384xf32>
    %142 = arith.addf %140, %141 : vector<8x384xf32>
    %143 = vector.extract_strided_slice %138 {offsets = [0, 0], sizes = [8, 128], strides = [1, 1]} : vector<8x384xf32> to vector<8x128xf32>
    %144 = vector.extract_strided_slice %142 {offsets = [0, 0], sizes = [8, 128], strides = [1, 1]} : vector<8x384xf32> to vector<8x128xf32>
    %145 = arith.addf %143, %144 : vector<8x128xf32>
    %146 = arith.negf %145 : vector<8x128xf32>
    %147 = math.exp %146 : vector<8x128xf32>
    %cst_37 = arith.constant 1.000000e+00 : f32
    %148 = vector.broadcast %cst_37 : f32 to vector<8x128xf32>
    %149 = arith.addf %148, %147 : vector<8x128xf32>
    %150 = arith.divf %148, %149 : vector<8x128xf32>
    %151 = vector.extract_strided_slice %138 {offsets = [0, 128], sizes = [8, 128], strides = [1, 1]} : vector<8x384xf32> to vector<8x128xf32>
    %152 = vector.extract_strided_slice %142 {offsets = [0, 128], sizes = [8, 128], strides = [1, 1]} : vector<8x384xf32> to vector<8x128xf32>
    %153 = arith.addf %151, %152 : vector<8x128xf32>
    %154 = arith.negf %153 : vector<8x128xf32>
    %155 = math.exp %154 : vector<8x128xf32>
    %cst_38 = arith.constant 1.000000e+00 : f32
    %156 = vector.broadcast %cst_38 : f32 to vector<8x128xf32>
    %157 = arith.addf %156, %155 : vector<8x128xf32>
    %158 = arith.divf %156, %157 : vector<8x128xf32>
    %159 = vector.extract_strided_slice %138 {offsets = [0, 256], sizes = [8, 128], strides = [1, 1]} : vector<8x384xf32> to vector<8x128xf32>
    %160 = vector.extract_strided_slice %142 {offsets = [0, 256], sizes = [8, 128], strides = [1, 1]} : vector<8x384xf32> to vector<8x128xf32>
    %161 = arith.mulf %150, %160 : vector<8x128xf32>
    %162 = arith.addf %159, %161 : vector<8x128xf32>
    %163 = math.tanh %162 : vector<8x128xf32>
    %cst_39 = arith.constant 1.000000e+00 : f32
    %164 = vector.broadcast %cst_39 : f32 to vector<8x128xf32>
    %165 = arith.subf %164, %158 : vector<8x128xf32>
    %166 = arith.mulf %165, %163 : vector<8x128xf32>
    %167 = arith.mulf %158, %137 : vector<8x128xf32>
    %168 = arith.addf %166, %167 : vector<8x128xf32>
    %169 = vector.extract_strided_slice %12 {offsets = [40, 0], sizes = [8, 384], strides = [1, 1]} : vector<64x384xf32> to vector<8x384xf32>
    %170 = arith.truncf %168 : vector<8x128xf32> to vector<8x128xbf16>
    %cst_40 = arith.constant dense<0.000000e+00> : vector<8x384xf32>
    %171 = tpu.matmul %170, %0, %cst_40 {dimension_numbers = #tpu.dot_dimension_numbers<[1], [0], [0], [1], [0, 0, 1, 1], [], []>} : vector<8x128xbf16>, vector<128x384xbf16>, vector<8x384xf32> -> vector<8x384xf32>
    %172 = vector.broadcast %1 : vector<1x384xf32> to vector<8x384xf32>
    %173 = arith.addf %171, %172 : vector<8x384xf32>
    %174 = vector.extract_strided_slice %169 {offsets = [0, 0], sizes = [8, 128], strides = [1, 1]} : vector<8x384xf32> to vector<8x128xf32>
    %175 = vector.extract_strided_slice %173 {offsets = [0, 0], sizes = [8, 128], strides = [1, 1]} : vector<8x384xf32> to vector<8x128xf32>
    %176 = arith.addf %174, %175 : vector<8x128xf32>
    %177 = arith.negf %176 : vector<8x128xf32>
    %178 = math.exp %177 : vector<8x128xf32>
    %cst_41 = arith.constant 1.000000e+00 : f32
    %179 = vector.broadcast %cst_41 : f32 to vector<8x128xf32>
    %180 = arith.addf %179, %178 : vector<8x128xf32>
    %181 = arith.divf %179, %180 : vector<8x128xf32>
    %182 = vector.extract_strided_slice %169 {offsets = [0, 128], sizes = [8, 128], strides = [1, 1]} : vector<8x384xf32> to vector<8x128xf32>
    %183 = vector.extract_strided_slice %173 {offsets = [0, 128], sizes = [8, 128], strides = [1, 1]} : vector<8x384xf32> to vector<8x128xf32>
    %184 = arith.addf %182, %183 : vector<8x128xf32>
    %185 = arith.negf %184 : vector<8x128xf32>
    %186 = math.exp %185 : vector<8x128xf32>
    %cst_42 = arith.constant 1.000000e+00 : f32
    %187 = vector.broadcast %cst_42 : f32 to vector<8x128xf32>
    %188 = arith.addf %187, %186 : vector<8x128xf32>
    %189 = arith.divf %187, %188 : vector<8x128xf32>
    %190 = vector.extract_strided_slice %169 {offsets = [0, 256], sizes = [8, 128], strides = [1, 1]} : vector<8x384xf32> to vector<8x128xf32>
    %191 = vector.extract_strided_slice %173 {offsets = [0, 256], sizes = [8, 128], strides = [1, 1]} : vector<8x384xf32> to vector<8x128xf32>
    %192 = arith.mulf %181, %191 : vector<8x128xf32>
    %193 = arith.addf %190, %192 : vector<8x128xf32>
    %194 = math.tanh %193 : vector<8x128xf32>
    %cst_43 = arith.constant 1.000000e+00 : f32
    %195 = vector.broadcast %cst_43 : f32 to vector<8x128xf32>
    %196 = arith.subf %195, %189 : vector<8x128xf32>
    %197 = arith.mulf %196, %194 : vector<8x128xf32>
    %198 = arith.mulf %189, %168 : vector<8x128xf32>
    %199 = arith.addf %197, %198 : vector<8x128xf32>
    %200 = vector.extract_strided_slice %12 {offsets = [48, 0], sizes = [8, 384], strides = [1, 1]} : vector<64x384xf32> to vector<8x384xf32>
    %201 = arith.truncf %199 : vector<8x128xf32> to vector<8x128xbf16>
    %cst_44 = arith.constant dense<0.000000e+00> : vector<8x384xf32>
    %202 = tpu.matmul %201, %0, %cst_44 {dimension_numbers = #tpu.dot_dimension_numbers<[1], [0], [0], [1], [0, 0, 1, 1], [], []>} : vector<8x128xbf16>, vector<128x384xbf16>, vector<8x384xf32> -> vector<8x384xf32>
    %203 = vector.broadcast %1 : vector<1x384xf32> to vector<8x384xf32>
    %204 = arith.addf %202, %203 : vector<8x384xf32>
    %205 = vector.extract_strided_slice %200 {offsets = [0, 0], sizes = [8, 128], strides = [1, 1]} : vector<8x384xf32> to vector<8x128xf32>
    %206 = vector.extract_strided_slice %204 {offsets = [0, 0], sizes = [8, 128], strides = [1, 1]} : vector<8x384xf32> to vector<8x128xf32>
    %207 = arith.addf %205, %206 : vector<8x128xf32>
    %208 = arith.negf %207 : vector<8x128xf32>
    %209 = math.exp %208 : vector<8x128xf32>
    %cst_45 = arith.constant 1.000000e+00 : f32
    %210 = vector.broadcast %cst_45 : f32 to vector<8x128xf32>
    %211 = arith.addf %210, %209 : vector<8x128xf32>
    %212 = arith.divf %210, %211 : vector<8x128xf32>
    %213 = vector.extract_strided_slice %200 {offsets = [0, 128], sizes = [8, 128], strides = [1, 1]} : vector<8x384xf32> to vector<8x128xf32>
    %214 = vector.extract_strided_slice %204 {offsets = [0, 128], sizes = [8, 128], strides = [1, 1]} : vector<8x384xf32> to vector<8x128xf32>
    %215 = arith.addf %213, %214 : vector<8x128xf32>
    %216 = arith.negf %215 : vector<8x128xf32>
    %217 = math.exp %216 : vector<8x128xf32>
    %cst_46 = arith.constant 1.000000e+00 : f32
    %218 = vector.broadcast %cst_46 : f32 to vector<8x128xf32>
    %219 = arith.addf %218, %217 : vector<8x128xf32>
    %220 = arith.divf %218, %219 : vector<8x128xf32>
    %221 = vector.extract_strided_slice %200 {offsets = [0, 256], sizes = [8, 128], strides = [1, 1]} : vector<8x384xf32> to vector<8x128xf32>
    %222 = vector.extract_strided_slice %204 {offsets = [0, 256], sizes = [8, 128], strides = [1, 1]} : vector<8x384xf32> to vector<8x128xf32>
    %223 = arith.mulf %212, %222 : vector<8x128xf32>
    %224 = arith.addf %221, %223 : vector<8x128xf32>
    %225 = math.tanh %224 : vector<8x128xf32>
    %cst_47 = arith.constant 1.000000e+00 : f32
    %226 = vector.broadcast %cst_47 : f32 to vector<8x128xf32>
    %227 = arith.subf %226, %220 : vector<8x128xf32>
    %228 = arith.mulf %227, %225 : vector<8x128xf32>
    %229 = arith.mulf %220, %199 : vector<8x128xf32>
    %230 = arith.addf %228, %229 : vector<8x128xf32>
    %231 = vector.extract_strided_slice %12 {offsets = [56, 0], sizes = [8, 384], strides = [1, 1]} : vector<64x384xf32> to vector<8x384xf32>
    %232 = arith.truncf %230 : vector<8x128xf32> to vector<8x128xbf16>
    %cst_48 = arith.constant dense<0.000000e+00> : vector<8x384xf32>
    %233 = tpu.matmul %232, %0, %cst_48 {dimension_numbers = #tpu.dot_dimension_numbers<[1], [0], [0], [1], [0, 0, 1, 1], [], []>} : vector<8x128xbf16>, vector<128x384xbf16>, vector<8x384xf32> -> vector<8x384xf32>
    %234 = vector.broadcast %1 : vector<1x384xf32> to vector<8x384xf32>
    %235 = arith.addf %233, %234 : vector<8x384xf32>
    %236 = vector.extract_strided_slice %231 {offsets = [0, 0], sizes = [8, 128], strides = [1, 1]} : vector<8x384xf32> to vector<8x128xf32>
    %237 = vector.extract_strided_slice %235 {offsets = [0, 0], sizes = [8, 128], strides = [1, 1]} : vector<8x384xf32> to vector<8x128xf32>
    %238 = arith.addf %236, %237 : vector<8x128xf32>
    %239 = arith.negf %238 : vector<8x128xf32>
    %240 = math.exp %239 : vector<8x128xf32>
    %cst_49 = arith.constant 1.000000e+00 : f32
    %241 = vector.broadcast %cst_49 : f32 to vector<8x128xf32>
    %242 = arith.addf %241, %240 : vector<8x128xf32>
    %243 = arith.divf %241, %242 : vector<8x128xf32>
    %244 = vector.extract_strided_slice %231 {offsets = [0, 128], sizes = [8, 128], strides = [1, 1]} : vector<8x384xf32> to vector<8x128xf32>
    %245 = vector.extract_strided_slice %235 {offsets = [0, 128], sizes = [8, 128], strides = [1, 1]} : vector<8x384xf32> to vector<8x128xf32>
    %246 = arith.addf %244, %245 : vector<8x128xf32>
    %247 = arith.negf %246 : vector<8x128xf32>
    %248 = math.exp %247 : vector<8x128xf32>
    %cst_50 = arith.constant 1.000000e+00 : f32
    %249 = vector.broadcast %cst_50 : f32 to vector<8x128xf32>
    %250 = arith.addf %249, %248 : vector<8x128xf32>
    %251 = arith.divf %249, %250 : vector<8x128xf32>
    %252 = vector.extract_strided_slice %231 {offsets = [0, 256], sizes = [8, 128], strides = [1, 1]} : vector<8x384xf32> to vector<8x128xf32>
    %253 = vector.extract_strided_slice %235 {offsets = [0, 256], sizes = [8, 128], strides = [1, 1]} : vector<8x384xf32> to vector<8x128xf32>
    %254 = arith.mulf %243, %253 : vector<8x128xf32>
    %255 = arith.addf %252, %254 : vector<8x128xf32>
    %256 = math.tanh %255 : vector<8x128xf32>
    %cst_51 = arith.constant 1.000000e+00 : f32
    %257 = vector.broadcast %cst_51 : f32 to vector<8x128xf32>
    %258 = arith.subf %257, %251 : vector<8x128xf32>
    %259 = arith.mulf %258, %256 : vector<8x128xf32>
    %260 = arith.mulf %251, %230 : vector<8x128xf32>
    %261 = arith.addf %259, %260 : vector<8x128xf32>
    %cst_52 = arith.constant 0.000000e+00 : f32
    %262 = vector.broadcast %cst_52 : f32 to vector<8x128xf32>
    %c0_53 = arith.constant 0 : index
    %c0_54 = arith.constant 0 : index
    %c0_55 = arith.constant 0 : index
    %263 = vector.load %arg12[%c0_53, %c0_54, %c0_55] : memref<8x8x128xf32, #tpu.memory_space<vmem>>, vector<1x8x128xf32>
    %264 = vector.shape_cast %263 : vector<1x8x128xf32> to vector<8x128xf32>
    %265 = vector.shape_cast %262 : vector<8x128xf32> to vector<1x8x128xf32>
    tpu.vector_store %arg12[%c0_53, %c0_54, %c0_55], %265 {strides = array<i32>} : memref<8x8x128xf32, #tpu.memory_space<vmem>>, vector<1x8x128xf32>,
    %266 = tpu.iota {dimensions = array<i32: 1>} : vector<8x128xi32>
    %c16_i32 = arith.constant 16 : i32
    %267 = vector.broadcast %c16_i32 : i32 to vector<8x128xi32>
    %268 = arith.cmpi slt, %266, %267 : vector<8x128xi32>
    %c0_56 = arith.constant 0 : index
    %c0_57 = arith.constant 0 : index
    %269 = vector.load %arg2[%c0_56, %c0_57] : memref<64x128xbf16, #tpu.memory_space<vmem>>, vector<8x128xbf16>
    %270 = arith.extf %269 : vector<8x128xbf16> to vector<8x128xf32>
    %c0_58 = arith.constant 0 : index
    %c0_59 = arith.constant 0 : index
    %271 = vector.load %arg13[%c0_58, %c0_59] : memref<8x128xf32, #tpu.memory_space<vmem>>, vector<8x128xf32>
    tpu.vector_store %arg13[%c0_58, %c0_59], %270 {strides = array<i32>} : memref<8x128xf32, #tpu.memory_space<vmem>>, vector<8x128xf32>,
    %c0_60 = arith.constant 0 : index
    %c0_61 = arith.constant 0 : index
    %272 = vector.load %arg13[%c0_60, %c0_61] : memref<8x128xf32, #tpu.memory_space<vmem>>, vector<8x128xf32>
    %273 = arith.truncf %272 : vector<8x128xf32> to vector<8x128xbf16>
    %274 = arith.truncf %261 : vector<8x128xf32> to vector<8x128xbf16>
    %275 = tpu.concatenate %273, %274 in 1 : vector<8x128xbf16>, vector<8x128xbf16> -> vector<8x256xbf16>
    %cst_62 = arith.constant dense<0.000000e+00> : vector<8x512xf32>
    %276 = tpu.matmul %275, %3, %cst_62 {dimension_numbers = #tpu.dot_dimension_numbers<[1], [0], [0], [1], [0, 0, 1, 1], [], []>} : vector<8x256xbf16>, vector<256x512xbf16>, vector<8x512xf32> -> vector<8x512xf32>
    %277 = vector.broadcast %4 : vector<1x512xf32> to vector<8x512xf32>
    %278 = arith.addf %276, %277 : vector<8x512xf32>
    %279 = vector.extract_strided_slice %278 {offsets = [0, 0], sizes = [8, 128], strides = [1, 1]} : vector<8x512xf32> to vector<8x128xf32>
    %280 = arith.negf %279 : vector<8x128xf32>
    %281 = math.exp %280 : vector<8x128xf32>
    %cst_63 = arith.constant 1.000000e+00 : f32
    %282 = vector.broadcast %cst_63 : f32 to vector<8x128xf32>
    %283 = arith.addf %282, %281 : vector<8x128xf32>
    %284 = arith.divf %282, %283 : vector<8x128xf32>
    %285 = vector.extract_strided_slice %278 {offsets = [0, 128], sizes = [8, 128], strides = [1, 1]} : vector<8x512xf32> to vector<8x128xf32>
    %286 = arith.negf %285 : vector<8x128xf32>
    %287 = math.exp %286 : vector<8x128xf32>
    %cst_64 = arith.constant 1.000000e+00 : f32
    %288 = vector.broadcast %cst_64 : f32 to vector<8x128xf32>
    %289 = arith.addf %288, %287 : vector<8x128xf32>
    %290 = arith.divf %288, %289 : vector<8x128xf32>
    %291 = vector.extract_strided_slice %278 {offsets = [0, 256], sizes = [8, 128], strides = [1, 1]} : vector<8x512xf32> to vector<8x128xf32>
    %292 = vector.extract_strided_slice %278 {offsets = [0, 384], sizes = [8, 128], strides = [1, 1]} : vector<8x512xf32> to vector<8x128xf32>
    %293 = arith.mulf %284, %292 : vector<8x128xf32>
    %294 = arith.addf %291, %293 : vector<8x128xf32>
    %295 = math.tanh %294 : vector<8x128xf32>
    %cst_65 = arith.constant 1.000000e+00 : f32
    %296 = vector.broadcast %cst_65 : f32 to vector<8x128xf32>
    %297 = arith.subf %296, %290 : vector<8x128xf32>
    %298 = arith.mulf %297, %295 : vector<8x128xf32>
    %299 = arith.mulf %290, %261 : vector<8x128xf32>
    %300 = arith.addf %298, %299 : vector<8x128xf32>
    %301 = arith.truncf %300 : vector<8x128xf32> to vector<8x128xbf16>
    %cst_66 = arith.constant dense<0.000000e+00> : vector<8x128xf32>
    %302 = tpu.matmul %301, %5, %cst_66 {dimension_numbers = #tpu.dot_dimension_numbers<[1], [0], [0], [1], [0, 0, 1, 1], [], []>} : vector<8x128xbf16>, vector<128x128xbf16>, vector<8x128xf32> -> vector<8x128xf32>
    %303 = vector.broadcast %6 : vector<1x128xf32> to vector<8x128xf32>
    %304 = arith.addf %302, %303 : vector<8x128xf32>
    %c1 = arith.constant 1 : index
    %c0_67 = arith.constant 0 : index
    %c0_68 = arith.constant 0 : index
    %305 = vector.load %arg12[%c1, %c0_67, %c0_68] : memref<8x8x128xf32, #tpu.memory_space<vmem>>, vector<1x8x128xf32>
    %306 = vector.shape_cast %305 : vector<1x8x128xf32> to vector<8x128xf32>
    %307 = vector.shape_cast %304 : vector<8x128xf32> to vector<1x8x128xf32>
    tpu.vector_store %arg12[%c1, %c0_67, %c0_68], %307 {strides = array<i32>} : memref<8x8x128xf32, #tpu.memory_space<vmem>>, vector<1x8x128xf32>,
    %c1_69 = arith.constant 1 : index
    %308 = memref.load %arg0[%c1_69] : memref<8xi32, #tpu.memory_space<smem>>
    %c1_i32 = arith.constant 1 : i32
    %309 = arith.cmpi eq, %308, %c1_i32 : i32
    %310 = arith.extui %309 : i1 to i32
    %c0_i32 = arith.constant 0 : i32
    %311 = arith.cmpi ne, %310, %c0_i32 : i32
    scf.if %311 {
      %c8 = arith.constant 8 : index
      %c0_156 = arith.constant 0 : index
      %573 = vector.load %arg2[%c8, %c0_156] : memref<64x128xbf16, #tpu.memory_space<vmem>>, vector<8x128xbf16>
      %574 = arith.extf %573 : vector<8x128xbf16> to vector<8x128xf32>
      %c0_157 = arith.constant 0 : index
      %c0_158 = arith.constant 0 : index
      %575 = vector.load %arg13[%c0_157, %c0_158] : memref<8x128xf32, #tpu.memory_space<vmem>>, vector<8x128xf32>
      tpu.vector_store %arg13[%c0_157, %c0_158], %574 {strides = array<i32>} : memref<8x128xf32, #tpu.memory_space<vmem>>, vector<8x128xf32>,
    } else {
    }
    %c0_i32_70 = arith.constant 0 : i32
    %312 = arith.cmpi eq, %308, %c0_i32_70 : i32
    %313 = arith.extui %312 : i1 to i32
    %c0_i32_71 = arith.constant 0 : i32
    %314 = arith.cmpi ne, %313, %c0_i32_71 : i32
    scf.if %314 {
      %cst_156 = arith.constant -1.000000e+30 : f32
      %573 = vector.broadcast %cst_156 : f32 to vector<8x128xf32>
      %574 = arith.select %268, %304, %573 : vector<8x128xi1>, vector<8x128xf32>
      %cst_157 = arith.constant dense<0xFF800000> : vector<8xf32>
      %575 = vector.multi_reduction <maximumf>, %574, %cst_157 [1] : vector<8x128xf32> to vector<8xf32>
      %576 = vector.shape_cast %575 : vector<8xf32> to vector<8x1xf32>
      %577 = vector.broadcast %576 : vector<8x1xf32> to vector<8x128xf32>
      %578 = arith.cmpf oeq, %574, %577 : vector<8x128xf32>
      %c128_i32 = arith.constant 128 : i32
      %579 = vector.broadcast %c128_i32 : i32 to vector<8x128xi32>
      %580 = arith.select %578, %266, %579 : vector<8x128xi1>, vector<8x128xi32>
      %cst_158 = arith.constant dense<2147483647> : vector<8xi32>
      %581 = vector.multi_reduction <minsi>, %580, %cst_158 [1] : vector<8x128xi32> to vector<8xi32>
      %582 = vector.shape_cast %581 : vector<8xi32> to vector<8x1xi32>
      %583 = vector.broadcast %582 : vector<8x1xi32> to vector<8x128xi32>
      %584 = arith.cmpi eq, %266, %583 : vector<8x128xi32>
      %585 = arith.extui %584 : vector<8x128xi1> to vector<8x128xi32>
      %586 = arith.sitofp %585 : vector<8x128xi32> to vector<8x128xf32>
      %587 = arith.truncf %586 : vector<8x128xf32> to vector<8x128xbf16>
      %cst_159 = arith.constant dense<0.000000e+00> : vector<8x128xf32>
      %588 = tpu.matmul %587, %2, %cst_159 {dimension_numbers = #tpu.dot_dimension_numbers<[1], [0], [0], [1], [0, 0, 1, 1], [], []>} : vector<8x128xbf16>, vector<128x128xbf16>, vector<8x128xf32> -> vector<8x128xf32>
      %c0_160 = arith.constant 0 : index
      %c0_161 = arith.constant 0 : index
      %589 = vector.load %arg13[%c0_160, %c0_161] : memref<8x128xf32, #tpu.memory_space<vmem>>, vector<8x128xf32>
      tpu.vector_store %arg13[%c0_160, %c0_161], %588 {strides = array<i32>} : memref<8x128xf32, #tpu.memory_space<vmem>>, vector<8x128xf32>,
    } else {
    }
    %c0_72 = arith.constant 0 : index
    %c0_73 = arith.constant 0 : index
    %315 = vector.load %arg13[%c0_72, %c0_73] : memref<8x128xf32, #tpu.memory_space<vmem>>, vector<8x128xf32>
    %316 = arith.truncf %315 : vector<8x128xf32> to vector<8x128xbf16>
    %317 = arith.truncf %300 : vector<8x128xf32> to vector<8x128xbf16>
    %318 = tpu.concatenate %316, %317 in 1 : vector<8x128xbf16>, vector<8x128xbf16> -> vector<8x256xbf16>
    %cst_74 = arith.constant dense<0.000000e+00> : vector<8x512xf32>
    %319 = tpu.matmul %318, %3, %cst_74 {dimension_numbers = #tpu.dot_dimension_numbers<[1], [0], [0], [1], [0, 0, 1, 1], [], []>} : vector<8x256xbf16>, vector<256x512xbf16>, vector<8x512xf32> -> vector<8x512xf32>
    %320 = vector.broadcast %4 : vector<1x512xf32> to vector<8x512xf32>
    %321 = arith.addf %319, %320 : vector<8x512xf32>
    %322 = vector.extract_strided_slice %321 {offsets = [0, 0], sizes = [8, 128], strides = [1, 1]} : vector<8x512xf32> to vector<8x128xf32>
    %323 = arith.negf %322 : vector<8x128xf32>
    %324 = math.exp %323 : vector<8x128xf32>
    %cst_75 = arith.constant 1.000000e+00 : f32
    %325 = vector.broadcast %cst_75 : f32 to vector<8x128xf32>
    %326 = arith.addf %325, %324 : vector<8x128xf32>
    %327 = arith.divf %325, %326 : vector<8x128xf32>
    %328 = vector.extract_strided_slice %321 {offsets = [0, 128], sizes = [8, 128], strides = [1, 1]} : vector<8x512xf32> to vector<8x128xf32>
    %329 = arith.negf %328 : vector<8x128xf32>
    %330 = math.exp %329 : vector<8x128xf32>
    %cst_76 = arith.constant 1.000000e+00 : f32
    %331 = vector.broadcast %cst_76 : f32 to vector<8x128xf32>
    %332 = arith.addf %331, %330 : vector<8x128xf32>
    %333 = arith.divf %331, %332 : vector<8x128xf32>
    %334 = vector.extract_strided_slice %321 {offsets = [0, 256], sizes = [8, 128], strides = [1, 1]} : vector<8x512xf32> to vector<8x128xf32>
    %335 = vector.extract_strided_slice %321 {offsets = [0, 384], sizes = [8, 128], strides = [1, 1]} : vector<8x512xf32> to vector<8x128xf32>
    %336 = arith.mulf %327, %335 : vector<8x128xf32>
    %337 = arith.addf %334, %336 : vector<8x128xf32>
    %338 = math.tanh %337 : vector<8x128xf32>
    %cst_77 = arith.constant 1.000000e+00 : f32
    %339 = vector.broadcast %cst_77 : f32 to vector<8x128xf32>
    %340 = arith.subf %339, %333 : vector<8x128xf32>
    %341 = arith.mulf %340, %338 : vector<8x128xf32>
    %342 = arith.mulf %333, %300 : vector<8x128xf32>
    %343 = arith.addf %341, %342 : vector<8x128xf32>
    %344 = arith.truncf %343 : vector<8x128xf32> to vector<8x128xbf16>
    %cst_78 = arith.constant dense<0.000000e+00> : vector<8x128xf32>
    %345 = tpu.matmul %344, %5, %cst_78 {dimension_numbers = #tpu.dot_dimension_numbers<[1], [0], [0], [1], [0, 0, 1, 1], [], []>} : vector<8x128xbf16>, vector<128x128xbf16>, vector<8x128xf32> -> vector<8x128xf32>
    %346 = vector.broadcast %6 : vector<1x128xf32> to vector<8x128xf32>
    %347 = arith.addf %345, %346 : vector<8x128xf32>
    %c2 = arith.constant 2 : index
    %c0_79 = arith.constant 0 : index
    %c0_80 = arith.constant 0 : index
    %348 = vector.load %arg12[%c2, %c0_79, %c0_80] : memref<8x8x128xf32, #tpu.memory_space<vmem>>, vector<1x8x128xf32>
    %349 = vector.shape_cast %348 : vector<1x8x128xf32> to vector<8x128xf32>
    %350 = vector.shape_cast %347 : vector<8x128xf32> to vector<1x8x128xf32>
    tpu.vector_store %arg12[%c2, %c0_79, %c0_80], %350 {strides = array<i32>} : memref<8x8x128xf32, #tpu.memory_space<vmem>>, vector<1x8x128xf32>,
    %c2_81 = arith.constant 2 : index
    %351 = memref.load %arg0[%c2_81] : memref<8xi32, #tpu.memory_space<smem>>
    %c1_i32_82 = arith.constant 1 : i32
    %352 = arith.cmpi eq, %351, %c1_i32_82 : i32
    %353 = arith.extui %352 : i1 to i32
    %c0_i32_83 = arith.constant 0 : i32
    %354 = arith.cmpi ne, %353, %c0_i32_83 : i32
    scf.if %354 {
      %c16 = arith.constant 16 : index
      %c0_156 = arith.constant 0 : index
      %573 = vector.load %arg2[%c16, %c0_156] : memref<64x128xbf16, #tpu.memory_space<vmem>>, vector<8x128xbf16>
      %574 = arith.extf %573 : vector<8x128xbf16> to vector<8x128xf32>
      %c0_157 = arith.constant 0 : index
      %c0_158 = arith.constant 0 : index
      %575 = vector.load %arg13[%c0_157, %c0_158] : memref<8x128xf32, #tpu.memory_space<vmem>>, vector<8x128xf32>
      tpu.vector_store %arg13[%c0_157, %c0_158], %574 {strides = array<i32>} : memref<8x128xf32, #tpu.memory_space<vmem>>, vector<8x128xf32>,
    } else {
    }
    %c0_i32_84 = arith.constant 0 : i32
    %355 = arith.cmpi eq, %351, %c0_i32_84 : i32
    %356 = arith.extui %355 : i1 to i32
    %c0_i32_85 = arith.constant 0 : i32
    %357 = arith.cmpi ne, %356, %c0_i32_85 : i32
    scf.if %357 {
      %cst_156 = arith.constant -1.000000e+30 : f32
      %573 = vector.broadcast %cst_156 : f32 to vector<8x128xf32>
      %574 = arith.select %268, %347, %573 : vector<8x128xi1>, vector<8x128xf32>
      %cst_157 = arith.constant dense<0xFF800000> : vector<8xf32>
      %575 = vector.multi_reduction <maximumf>, %574, %cst_157 [1] : vector<8x128xf32> to vector<8xf32>
      %576 = vector.shape_cast %575 : vector<8xf32> to vector<8x1xf32>
      %577 = vector.broadcast %576 : vector<8x1xf32> to vector<8x128xf32>
      %578 = arith.cmpf oeq, %574, %577 : vector<8x128xf32>
      %c128_i32 = arith.constant 128 : i32
      %579 = vector.broadcast %c128_i32 : i32 to vector<8x128xi32>
      %580 = arith.select %578, %266, %579 : vector<8x128xi1>, vector<8x128xi32>
      %cst_158 = arith.constant dense<2147483647> : vector<8xi32>
      %581 = vector.multi_reduction <minsi>, %580, %cst_158 [1] : vector<8x128xi32> to vector<8xi32>
      %582 = vector.shape_cast %581 : vector<8xi32> to vector<8x1xi32>
      %583 = vector.broadcast %582 : vector<8x1xi32> to vector<8x128xi32>
      %584 = arith.cmpi eq, %266, %583 : vector<8x128xi32>
      %585 = arith.extui %584 : vector<8x128xi1> to vector<8x128xi32>
      %586 = arith.sitofp %585 : vector<8x128xi32> to vector<8x128xf32>
      %587 = arith.truncf %586 : vector<8x128xf32> to vector<8x128xbf16>
      %cst_159 = arith.constant dense<0.000000e+00> : vector<8x128xf32>
      %588 = tpu.matmul %587, %2, %cst_159 {dimension_numbers = #tpu.dot_dimension_numbers<[1], [0], [0], [1], [0, 0, 1, 1], [], []>} : vector<8x128xbf16>, vector<128x128xbf16>, vector<8x128xf32> -> vector<8x128xf32>
      %c0_160 = arith.constant 0 : index
      %c0_161 = arith.constant 0 : index
      %589 = vector.load %arg13[%c0_160, %c0_161] : memref<8x128xf32, #tpu.memory_space<vmem>>, vector<8x128xf32>
      tpu.vector_store %arg13[%c0_160, %c0_161], %588 {strides = array<i32>} : memref<8x128xf32, #tpu.memory_space<vmem>>, vector<8x128xf32>,
    } else {
    }
    %c0_86 = arith.constant 0 : index
    %c0_87 = arith.constant 0 : index
    %358 = vector.load %arg13[%c0_86, %c0_87] : memref<8x128xf32, #tpu.memory_space<vmem>>, vector<8x128xf32>
    %359 = arith.truncf %358 : vector<8x128xf32> to vector<8x128xbf16>
    %360 = arith.truncf %343 : vector<8x128xf32> to vector<8x128xbf16>
    %361 = tpu.concatenate %359, %360 in 1 : vector<8x128xbf16>, vector<8x128xbf16> -> vector<8x256xbf16>
    %cst_88 = arith.constant dense<0.000000e+00> : vector<8x512xf32>
    %362 = tpu.matmul %361, %3, %cst_88 {dimension_numbers = #tpu.dot_dimension_numbers<[1], [0], [0], [1], [0, 0, 1, 1], [], []>} : vector<8x256xbf16>, vector<256x512xbf16>, vector<8x512xf32> -> vector<8x512xf32>
    %363 = vector.broadcast %4 : vector<1x512xf32> to vector<8x512xf32>
    %364 = arith.addf %362, %363 : vector<8x512xf32>
    %365 = vector.extract_strided_slice %364 {offsets = [0, 0], sizes = [8, 128], strides = [1, 1]} : vector<8x512xf32> to vector<8x128xf32>
    %366 = arith.negf %365 : vector<8x128xf32>
    %367 = math.exp %366 : vector<8x128xf32>
    %cst_89 = arith.constant 1.000000e+00 : f32
    %368 = vector.broadcast %cst_89 : f32 to vector<8x128xf32>
    %369 = arith.addf %368, %367 : vector<8x128xf32>
    %370 = arith.divf %368, %369 : vector<8x128xf32>
    %371 = vector.extract_strided_slice %364 {offsets = [0, 128], sizes = [8, 128], strides = [1, 1]} : vector<8x512xf32> to vector<8x128xf32>
    %372 = arith.negf %371 : vector<8x128xf32>
    %373 = math.exp %372 : vector<8x128xf32>
    %cst_90 = arith.constant 1.000000e+00 : f32
    %374 = vector.broadcast %cst_90 : f32 to vector<8x128xf32>
    %375 = arith.addf %374, %373 : vector<8x128xf32>
    %376 = arith.divf %374, %375 : vector<8x128xf32>
    %377 = vector.extract_strided_slice %364 {offsets = [0, 256], sizes = [8, 128], strides = [1, 1]} : vector<8x512xf32> to vector<8x128xf32>
    %378 = vector.extract_strided_slice %364 {offsets = [0, 384], sizes = [8, 128], strides = [1, 1]} : vector<8x512xf32> to vector<8x128xf32>
    %379 = arith.mulf %370, %378 : vector<8x128xf32>
    %380 = arith.addf %377, %379 : vector<8x128xf32>
    %381 = math.tanh %380 : vector<8x128xf32>
    %cst_91 = arith.constant 1.000000e+00 : f32
    %382 = vector.broadcast %cst_91 : f32 to vector<8x128xf32>
    %383 = arith.subf %382, %376 : vector<8x128xf32>
    %384 = arith.mulf %383, %381 : vector<8x128xf32>
    %385 = arith.mulf %376, %343 : vector<8x128xf32>
    %386 = arith.addf %384, %385 : vector<8x128xf32>
    %387 = arith.truncf %386 : vector<8x128xf32> to vector<8x128xbf16>
    %cst_92 = arith.constant dense<0.000000e+00> : vector<8x128xf32>
    %388 = tpu.matmul %387, %5, %cst_92 {dimension_numbers = #tpu.dot_dimension_numbers<[1], [0], [0], [1], [0, 0, 1, 1], [], []>} : vector<8x128xbf16>, vector<128x128xbf16>, vector<8x128xf32> -> vector<8x128xf32>
    %389 = vector.broadcast %6 : vector<1x128xf32> to vector<8x128xf32>
    %390 = arith.addf %388, %389 : vector<8x128xf32>
    %c3 = arith.constant 3 : index
    %c0_93 = arith.constant 0 : index
    %c0_94 = arith.constant 0 : index
    %391 = vector.load %arg12[%c3, %c0_93, %c0_94] : memref<8x8x128xf32, #tpu.memory_space<vmem>>, vector<1x8x128xf32>
    %392 = vector.shape_cast %391 : vector<1x8x128xf32> to vector<8x128xf32>
    %393 = vector.shape_cast %390 : vector<8x128xf32> to vector<1x8x128xf32>
    tpu.vector_store %arg12[%c3, %c0_93, %c0_94], %393 {strides = array<i32>} : memref<8x8x128xf32, #tpu.memory_space<vmem>>, vector<1x8x128xf32>,
    %c3_95 = arith.constant 3 : index
    %394 = memref.load %arg0[%c3_95] : memref<8xi32, #tpu.memory_space<smem>>
    %c1_i32_96 = arith.constant 1 : i32
    %395 = arith.cmpi eq, %394, %c1_i32_96 : i32
    %396 = arith.extui %395 : i1 to i32
    %c0_i32_97 = arith.constant 0 : i32
    %397 = arith.cmpi ne, %396, %c0_i32_97 : i32
    scf.if %397 {
      %c24 = arith.constant 24 : index
      %c0_156 = arith.constant 0 : index
      %573 = vector.load %arg2[%c24, %c0_156] : memref<64x128xbf16, #tpu.memory_space<vmem>>, vector<8x128xbf16>
      %574 = arith.extf %573 : vector<8x128xbf16> to vector<8x128xf32>
      %c0_157 = arith.constant 0 : index
      %c0_158 = arith.constant 0 : index
      %575 = vector.load %arg13[%c0_157, %c0_158] : memref<8x128xf32, #tpu.memory_space<vmem>>, vector<8x128xf32>
      tpu.vector_store %arg13[%c0_157, %c0_158], %574 {strides = array<i32>} : memref<8x128xf32, #tpu.memory_space<vmem>>, vector<8x128xf32>,
    } else {
    }
    %c0_i32_98 = arith.constant 0 : i32
    %398 = arith.cmpi eq, %394, %c0_i32_98 : i32
    %399 = arith.extui %398 : i1 to i32
    %c0_i32_99 = arith.constant 0 : i32
    %400 = arith.cmpi ne, %399, %c0_i32_99 : i32
    scf.if %400 {
      %cst_156 = arith.constant -1.000000e+30 : f32
      %573 = vector.broadcast %cst_156 : f32 to vector<8x128xf32>
      %574 = arith.select %268, %390, %573 : vector<8x128xi1>, vector<8x128xf32>
      %cst_157 = arith.constant dense<0xFF800000> : vector<8xf32>
      %575 = vector.multi_reduction <maximumf>, %574, %cst_157 [1] : vector<8x128xf32> to vector<8xf32>
      %576 = vector.shape_cast %575 : vector<8xf32> to vector<8x1xf32>
      %577 = vector.broadcast %576 : vector<8x1xf32> to vector<8x128xf32>
      %578 = arith.cmpf oeq, %574, %577 : vector<8x128xf32>
      %c128_i32 = arith.constant 128 : i32
      %579 = vector.broadcast %c128_i32 : i32 to vector<8x128xi32>
      %580 = arith.select %578, %266, %579 : vector<8x128xi1>, vector<8x128xi32>
      %cst_158 = arith.constant dense<2147483647> : vector<8xi32>
      %581 = vector.multi_reduction <minsi>, %580, %cst_158 [1] : vector<8x128xi32> to vector<8xi32>
      %582 = vector.shape_cast %581 : vector<8xi32> to vector<8x1xi32>
      %583 = vector.broadcast %582 : vector<8x1xi32> to vector<8x128xi32>
      %584 = arith.cmpi eq, %266, %583 : vector<8x128xi32>
      %585 = arith.extui %584 : vector<8x128xi1> to vector<8x128xi32>
      %586 = arith.sitofp %585 : vector<8x128xi32> to vector<8x128xf32>
      %587 = arith.truncf %586 : vector<8x128xf32> to vector<8x128xbf16>
      %cst_159 = arith.constant dense<0.000000e+00> : vector<8x128xf32>
      %588 = tpu.matmul %587, %2, %cst_159 {dimension_numbers = #tpu.dot_dimension_numbers<[1], [0], [0], [1], [0, 0, 1, 1], [], []>} : vector<8x128xbf16>, vector<128x128xbf16>, vector<8x128xf32> -> vector<8x128xf32>
      %c0_160 = arith.constant 0 : index
      %c0_161 = arith.constant 0 : index
      %589 = vector.load %arg13[%c0_160, %c0_161] : memref<8x128xf32, #tpu.memory_space<vmem>>, vector<8x128xf32>
      tpu.vector_store %arg13[%c0_160, %c0_161], %588 {strides = array<i32>} : memref<8x128xf32, #tpu.memory_space<vmem>>, vector<8x128xf32>,
    } else {
    }
    %c0_100 = arith.constant 0 : index
    %c0_101 = arith.constant 0 : index
    %401 = vector.load %arg13[%c0_100, %c0_101] : memref<8x128xf32, #tpu.memory_space<vmem>>, vector<8x128xf32>
    %402 = arith.truncf %401 : vector<8x128xf32> to vector<8x128xbf16>
    %403 = arith.truncf %386 : vector<8x128xf32> to vector<8x128xbf16>
    %404 = tpu.concatenate %402, %403 in 1 : vector<8x128xbf16>, vector<8x128xbf16> -> vector<8x256xbf16>
    %cst_102 = arith.constant dense<0.000000e+00> : vector<8x512xf32>
    %405 = tpu.matmul %404, %3, %cst_102 {dimension_numbers = #tpu.dot_dimension_numbers<[1], [0], [0], [1], [0, 0, 1, 1], [], []>} : vector<8x256xbf16>, vector<256x512xbf16>, vector<8x512xf32> -> vector<8x512xf32>
    %406 = vector.broadcast %4 : vector<1x512xf32> to vector<8x512xf32>
    %407 = arith.addf %405, %406 : vector<8x512xf32>
    %408 = vector.extract_strided_slice %407 {offsets = [0, 0], sizes = [8, 128], strides = [1, 1]} : vector<8x512xf32> to vector<8x128xf32>
    %409 = arith.negf %408 : vector<8x128xf32>
    %410 = math.exp %409 : vector<8x128xf32>
    %cst_103 = arith.constant 1.000000e+00 : f32
    %411 = vector.broadcast %cst_103 : f32 to vector<8x128xf32>
    %412 = arith.addf %411, %410 : vector<8x128xf32>
    %413 = arith.divf %411, %412 : vector<8x128xf32>
    %414 = vector.extract_strided_slice %407 {offsets = [0, 128], sizes = [8, 128], strides = [1, 1]} : vector<8x512xf32> to vector<8x128xf32>
    %415 = arith.negf %414 : vector<8x128xf32>
    %416 = math.exp %415 : vector<8x128xf32>
    %cst_104 = arith.constant 1.000000e+00 : f32
    %417 = vector.broadcast %cst_104 : f32 to vector<8x128xf32>
    %418 = arith.addf %417, %416 : vector<8x128xf32>
    %419 = arith.divf %417, %418 : vector<8x128xf32>
    %420 = vector.extract_strided_slice %407 {offsets = [0, 256], sizes = [8, 128], strides = [1, 1]} : vector<8x512xf32> to vector<8x128xf32>
    %421 = vector.extract_strided_slice %407 {offsets = [0, 384], sizes = [8, 128], strides = [1, 1]} : vector<8x512xf32> to vector<8x128xf32>
    %422 = arith.mulf %413, %421 : vector<8x128xf32>
    %423 = arith.addf %420, %422 : vector<8x128xf32>
    %424 = math.tanh %423 : vector<8x128xf32>
    %cst_105 = arith.constant 1.000000e+00 : f32
    %425 = vector.broadcast %cst_105 : f32 to vector<8x128xf32>
    %426 = arith.subf %425, %419 : vector<8x128xf32>
    %427 = arith.mulf %426, %424 : vector<8x128xf32>
    %428 = arith.mulf %419, %386 : vector<8x128xf32>
    %429 = arith.addf %427, %428 : vector<8x128xf32>
    %430 = arith.truncf %429 : vector<8x128xf32> to vector<8x128xbf16>
    %cst_106 = arith.constant dense<0.000000e+00> : vector<8x128xf32>
    %431 = tpu.matmul %430, %5, %cst_106 {dimension_numbers = #tpu.dot_dimension_numbers<[1], [0], [0], [1], [0, 0, 1, 1], [], []>} : vector<8x128xbf16>, vector<128x128xbf16>, vector<8x128xf32> -> vector<8x128xf32>
    %432 = vector.broadcast %6 : vector<1x128xf32> to vector<8x128xf32>
    %433 = arith.addf %431, %432 : vector<8x128xf32>
    %c4 = arith.constant 4 : index
    %c0_107 = arith.constant 0 : index
    %c0_108 = arith.constant 0 : index
    %434 = vector.load %arg12[%c4, %c0_107, %c0_108] : memref<8x8x128xf32, #tpu.memory_space<vmem>>, vector<1x8x128xf32>
    %435 = vector.shape_cast %434 : vector<1x8x128xf32> to vector<8x128xf32>
    %436 = vector.shape_cast %433 : vector<8x128xf32> to vector<1x8x128xf32>
    tpu.vector_store %arg12[%c4, %c0_107, %c0_108], %436 {strides = array<i32>} : memref<8x8x128xf32, #tpu.memory_space<vmem>>, vector<1x8x128xf32>,
    %c4_109 = arith.constant 4 : index
    %437 = memref.load %arg0[%c4_109] : memref<8xi32, #tpu.memory_space<smem>>
    %c1_i32_110 = arith.constant 1 : i32
    %438 = arith.cmpi eq, %437, %c1_i32_110 : i32
    %439 = arith.extui %438 : i1 to i32
    %c0_i32_111 = arith.constant 0 : i32
    %440 = arith.cmpi ne, %439, %c0_i32_111 : i32
    scf.if %440 {
      %c32 = arith.constant 32 : index
      %c0_156 = arith.constant 0 : index
      %573 = vector.load %arg2[%c32, %c0_156] : memref<64x128xbf16, #tpu.memory_space<vmem>>, vector<8x128xbf16>
      %574 = arith.extf %573 : vector<8x128xbf16> to vector<8x128xf32>
      %c0_157 = arith.constant 0 : index
      %c0_158 = arith.constant 0 : index
      %575 = vector.load %arg13[%c0_157, %c0_158] : memref<8x128xf32, #tpu.memory_space<vmem>>, vector<8x128xf32>
      tpu.vector_store %arg13[%c0_157, %c0_158], %574 {strides = array<i32>} : memref<8x128xf32, #tpu.memory_space<vmem>>, vector<8x128xf32>,
    } else {
    }
    %c0_i32_112 = arith.constant 0 : i32
    %441 = arith.cmpi eq, %437, %c0_i32_112 : i32
    %442 = arith.extui %441 : i1 to i32
    %c0_i32_113 = arith.constant 0 : i32
    %443 = arith.cmpi ne, %442, %c0_i32_113 : i32
    scf.if %443 {
      %cst_156 = arith.constant -1.000000e+30 : f32
      %573 = vector.broadcast %cst_156 : f32 to vector<8x128xf32>
      %574 = arith.select %268, %433, %573 : vector<8x128xi1>, vector<8x128xf32>
      %cst_157 = arith.constant dense<0xFF800000> : vector<8xf32>
      %575 = vector.multi_reduction <maximumf>, %574, %cst_157 [1] : vector<8x128xf32> to vector<8xf32>
      %576 = vector.shape_cast %575 : vector<8xf32> to vector<8x1xf32>
      %577 = vector.broadcast %576 : vector<8x1xf32> to vector<8x128xf32>
      %578 = arith.cmpf oeq, %574, %577 : vector<8x128xf32>
      %c128_i32 = arith.constant 128 : i32
      %579 = vector.broadcast %c128_i32 : i32 to vector<8x128xi32>
      %580 = arith.select %578, %266, %579 : vector<8x128xi1>, vector<8x128xi32>
      %cst_158 = arith.constant dense<2147483647> : vector<8xi32>
      %581 = vector.multi_reduction <minsi>, %580, %cst_158 [1] : vector<8x128xi32> to vector<8xi32>
      %582 = vector.shape_cast %581 : vector<8xi32> to vector<8x1xi32>
      %583 = vector.broadcast %582 : vector<8x1xi32> to vector<8x128xi32>
      %584 = arith.cmpi eq, %266, %583 : vector<8x128xi32>
      %585 = arith.extui %584 : vector<8x128xi1> to vector<8x128xi32>
      %586 = arith.sitofp %585 : vector<8x128xi32> to vector<8x128xf32>
      %587 = arith.truncf %586 : vector<8x128xf32> to vector<8x128xbf16>
      %cst_159 = arith.constant dense<0.000000e+00> : vector<8x128xf32>
      %588 = tpu.matmul %587, %2, %cst_159 {dimension_numbers = #tpu.dot_dimension_numbers<[1], [0], [0], [1], [0, 0, 1, 1], [], []>} : vector<8x128xbf16>, vector<128x128xbf16>, vector<8x128xf32> -> vector<8x128xf32>
      %c0_160 = arith.constant 0 : index
      %c0_161 = arith.constant 0 : index
      %589 = vector.load %arg13[%c0_160, %c0_161] : memref<8x128xf32, #tpu.memory_space<vmem>>, vector<8x128xf32>
      tpu.vector_store %arg13[%c0_160, %c0_161], %588 {strides = array<i32>} : memref<8x128xf32, #tpu.memory_space<vmem>>, vector<8x128xf32>,
    } else {
    }
    %c0_114 = arith.constant 0 : index
    %c0_115 = arith.constant 0 : index
    %444 = vector.load %arg13[%c0_114, %c0_115] : memref<8x128xf32, #tpu.memory_space<vmem>>, vector<8x128xf32>
    %445 = arith.truncf %444 : vector<8x128xf32> to vector<8x128xbf16>
    %446 = arith.truncf %429 : vector<8x128xf32> to vector<8x128xbf16>
    %447 = tpu.concatenate %445, %446 in 1 : vector<8x128xbf16>, vector<8x128xbf16> -> vector<8x256xbf16>
    %cst_116 = arith.constant dense<0.000000e+00> : vector<8x512xf32>
    %448 = tpu.matmul %447, %3, %cst_116 {dimension_numbers = #tpu.dot_dimension_numbers<[1], [0], [0], [1], [0, 0, 1, 1], [], []>} : vector<8x256xbf16>, vector<256x512xbf16>, vector<8x512xf32> -> vector<8x512xf32>
    %449 = vector.broadcast %4 : vector<1x512xf32> to vector<8x512xf32>
    %450 = arith.addf %448, %449 : vector<8x512xf32>
    %451 = vector.extract_strided_slice %450 {offsets = [0, 0], sizes = [8, 128], strides = [1, 1]} : vector<8x512xf32> to vector<8x128xf32>
    %452 = arith.negf %451 : vector<8x128xf32>
    %453 = math.exp %452 : vector<8x128xf32>
    %cst_117 = arith.constant 1.000000e+00 : f32
    %454 = vector.broadcast %cst_117 : f32 to vector<8x128xf32>
    %455 = arith.addf %454, %453 : vector<8x128xf32>
    %456 = arith.divf %454, %455 : vector<8x128xf32>
    %457 = vector.extract_strided_slice %450 {offsets = [0, 128], sizes = [8, 128], strides = [1, 1]} : vector<8x512xf32> to vector<8x128xf32>
    %458 = arith.negf %457 : vector<8x128xf32>
    %459 = math.exp %458 : vector<8x128xf32>
    %cst_118 = arith.constant 1.000000e+00 : f32
    %460 = vector.broadcast %cst_118 : f32 to vector<8x128xf32>
    %461 = arith.addf %460, %459 : vector<8x128xf32>
    %462 = arith.divf %460, %461 : vector<8x128xf32>
    %463 = vector.extract_strided_slice %450 {offsets = [0, 256], sizes = [8, 128], strides = [1, 1]} : vector<8x512xf32> to vector<8x128xf32>
    %464 = vector.extract_strided_slice %450 {offsets = [0, 384], sizes = [8, 128], strides = [1, 1]} : vector<8x512xf32> to vector<8x128xf32>
    %465 = arith.mulf %456, %464 : vector<8x128xf32>
    %466 = arith.addf %463, %465 : vector<8x128xf32>
    %467 = math.tanh %466 : vector<8x128xf32>
    %cst_119 = arith.constant 1.000000e+00 : f32
    %468 = vector.broadcast %cst_119 : f32 to vector<8x128xf32>
    %469 = arith.subf %468, %462 : vector<8x128xf32>
    %470 = arith.mulf %469, %467 : vector<8x128xf32>
    %471 = arith.mulf %462, %429 : vector<8x128xf32>
    %472 = arith.addf %470, %471 : vector<8x128xf32>
    %473 = arith.truncf %472 : vector<8x128xf32> to vector<8x128xbf16>
    %cst_120 = arith.constant dense<0.000000e+00> : vector<8x128xf32>
    %474 = tpu.matmul %473, %5, %cst_120 {dimension_numbers = #tpu.dot_dimension_numbers<[1], [0], [0], [1], [0, 0, 1, 1], [], []>} : vector<8x128xbf16>, vector<128x128xbf16>, vector<8x128xf32> -> vector<8x128xf32>
    %475 = vector.broadcast %6 : vector<1x128xf32> to vector<8x128xf32>
    %476 = arith.addf %474, %475 : vector<8x128xf32>
    %c5 = arith.constant 5 : index
    %c0_121 = arith.constant 0 : index
    %c0_122 = arith.constant 0 : index
    %477 = vector.load %arg12[%c5, %c0_121, %c0_122] : memref<8x8x128xf32, #tpu.memory_space<vmem>>, vector<1x8x128xf32>
    %478 = vector.shape_cast %477 : vector<1x8x128xf32> to vector<8x128xf32>
    %479 = vector.shape_cast %476 : vector<8x128xf32> to vector<1x8x128xf32>
    tpu.vector_store %arg12[%c5, %c0_121, %c0_122], %479 {strides = array<i32>} : memref<8x8x128xf32, #tpu.memory_space<vmem>>, vector<1x8x128xf32>,
    %c5_123 = arith.constant 5 : index
    %480 = memref.load %arg0[%c5_123] : memref<8xi32, #tpu.memory_space<smem>>
    %c1_i32_124 = arith.constant 1 : i32
    %481 = arith.cmpi eq, %480, %c1_i32_124 : i32
    %482 = arith.extui %481 : i1 to i32
    %c0_i32_125 = arith.constant 0 : i32
    %483 = arith.cmpi ne, %482, %c0_i32_125 : i32
    scf.if %483 {
      %c40 = arith.constant 40 : index
      %c0_156 = arith.constant 0 : index
      %573 = vector.load %arg2[%c40, %c0_156] : memref<64x128xbf16, #tpu.memory_space<vmem>>, vector<8x128xbf16>
      %574 = arith.extf %573 : vector<8x128xbf16> to vector<8x128xf32>
      %c0_157 = arith.constant 0 : index
      %c0_158 = arith.constant 0 : index
      %575 = vector.load %arg13[%c0_157, %c0_158] : memref<8x128xf32, #tpu.memory_space<vmem>>, vector<8x128xf32>
      tpu.vector_store %arg13[%c0_157, %c0_158], %574 {strides = array<i32>} : memref<8x128xf32, #tpu.memory_space<vmem>>, vector<8x128xf32>,
    } else {
    }
    %c0_i32_126 = arith.constant 0 : i32
    %484 = arith.cmpi eq, %480, %c0_i32_126 : i32
    %485 = arith.extui %484 : i1 to i32
    %c0_i32_127 = arith.constant 0 : i32
    %486 = arith.cmpi ne, %485, %c0_i32_127 : i32
    scf.if %486 {
      %cst_156 = arith.constant -1.000000e+30 : f32
      %573 = vector.broadcast %cst_156 : f32 to vector<8x128xf32>
      %574 = arith.select %268, %476, %573 : vector<8x128xi1>, vector<8x128xf32>
      %cst_157 = arith.constant dense<0xFF800000> : vector<8xf32>
      %575 = vector.multi_reduction <maximumf>, %574, %cst_157 [1] : vector<8x128xf32> to vector<8xf32>
      %576 = vector.shape_cast %575 : vector<8xf32> to vector<8x1xf32>
      %577 = vector.broadcast %576 : vector<8x1xf32> to vector<8x128xf32>
      %578 = arith.cmpf oeq, %574, %577 : vector<8x128xf32>
      %c128_i32 = arith.constant 128 : i32
      %579 = vector.broadcast %c128_i32 : i32 to vector<8x128xi32>
      %580 = arith.select %578, %266, %579 : vector<8x128xi1>, vector<8x128xi32>
      %cst_158 = arith.constant dense<2147483647> : vector<8xi32>
      %581 = vector.multi_reduction <minsi>, %580, %cst_158 [1] : vector<8x128xi32> to vector<8xi32>
      %582 = vector.shape_cast %581 : vector<8xi32> to vector<8x1xi32>
      %583 = vector.broadcast %582 : vector<8x1xi32> to vector<8x128xi32>
      %584 = arith.cmpi eq, %266, %583 : vector<8x128xi32>
      %585 = arith.extui %584 : vector<8x128xi1> to vector<8x128xi32>
      %586 = arith.sitofp %585 : vector<8x128xi32> to vector<8x128xf32>
      %587 = arith.truncf %586 : vector<8x128xf32> to vector<8x128xbf16>
      %cst_159 = arith.constant dense<0.000000e+00> : vector<8x128xf32>
      %588 = tpu.matmul %587, %2, %cst_159 {dimension_numbers = #tpu.dot_dimension_numbers<[1], [0], [0], [1], [0, 0, 1, 1], [], []>} : vector<8x128xbf16>, vector<128x128xbf16>, vector<8x128xf32> -> vector<8x128xf32>
      %c0_160 = arith.constant 0 : index
      %c0_161 = arith.constant 0 : index
      %589 = vector.load %arg13[%c0_160, %c0_161] : memref<8x128xf32, #tpu.memory_space<vmem>>, vector<8x128xf32>
      tpu.vector_store %arg13[%c0_160, %c0_161], %588 {strides = array<i32>} : memref<8x128xf32, #tpu.memory_space<vmem>>, vector<8x128xf32>,
    } else {
    }
    %c0_128 = arith.constant 0 : index
    %c0_129 = arith.constant 0 : index
    %487 = vector.load %arg13[%c0_128, %c0_129] : memref<8x128xf32, #tpu.memory_space<vmem>>, vector<8x128xf32>
    %488 = arith.truncf %487 : vector<8x128xf32> to vector<8x128xbf16>
    %489 = arith.truncf %472 : vector<8x128xf32> to vector<8x128xbf16>
    %490 = tpu.concatenate %488, %489 in 1 : vector<8x128xbf16>, vector<8x128xbf16> -> vector<8x256xbf16>
    %cst_130 = arith.constant dense<0.000000e+00> : vector<8x512xf32>
    %491 = tpu.matmul %490, %3, %cst_130 {dimension_numbers = #tpu.dot_dimension_numbers<[1], [0], [0], [1], [0, 0, 1, 1], [], []>} : vector<8x256xbf16>, vector<256x512xbf16>, vector<8x512xf32> -> vector<8x512xf32>
    %492 = vector.broadcast %4 : vector<1x512xf32> to vector<8x512xf32>
    %493 = arith.addf %491, %492 : vector<8x512xf32>
    %494 = vector.extract_strided_slice %493 {offsets = [0, 0], sizes = [8, 128], strides = [1, 1]} : vector<8x512xf32> to vector<8x128xf32>
    %495 = arith.negf %494 : vector<8x128xf32>
    %496 = math.exp %495 : vector<8x128xf32>
    %cst_131 = arith.constant 1.000000e+00 : f32
    %497 = vector.broadcast %cst_131 : f32 to vector<8x128xf32>
    %498 = arith.addf %497, %496 : vector<8x128xf32>
    %499 = arith.divf %497, %498 : vector<8x128xf32>
    %500 = vector.extract_strided_slice %493 {offsets = [0, 128], sizes = [8, 128], strides = [1, 1]} : vector<8x512xf32> to vector<8x128xf32>
    %501 = arith.negf %500 : vector<8x128xf32>
    %502 = math.exp %501 : vector<8x128xf32>
    %cst_132 = arith.constant 1.000000e+00 : f32
    %503 = vector.broadcast %cst_132 : f32 to vector<8x128xf32>
    %504 = arith.addf %503, %502 : vector<8x128xf32>
    %505 = arith.divf %503, %504 : vector<8x128xf32>
    %506 = vector.extract_strided_slice %493 {offsets = [0, 256], sizes = [8, 128], strides = [1, 1]} : vector<8x512xf32> to vector<8x128xf32>
    %507 = vector.extract_strided_slice %493 {offsets = [0, 384], sizes = [8, 128], strides = [1, 1]} : vector<8x512xf32> to vector<8x128xf32>
    %508 = arith.mulf %499, %507 : vector<8x128xf32>
    %509 = arith.addf %506, %508 : vector<8x128xf32>
    %510 = math.tanh %509 : vector<8x128xf32>
    %cst_133 = arith.constant 1.000000e+00 : f32
    %511 = vector.broadcast %cst_133 : f32 to vector<8x128xf32>
    %512 = arith.subf %511, %505 : vector<8x128xf32>
    %513 = arith.mulf %512, %510 : vector<8x128xf32>
    %514 = arith.mulf %505, %472 : vector<8x128xf32>
    %515 = arith.addf %513, %514 : vector<8x128xf32>
    %516 = arith.truncf %515 : vector<8x128xf32> to vector<8x128xbf16>
    %cst_134 = arith.constant dense<0.000000e+00> : vector<8x128xf32>
    %517 = tpu.matmul %516, %5, %cst_134 {dimension_numbers = #tpu.dot_dimension_numbers<[1], [0], [0], [1], [0, 0, 1, 1], [], []>} : vector<8x128xbf16>, vector<128x128xbf16>, vector<8x128xf32> -> vector<8x128xf32>
    %518 = vector.broadcast %6 : vector<1x128xf32> to vector<8x128xf32>
    %519 = arith.addf %517, %518 : vector<8x128xf32>
    %c6 = arith.constant 6 : index
    %c0_135 = arith.constant 0 : index
    %c0_136 = arith.constant 0 : index
    %520 = vector.load %arg12[%c6, %c0_135, %c0_136] : memref<8x8x128xf32, #tpu.memory_space<vmem>>, vector<1x8x128xf32>
    %521 = vector.shape_cast %520 : vector<1x8x128xf32> to vector<8x128xf32>
    %522 = vector.shape_cast %519 : vector<8x128xf32> to vector<1x8x128xf32>
    tpu.vector_store %arg12[%c6, %c0_135, %c0_136], %522 {strides = array<i32>} : memref<8x8x128xf32, #tpu.memory_space<vmem>>, vector<1x8x128xf32>,
    %c6_137 = arith.constant 6 : index
    %523 = memref.load %arg0[%c6_137] : memref<8xi32, #tpu.memory_space<smem>>
    %c1_i32_138 = arith.constant 1 : i32
    %524 = arith.cmpi eq, %523, %c1_i32_138 : i32
    %525 = arith.extui %524 : i1 to i32
    %c0_i32_139 = arith.constant 0 : i32
    %526 = arith.cmpi ne, %525, %c0_i32_139 : i32
    scf.if %526 {
      %c48 = arith.constant 48 : index
      %c0_156 = arith.constant 0 : index
      %573 = vector.load %arg2[%c48, %c0_156] : memref<64x128xbf16, #tpu.memory_space<vmem>>, vector<8x128xbf16>
      %574 = arith.extf %573 : vector<8x128xbf16> to vector<8x128xf32>
      %c0_157 = arith.constant 0 : index
      %c0_158 = arith.constant 0 : index
      %575 = vector.load %arg13[%c0_157, %c0_158] : memref<8x128xf32, #tpu.memory_space<vmem>>, vector<8x128xf32>
      tpu.vector_store %arg13[%c0_157, %c0_158], %574 {strides = array<i32>} : memref<8x128xf32, #tpu.memory_space<vmem>>, vector<8x128xf32>,
    } else {
    }
    %c0_i32_140 = arith.constant 0 : i32
    %527 = arith.cmpi eq, %523, %c0_i32_140 : i32
    %528 = arith.extui %527 : i1 to i32
    %c0_i32_141 = arith.constant 0 : i32
    %529 = arith.cmpi ne, %528, %c0_i32_141 : i32
    scf.if %529 {
      %cst_156 = arith.constant -1.000000e+30 : f32
      %573 = vector.broadcast %cst_156 : f32 to vector<8x128xf32>
      %574 = arith.select %268, %519, %573 : vector<8x128xi1>, vector<8x128xf32>
      %cst_157 = arith.constant dense<0xFF800000> : vector<8xf32>
      %575 = vector.multi_reduction <maximumf>, %574, %cst_157 [1] : vector<8x128xf32> to vector<8xf32>
      %576 = vector.shape_cast %575 : vector<8xf32> to vector<8x1xf32>
      %577 = vector.broadcast %576 : vector<8x1xf32> to vector<8x128xf32>
      %578 = arith.cmpf oeq, %574, %577 : vector<8x128xf32>
      %c128_i32 = arith.constant 128 : i32
      %579 = vector.broadcast %c128_i32 : i32 to vector<8x128xi32>
      %580 = arith.select %578, %266, %579 : vector<8x128xi1>, vector<8x128xi32>
      %cst_158 = arith.constant dense<2147483647> : vector<8xi32>
      %581 = vector.multi_reduction <minsi>, %580, %cst_158 [1] : vector<8x128xi32> to vector<8xi32>
      %582 = vector.shape_cast %581 : vector<8xi32> to vector<8x1xi32>
      %583 = vector.broadcast %582 : vector<8x1xi32> to vector<8x128xi32>
      %584 = arith.cmpi eq, %266, %583 : vector<8x128xi32>
      %585 = arith.extui %584 : vector<8x128xi1> to vector<8x128xi32>
      %586 = arith.sitofp %585 : vector<8x128xi32> to vector<8x128xf32>
      %587 = arith.truncf %586 : vector<8x128xf32> to vector<8x128xbf16>
      %cst_159 = arith.constant dense<0.000000e+00> : vector<8x128xf32>
      %588 = tpu.matmul %587, %2, %cst_159 {dimension_numbers = #tpu.dot_dimension_numbers<[1], [0], [0], [1], [0, 0, 1, 1], [], []>} : vector<8x128xbf16>, vector<128x128xbf16>, vector<8x128xf32> -> vector<8x128xf32>
      %c0_160 = arith.constant 0 : index
      %c0_161 = arith.constant 0 : index
      %589 = vector.load %arg13[%c0_160, %c0_161] : memref<8x128xf32, #tpu.memory_space<vmem>>, vector<8x128xf32>
      tpu.vector_store %arg13[%c0_160, %c0_161], %588 {strides = array<i32>} : memref<8x128xf32, #tpu.memory_space<vmem>>, vector<8x128xf32>,
    } else {
    }
    %c0_142 = arith.constant 0 : index
    %c0_143 = arith.constant 0 : index
    %530 = vector.load %arg13[%c0_142, %c0_143] : memref<8x128xf32, #tpu.memory_space<vmem>>, vector<8x128xf32>
    %531 = arith.truncf %530 : vector<8x128xf32> to vector<8x128xbf16>
    %532 = arith.truncf %515 : vector<8x128xf32> to vector<8x128xbf16>
    %533 = tpu.concatenate %531, %532 in 1 : vector<8x128xbf16>, vector<8x128xbf16> -> vector<8x256xbf16>
    %cst_144 = arith.constant dense<0.000000e+00> : vector<8x512xf32>
    %534 = tpu.matmul %533, %3, %cst_144 {dimension_numbers = #tpu.dot_dimension_numbers<[1], [0], [0], [1], [0, 0, 1, 1], [], []>} : vector<8x256xbf16>, vector<256x512xbf16>, vector<8x512xf32> -> vector<8x512xf32>
    %535 = vector.broadcast %4 : vector<1x512xf32> to vector<8x512xf32>
    %536 = arith.addf %534, %535 : vector<8x512xf32>
    %537 = vector.extract_strided_slice %536 {offsets = [0, 0], sizes = [8, 128], strides = [1, 1]} : vector<8x512xf32> to vector<8x128xf32>
    %538 = arith.negf %537 : vector<8x128xf32>
    %539 = math.exp %538 : vector<8x128xf32>
    %cst_145 = arith.constant 1.000000e+00 : f32
    %540 = vector.broadcast %cst_145 : f32 to vector<8x128xf32>
    %541 = arith.addf %540, %539 : vector<8x128xf32>
    %542 = arith.divf %540, %541 : vector<8x128xf32>
    %543 = vector.extract_strided_slice %536 {offsets = [0, 128], sizes = [8, 128], strides = [1, 1]} : vector<8x512xf32> to vector<8x128xf32>
    %544 = arith.negf %543 : vector<8x128xf32>
    %545 = math.exp %544 : vector<8x128xf32>
    %cst_146 = arith.constant 1.000000e+00 : f32
    %546 = vector.broadcast %cst_146 : f32 to vector<8x128xf32>
    %547 = arith.addf %546, %545 : vector<8x128xf32>
    %548 = arith.divf %546, %547 : vector<8x128xf32>
    %549 = vector.extract_strided_slice %536 {offsets = [0, 256], sizes = [8, 128], strides = [1, 1]} : vector<8x512xf32> to vector<8x128xf32>
    %550 = vector.extract_strided_slice %536 {offsets = [0, 384], sizes = [8, 128], strides = [1, 1]} : vector<8x512xf32> to vector<8x128xf32>
    %551 = arith.mulf %542, %550 : vector<8x128xf32>
    %552 = arith.addf %549, %551 : vector<8x128xf32>
    %553 = math.tanh %552 : vector<8x128xf32>
    %cst_147 = arith.constant 1.000000e+00 : f32
    %554 = vector.broadcast %cst_147 : f32 to vector<8x128xf32>
    %555 = arith.subf %554, %548 : vector<8x128xf32>
    %556 = arith.mulf %555, %553 : vector<8x128xf32>
    %557 = arith.mulf %548, %515 : vector<8x128xf32>
    %558 = arith.addf %556, %557 : vector<8x128xf32>
    %559 = arith.truncf %558 : vector<8x128xf32> to vector<8x128xbf16>
    %cst_148 = arith.constant dense<0.000000e+00> : vector<8x128xf32>
    %560 = tpu.matmul %559, %5, %cst_148 {dimension_numbers = #tpu.dot_dimension_numbers<[1], [0], [0], [1], [0, 0, 1, 1], [], []>} : vector<8x128xbf16>, vector<128x128xbf16>, vector<8x128xf32> -> vector<8x128xf32>
    %561 = vector.broadcast %6 : vector<1x128xf32> to vector<8x128xf32>
    %562 = arith.addf %560, %561 : vector<8x128xf32>
    %c7 = arith.constant 7 : index
    %c0_149 = arith.constant 0 : index
    %c0_150 = arith.constant 0 : index
    %563 = vector.load %arg12[%c7, %c0_149, %c0_150] : memref<8x8x128xf32, #tpu.memory_space<vmem>>, vector<1x8x128xf32>
    %564 = vector.shape_cast %563 : vector<1x8x128xf32> to vector<8x128xf32>
    %565 = vector.shape_cast %562 : vector<8x128xf32> to vector<1x8x128xf32>
    tpu.vector_store %arg12[%c7, %c0_149, %c0_150], %565 {strides = array<i32>} : memref<8x8x128xf32, #tpu.memory_space<vmem>>, vector<1x8x128xf32>,
    %c7_151 = arith.constant 7 : index
    %566 = memref.load %arg0[%c7_151] : memref<8xi32, #tpu.memory_space<smem>>
    %c1_i32_152 = arith.constant 1 : i32
    %567 = arith.cmpi eq, %566, %c1_i32_152 : i32
    %568 = arith.extui %567 : i1 to i32
    %c0_i32_153 = arith.constant 0 : i32
    %569 = arith.cmpi ne, %568, %c0_i32_153 : i32
    scf.if %569 {
      %c56 = arith.constant 56 : index
      %c0_156 = arith.constant 0 : index
      %573 = vector.load %arg2[%c56, %c0_156] : memref<64x128xbf16, #tpu.memory_space<vmem>>, vector<8x128xbf16>
      %574 = arith.extf %573 : vector<8x128xbf16> to vector<8x128xf32>
      %c0_157 = arith.constant 0 : index
      %c0_158 = arith.constant 0 : index
      %575 = vector.load %arg13[%c0_157, %c0_158] : memref<8x128xf32, #tpu.memory_space<vmem>>, vector<8x128xf32>
      tpu.vector_store %arg13[%c0_157, %c0_158], %574 {strides = array<i32>} : memref<8x128xf32, #tpu.memory_space<vmem>>, vector<8x128xf32>,
    } else {
    }
    %c0_i32_154 = arith.constant 0 : i32
    %570 = arith.cmpi eq, %566, %c0_i32_154 : i32
    %571 = arith.extui %570 : i1 to i32
    %c0_i32_155 = arith.constant 0 : i32
    %572 = arith.cmpi ne, %571, %c0_i32_155 : i32
    scf.if %572 {
      %cst_156 = arith.constant -1.000000e+30 : f32
      %573 = vector.broadcast %cst_156 : f32 to vector<8x128xf32>
      %574 = arith.select %268, %562, %573 : vector<8x128xi1>, vector<8x128xf32>
      %cst_157 = arith.constant dense<0xFF800000> : vector<8xf32>
      %575 = vector.multi_reduction <maximumf>, %574, %cst_157 [1] : vector<8x128xf32> to vector<8xf32>
      %576 = vector.shape_cast %575 : vector<8xf32> to vector<8x1xf32>
      %577 = vector.broadcast %576 : vector<8x1xf32> to vector<8x128xf32>
      %578 = arith.cmpf oeq, %574, %577 : vector<8x128xf32>
      %c128_i32 = arith.constant 128 : i32
      %579 = vector.broadcast %c128_i32 : i32 to vector<8x128xi32>
      %580 = arith.select %578, %266, %579 : vector<8x128xi1>, vector<8x128xi32>
      %cst_158 = arith.constant dense<2147483647> : vector<8xi32>
      %581 = vector.multi_reduction <minsi>, %580, %cst_158 [1] : vector<8x128xi32> to vector<8xi32>
      %582 = vector.shape_cast %581 : vector<8xi32> to vector<8x1xi32>
      %583 = vector.broadcast %582 : vector<8x1xi32> to vector<8x128xi32>
      %584 = arith.cmpi eq, %266, %583 : vector<8x128xi32>
      %585 = arith.extui %584 : vector<8x128xi1> to vector<8x128xi32>
      %586 = arith.sitofp %585 : vector<8x128xi32> to vector<8x128xf32>
      %587 = arith.truncf %586 : vector<8x128xf32> to vector<8x128xbf16>
      %cst_159 = arith.constant dense<0.000000e+00> : vector<8x128xf32>
      %588 = tpu.matmul %587, %2, %cst_159 {dimension_numbers = #tpu.dot_dimension_numbers<[1], [0], [0], [1], [0, 0, 1, 1], [], []>} : vector<8x128xbf16>, vector<128x128xbf16>, vector<8x128xf32> -> vector<8x128xf32>
      %c0_160 = arith.constant 0 : index
      %c0_161 = arith.constant 0 : index
      %589 = vector.load %arg13[%c0_160, %c0_161] : memref<8x128xf32, #tpu.memory_space<vmem>>, vector<8x128xf32>
      tpu.vector_store %arg13[%c0_160, %c0_161], %588 {strides = array<i32>} : memref<8x128xf32, #tpu.memory_space<vmem>>, vector<8x128xf32>,
    } else {
    }
    return
  }
}

</mosaic_0001>

<llo_original>
// kernel: tpu_custom_call.1
$region0: #{tpu_custom_call.1}
  #allocation0 [shape = 'u32[]', space=smem, size = 0x4, offset = 0x4, fixed_abs, tag = 'smem constant byte address 0x4 - core index']
  #allocation1 [shape = 'u32[144,128]{1,0:T(1,128)}', space=vmem, size = 0x12000, scoped, tag = 'internal scratch']
  #allocation2 [shape = 'f32[8,128]{1,0:T(8,128)}', space=vmem, size = 0x1000, scoped, tag = 'scratch operand']
  %s0 = inlined_call_operand.hbm [shape: s32[8], index: 0, kind: input, shape index: {}]
  %s1 = inlined_call_operand.hbm [shape: bf16[64,128], index: 1, kind: input, shape index: {}]
  %s2 = inlined_call_operand.hbm [shape: bf16[64,128], index: 2, kind: input, shape index: {}]
  %s3 = inlined_call_operand.hbm [shape: bf16[128,384], index: 3, kind: input, shape index: {}]
  %s4 = inlined_call_operand.hbm [shape: bf16[128,384], index: 4, kind: input, shape index: {}]
  %s5 = inlined_call_operand.vmem [shape: f32[1,384], index: 5, kind: input, shape index: {}]
  %s6 = inlined_call_operand.vmem [shape: f32[1,384], index: 6, kind: input, shape index: {}]
  %s7 = inlined_call_operand.hbm [shape: bf16[128,128], index: 7, kind: input, shape index: {}]
  %s8 = inlined_call_operand.hbm [shape: bf16[256,512], index: 8, kind: input, shape index: {}]
  %s9 = inlined_call_operand.vmem [shape: f32[1,512], index: 9, kind: input, shape index: {}]
  %s10 = inlined_call_operand.hbm [shape: bf16[128,128], index: 10, kind: input, shape index: {}]
  %s11 = inlined_call_operand.vmem [shape: f32[1,128], index: 11, kind: input, shape index: {}]
  %s12 = inlined_call_operand.hbm [shape: f32[8,8,128], index: 12, kind: output, shape index: {}]
  %s13 = sld [smem:[#allocation0]]
  $region146: #{tpu_custom_call.1} parent=0
    _
  %s15 = ssub.s32 1, %s13
  %s16 = scalar_select 0, %s15, %s13
  $region1: #{tpu_custom_call.1} parent=0
    #allocation3 [shape = 'u8[512]{0}', space=smem, size = 0x200, scoped, tag = 'input window, operand 0, single buffered']
    #allocation4 [shape = 's32[1]{0}', space=sflag, size = 0x4, scoped, tag = 'scoped memory for tpu_custom_call.1']
    #allocation5 [shape = 's32[1]{0}', space=sflag, size = 0x4, scoped, tag = 'scoped memory for tpu_custom_call.1']
    #allocation6 [shape = 's32[1]{0}', space=sflag, size = 0x4, scoped, tag = 'scoped memory for tpu_custom_call.1']
    #allocation7 [shape = 'u8[16384]{0}', space=vmem, size = 0x4000, scoped, tag = 'input window, operand 1, single buffered']
    #allocation8 [shape = 'u8[16384]{0}', space=vmem, size = 0x4000, scoped, tag = 'input window, operand 2, single buffered']
    #allocation9 [shape = 's32[1]{0}', space=sflag, size = 0x4, scoped, tag = 'scoped memory for tpu_custom_call.1']
    #allocation10 [shape = 'u8[98304]{0}', space=vmem, size = 0x18000, scoped, tag = 'input window, operand 3, single buffered']
    #allocation11 [shape = 'u8[98304]{0}', space=vmem, size = 0x18000, scoped, tag = 'input window, operand 4, single buffered']
    #allocation12 [shape = 's32[1]{0}', space=sflag, size = 0x4, scoped, tag = 'scoped memory for tpu_custom_call.1']
    #allocation13 [shape = 'u8[32768]{0}', space=vmem, size = 0x8000, scoped, tag = 'input window, operand 7, single buffered']
    #allocation14 [shape = 'u8[262144]{0}', space=vmem, size = 0x40000, scoped, tag = 'input window, operand 8, single buffered']
    #allocation15 [shape = 's32[1]{0}', space=sflag, size = 0x4, scoped, tag = 'scoped memory for tpu_custom_call.1']
    #allocation16 [shape = 'u8[32768]{0}', space=vmem, size = 0x8000, scoped, tag = 'input window, operand 10, single buffered']
    #allocation17 [shape = 'u8[32768]{0}', space=vmem, size = 0x8000, scoped, tag = 'output window, operand 0, single buffered']
    %17 = vsyncpa [#allocation6], 0
    %18 = vsyncpa [#allocation4], 0
    %19 = vsyncpa [#allocation9], 0
    %20 = vsyncpa [#allocation12], 0
    %21 = vsyncpa [#allocation15], 0
    %22 = vsyncpa [#allocation5], 0
    // Predicated region
    $region2: #{tpu_custom_call.1} parent=1 // pred_check
      _
    $region3: #{tpu_custom_call.1} parent=1 // pred_check_branch
      %24 = sbr.rel (0) target = $region5
    $region4: #{tpu_custom_call.1} parent=1 // pred_region
      %s26 = ssub.s32 16, 16
      %27 = vsyncadd [#allocation6], %s26
      %30 = dma.hbm_to_smem %s0, 16, [#allocation3], [#allocation6]
    $region5: #{tpu_custom_call.1} parent=1 // pred_fallthru
      _
    // Predicated region
    $region6: #{tpu_custom_call.1} parent=1 // pred_check
      _
    $region7: #{tpu_custom_call.1} parent=1 // pred_check_branch
      %32 = sbr.rel (0) target = $region9
    $region8: #{tpu_custom_call.1} parent=1 // pred_region
      %s34 = ssub.s32 512, 512
      %35 = vsyncadd [#allocation4], %s34
      %s36 = sshll.u32 [#allocation7], 4
      %s37 = int_to_ptr.vmem [resolvable:$true] %s36
      %42 = dma.hbm_to_vmem [thread:$0]  %s1, 512, %s37, [#allocation4], 64, 64, 4
    $region9: #{tpu_custom_call.1} parent=1 // pred_fallthru
      _
    // Predicated region
    $region10: #{tpu_custom_call.1} parent=1 // pred_check
      _
    $region11: #{tpu_custom_call.1} parent=1 // pred_check_branch
      %44 = sbr.rel (0) target = $region13
    $region12: #{tpu_custom_call.1} parent=1 // pred_region
      %s46 = ssub.s32 512, 512
      %47 = vsyncadd [#allocation9], %s46
      %s48 = sshll.u32 [#allocation8], 4
      %s49 = int_to_ptr.vmem [resolvable:$true] %s48
      %54 = dma.hbm_to_vmem [thread:$0]  %s2, 512, %s49, [#allocation9], 64, 64, 4
    $region13: #{tpu_custom_call.1} parent=1 // pred_fallthru
      _
    // Predicated region
    $region14: #{tpu_custom_call.1} parent=1 // pred_check
      _
    $region15: #{tpu_custom_call.1} parent=1 // pred_check_branch
      %56 = sbr.rel (0) target = $region17
    $region16: #{tpu_custom_call.1} parent=1 // pred_region
      %s58 = ssub.s32 3072, 3072
      %59 = vsyncadd [#allocation9], %s58
      %s60 = sshll.u32 [#allocation10], 4
      %s61 = int_to_ptr.vmem [resolvable:$true] %s60
      %66 = dma.hbm_to_vmem [thread:$0]  %s3, 3072, %s61, [#allocation9], 192, 192, 12
    $region17: #{tpu_custom_call.1} parent=1 // pred_fallthru
      _
    // Predicated region
    $region18: #{tpu_custom_call.1} parent=1 // pred_check
      _
    $region19: #{tpu_custom_call.1} parent=1 // pred_check_branch
      %68 = sbr.rel (0) target = $region21
    $region20: #{tpu_custom_call.1} parent=1 // pred_region
      %s70 = ssub.s32 3072, 3072
      %71 = vsyncadd [#allocation12], %s70
      %s72 = sshll.u32 [#allocation11], 4
      %s73 = int_to_ptr.vmem [resolvable:$true] %s72
      %78 = dma.hbm_to_vmem [thread:$0]  %s4, 3072, %s73, [#allocation12], 192, 192, 12
    $region21: #{tpu_custom_call.1} parent=1 // pred_fallthru
      _
    // Predicated region
    $region22: #{tpu_custom_call.1} parent=1 // pred_check
      _
    $region23: #{tpu_custom_call.1} parent=1 // pred_check_branch
      %80 = sbr.rel (0) target = $region25
    $region24: #{tpu_custom_call.1} parent=1 // pred_region
      _
    $region25: #{tpu_custom_call.1} parent=1 // pred_fallthru
      _
    // Predicated region
    $region26: #{tpu_custom_call.1} parent=1 // pred_check
      _
    $region27: #{tpu_custom_call.1} parent=1 // pred_check_branch
      %82 = sbr.rel (0) target = $region29
    $region28: #{tpu_custom_call.1} parent=1 // pred_region
      _
    $region29: #{tpu_custom_call.1} parent=1 // pred_fallthru
      _
    // Predicated region
    $region30: #{tpu_custom_call.1} parent=1 // pred_check
      _
    $region31: #{tpu_custom_call.1} parent=1 // pred_check_branch
      %84 = sbr.rel (0) target = $region33
    $region32: #{tpu_custom_call.1} parent=1 // pred_region
      %s86 = ssub.s32 1024, 1024
      %87 = vsyncadd [#allocation12], %s86
      %s88 = sshll.u32 [#allocation13], 4
      %s89 = int_to_ptr.vmem [resolvable:$true] %s88
      %94 = dma.hbm_to_vmem [thread:$0]  %s7, 1024, %s89, [#allocation12], 64, 64, 4
    $region33: #{tpu_custom_call.1} parent=1 // pred_fallthru
      _
    // Predicated region
    $region34: #{tpu_custom_call.1} parent=1 // pred_check
      _
    $region35: #{tpu_custom_call.1} parent=1 // pred_check_branch
      %96 = sbr.rel (0) target = $region37
    $region36: #{tpu_custom_call.1} parent=1 // pred_region
      %s98 = ssub.s32 8192, 8192
      %99 = vsyncadd [#allocation15], %s98
      %s100 = sshll.u32 [#allocation14], 4
      %s101 = int_to_ptr.vmem [resolvable:$true] %s100
      %106 = dma.hbm_to_vmem [thread:$0]  %s8, 8192, %s101, [#allocation15], 256, 256, 16
    $region37: #{tpu_custom_call.1} parent=1 // pred_fallthru
      _
    // Predicated region
    $region38: #{tpu_custom_call.1} parent=1 // pred_check
      _
    $region39: #{tpu_custom_call.1} parent=1 // pred_check_branch
      %108 = sbr.rel (0) target = $region41
    $region40: #{tpu_custom_call.1} parent=1 // pred_region
      _
    $region41: #{tpu_custom_call.1} parent=1 // pred_fallthru
      _
    // Predicated region
    $region42: #{tpu_custom_call.1} parent=1 // pred_check
      _
    $region43: #{tpu_custom_call.1} parent=1 // pred_check_branch
      %110 = sbr.rel (0) target = $region45
    $region44: #{tpu_custom_call.1} parent=1 // pred_region
      %s112 = ssub.s32 1024, 1024
      %113 = vsyncadd [#allocation15], %s112
      %s114 = sshll.u32 [#allocation16], 4
      %s115 = int_to_ptr.vmem [resolvable:$true] %s114
      %120 = dma.hbm_to_vmem [thread:$0]  %s10, 1024, %s115, [#allocation15], 64, 64, 4
    $region45: #{tpu_custom_call.1} parent=1 // pred_fallthru
      _
    // Predicated region
    $region46: #{tpu_custom_call.1} parent=1 // pred_check
      _
    $region47: #{tpu_custom_call.1} parent=1 // pred_check_branch
      %122 = sbr.rel (0) target = $region49
    $region48: #{tpu_custom_call.1} parent=1 // pred_region
      _
    $region49: #{tpu_custom_call.1} parent=1 // pred_fallthru
      _
    // Predicated region
    $region50: #{tpu_custom_call.1} parent=1 // pred_check
      _
    $region51: #{tpu_custom_call.1} parent=1 // pred_check_branch
      %124 = sbr.rel (0) target = $region53
    $region52: #{tpu_custom_call.1} parent=1 // pred_region
      %125 = dma.done [#allocation6], 16
    $region53: #{tpu_custom_call.1} parent=1 // pred_fallthru
      _
    // Predicated region
    $region54: #{tpu_custom_call.1} parent=1 // pred_check
      _
    $region55: #{tpu_custom_call.1} parent=1 // pred_check_branch
      %127 = sbr.rel (0) target = $region57
    $region56: #{tpu_custom_call.1} parent=1 // pred_region
      %128 = dma.done [#allocation4], 512
    $region57: #{tpu_custom_call.1} parent=1 // pred_fallthru
      _
    // Predicated region
    $region58: #{tpu_custom_call.1} parent=1 // pred_check
      _
    $region59: #{tpu_custom_call.1} parent=1 // pred_check_branch
      %130 = sbr.rel (0) target = $region61
    $region60: #{tpu_custom_call.1} parent=1 // pred_region
      %131 = dma.done [#allocation9], 512
    $region61: #{tpu_custom_call.1} parent=1 // pred_fallthru
      _
    // Predicated region
    $region62: #{tpu_custom_call.1} parent=1 // pred_check
      _
    $region63: #{tpu_custom_call.1} parent=1 // pred_check_branch
      %133 = sbr.rel (0) target = $region65
    $region64: #{tpu_custom_call.1} parent=1 // pred_region
      %134 = dma.done [#allocation9], 3072
    $region65: #{tpu_custom_call.1} parent=1 // pred_fallthru
      _
    // Predicated region
    $region66: #{tpu_custom_call.1} parent=1 // pred_check
      _
    $region67: #{tpu_custom_call.1} parent=1 // pred_check_branch
      %136 = sbr.rel (0) target = $region69
    $region68: #{tpu_custom_call.1} parent=1 // pred_region
      %137 = dma.done [#allocation12], 3072
    $region69: #{tpu_custom_call.1} parent=1 // pred_fallthru
      _
    // Predicated region
    $region70: #{tpu_custom_call.1} parent=1 // pred_check
      _
    $region71: #{tpu_custom_call.1} parent=1 // pred_check_branch
      %139 = sbr.rel (0) target = $region73
    $region72: #{tpu_custom_call.1} parent=1 // pred_region
      %140 = dma.done [#allocation12], 1024
    $region73: #{tpu_custom_call.1} parent=1 // pred_fallthru
      _
    // Predicated region
    $region74: #{tpu_custom_call.1} parent=1 // pred_check
      _
    $region75: #{tpu_custom_call.1} parent=1 // pred_check_branch
      %142 = sbr.rel (0) target = $region77
    $region76: #{tpu_custom_call.1} parent=1 // pred_region
      %143 = dma.done [#allocation15], 8192
    $region77: #{tpu_custom_call.1} parent=1 // pred_fallthru
      _
    // Predicated region
    $region78: #{tpu_custom_call.1} parent=1 // pred_check
      _
    $region79: #{tpu_custom_call.1} parent=1 // pred_check_branch
      %145 = sbr.rel (0) target = $region81
    $region80: #{tpu_custom_call.1} parent=1 // pred_region
      %146 = dma.done [#allocation15], 1024
    $region81: #{tpu_custom_call.1} parent=1 // pred_fallthru
      _
    %147 = sfence
    %v149 = vld [vmem:[#allocation11] sm:$0xff]
    %v150 = vld [vmem:[#allocation11 + $0x8] sm:$0xf]
    %v151 = vld [vmem:[#allocation11 + $0xc] sm:$0xff]
    %v152 = vld [vmem:[#allocation11 + $0x14] sm:$0xf]
    %v153 = vld [vmem:[#allocation11 + $0x18] sm:$0xff]
    %v154 = vld [vmem:[#allocation11 + $0x20] sm:$0xf]
    %v155 = vld [vmem:[#allocation11 + $0x24] sm:$0xff]
    %v156 = vld [vmem:[#allocation11 + $0x2c] sm:$0xf]
    %v157 = vld [vmem:[#allocation11 + $0x30] sm:$0xff]
    %v158 = vld [vmem:[#allocation11 + $0x38] sm:$0xf]
    %v159 = vld [vmem:[#allocation11 + $0x3c] sm:$0xff]
    %v160 = vld [vmem:[#allocation11 + $0x44] sm:$0xf]
    %v161 = vld [vmem:[#allocation11 + $0x48] sm:$0xff]
    %v162 = vld [vmem:[#allocation11 + $0x50] sm:$0xf]
    %v163 = vld [vmem:[#allocation11 + $0x54] sm:$0xff]
    %v164 = vld [vmem:[#allocation11 + $0x5c] sm:$0xf]
    %v165 = vld [vmem:[#allocation11 + $0x60] sm:$0xff]
    %v166 = vld [vmem:[#allocation11 + $0x68] sm:$0xf]
    %v167 = vld [vmem:[#allocation11 + $0x6c] sm:$0xff]
    %v168 = vld [vmem:[#allocation11 + $0x74] sm:$0xf]
    %v169 = vld [vmem:[#allocation11 + $0x78] sm:$0xff]
    %v170 = vld [vmem:[#allocation11 + $0x80] sm:$0xf]
    %v171 = vld [vmem:[#allocation11 + $0x84] sm:$0xff]
    %v172 = vld [vmem:[#allocation11 + $0x8c] sm:$0xf]
    %v173 = vld [vmem:[#allocation11 + $0x90] sm:$0xff]
    %v174 = vld [vmem:[#allocation11 + $0x98] sm:$0xf]
    %v175 = vld [vmem:[#allocation11 + $0x9c] sm:$0xff]
    %v176 = vld [vmem:[#allocation11 + $0xa4] sm:$0xf]
    %v177 = vld [vmem:[#allocation11 + $0xa8] sm:$0xff]
    %v178 = vld [vmem:[#allocation11 + $0xb0] sm:$0xf]
    %v179 = vld [vmem:[#allocation11 + $0xb4] sm:$0xff]
    %v180 = vld [vmem:[#allocation11 + $0xbc] sm:$0xf]
    %v181 = vld [vmem:[%s6] sm:$0x7]
    %v182 = vld [vmem:[#allocation13] sm:$0xf]
    %v183 = vld [vmem:[#allocation13 + $0x4] sm:$0xf]
    %v184 = vld [vmem:[#allocation13 + $0x8] sm:$0xf]
    %v185 = vld [vmem:[#allocation13 + $0xc] sm:$0xf]
    %v186 = vld [vmem:[#allocation13 + $0x10] sm:$0xf]
    %v187 = vld [vmem:[#allocation13 + $0x14] sm:$0xf]
    %v188 = vld [vmem:[#allocation13 + $0x18] sm:$0xf]
    %v189 = vld [vmem:[#allocation13 + $0x1c] sm:$0xf]
    %v190 = vld [vmem:[#allocation13 + $0x20] sm:$0xf]
    %v191 = vld [vmem:[#allocation13 + $0x24] sm:$0xf]
    %v192 = vld [vmem:[#allocation13 + $0x28] sm:$0xf]
    %v193 = vld [vmem:[#allocation13 + $0x2c] sm:$0xf]
    %v194 = vld [vmem:[#allocation13 + $0x30] sm:$0xf]
    %v195 = vld [vmem:[#allocation13 + $0x34] sm:$0xf]
    %v196 = vld [vmem:[#allocation13 + $0x38] sm:$0xf]
    %v197 = vld [vmem:[#allocation13 + $0x3c] sm:$0xf]
    %v198 = vld [vmem:[#allocation14] sm:$0xff]
    %v199 = vld [vmem:[#allocation14 + $0x8] sm:$0xff]
    %v200 = vld [vmem:[#allocation14 + $0x10] sm:$0xff]
    %v201 = vld [vmem:[#allocation14 + $0x18] sm:$0xff]
    %v202 = vld [vmem:[#allocation14 + $0x20] sm:$0xff]
    %v203 = vld [vmem:[#allocation14 + $0x28] sm:$0xff]
    %v204 = vld [vmem:[#allocation14 + $0x30] sm:$0xff]
    %v205 = vld [vmem:[#allocation14 + $0x38] sm:$0xff]
    %v206 = vld [vmem:[#allocation14 + $0x40] sm:$0xff]
    %v207 = vld [vmem:[#allocation14 + $0x48] sm:$0xff]
    %v208 = vld [vmem:[#allocation14 + $0x50] sm:$0xff]
    %v209 = vld [vmem:[#allocation14 + $0x58] sm:$0xff]
    %v210 = vld [vmem:[#allocation14 + $0x60] sm:$0xff]
    %v211 = vld [vmem:[#allocation14 + $0x68] sm:$0xff]
    %v212 = vld [vmem:[#allocation14 + $0x70] sm:$0xff]
    %v213 = vld [vmem:[#allocation14 + $0x78] sm:$0xff]
    %v214 = vld [vmem:[#allocation14 + $0x80] sm:$0xff]
    %v215 = vld [vmem:[#allocation14 + $0x88] sm:$0xff]
    %v216 = vld [vmem:[#allocation14 + $0x90] sm:$0xff]
    %v217 = vld [vmem:[#allocation14 + $0x98] sm:$0xff]
    %v218 = vld [vmem:[#allocation14 + $0xa0] sm:$0xff]
    %v219 = vld [vmem:[#allocation14 + $0xa8] sm:$0xff]
    %v220 = vld [vmem:[#allocation14 + $0xb0] sm:$0xff]
    %v221 = vld [vmem:[#allocation14 + $0xb8] sm:$0xff]
    %v222 = vld [vmem:[#allocation14 + $0xc0] sm:$0xff]
    %v223 = vld [vmem:[#allocation14 + $0xc8] sm:$0xff]
    %v224 = vld [vmem:[#allocation14 + $0xd0] sm:$0xff]
    %v225 = vld [vmem:[#allocation14 + $0xd8] sm:$0xff]
    %v226 = vld [vmem:[#allocation14 + $0xe0] sm:$0xff]
    %v227 = vld [vmem:[#allocation14 + $0xe8] sm:$0xff]
    %v228 = vld [vmem:[#allocation14 + $0xf0] sm:$0xff]
    %v229 = vld [vmem:[#allocation14 + $0xf8] sm:$0xff]
    %v230 = vld [vmem:[#allocation14 + $0x100] sm:$0xff]
    %v231 = vld [vmem:[#allocation14 + $0x108] sm:$0xff]
    %v232 = vld [vmem:[#allocation14 + $0x110] sm:$0xff]
    %v233 = vld [vmem:[#allocation14 + $0x118] sm:$0xff]
    %v234 = vld [vmem:[#allocation14 + $0x120] sm:$0xff]
    %v235 = vld [vmem:[#allocation14 + $0x128] sm:$0xff]
    %v236 = vld [vmem:[#allocation14 + $0x130] sm:$0xff]
    %v237 = vld [vmem:[#allocation14 + $0x138] sm:$0xff]
    %v238 = vld [vmem:[#allocation14 + $0x140] sm:$0xff]
    %v239 = vld [vmem:[#allocation14 + $0x148] sm:$0xff]
    %v240 = vld [vmem:[#allocation14 + $0x150] sm:$0xff]
    %v241 = vld [vmem:[#allocation14 + $0x158] sm:$0xff]
    %v242 = vld [vmem:[#allocation14 + $0x160] sm:$0xff]
    %v243 = vld [vmem:[#allocation14 + $0x168] sm:$0xff]
    %v244 = vld [vmem:[#allocation14 + $0x170] sm:$0xff]
    %v245 = vld [vmem:[#allocation14 + $0x178] sm:$0xff]
    %v246 = vld [vmem:[#allocation14 + $0x180] sm:$0xff]
    %v247 = vld [vmem:[#allocation14 + $0x188] sm:$0xff]
    %v248 = vld [vmem:[#allocation14 + $0x190] sm:$0xff]
    %v249 = vld [vmem:[#allocation14 + $0x198] sm:$0xff]
    %v250 = vld [vmem:[#allocation14 + $0x1a0] sm:$0xff]
    %v251 = vld [vmem:[#allocation14 + $0x1a8] sm:$0xff]
    %v252 = vld [vmem:[#allocation14 + $0x1b0] sm:$0xff]
    %v253 = vld [vmem:[#allocation14 + $0x1b8] sm:$0xff]
    %v254 = vld [vmem:[#allocation14 + $0x1c0] sm:$0xff]
    %v255 = vld [vmem:[#allocation14 + $0x1c8] sm:$0xff]
    %v256 = vld [vmem:[#allocation14 + $0x1d0] sm:$0xff]
    %v257 = vld [vmem:[#allocation14 + $0x1d8] sm:$0xff]
    %v258 = vld [vmem:[#allocation14 + $0x1e0] sm:$0xff]
    %v259 = vld [vmem:[#allocation14 + $0x1e8] sm:$0xff]
    %v260 = vld [vmem:[#allocation14 + $0x1f0] sm:$0xff]
    %v261 = vld [vmem:[#allocation14 + $0x1f8] sm:$0xff]
    %v262 = vld [vmem:[%s9] sm:$0xf]
    %v263 = vld [vmem:[#allocation16] sm:$0xf]
    %v264 = vld [vmem:[#allocation16 + $0x4] sm:$0xf]
    %v265 = vld [vmem:[#allocation16 + $0x8] sm:$0xf]
    %v266 = vld [vmem:[#allocation16 + $0xc] sm:$0xf]
    %v267 = vld [vmem:[#allocation16 + $0x10] sm:$0xf]
    %v268 = vld [vmem:[#allocation16 + $0x14] sm:$0xf]
    %v269 = vld [vmem:[#allocation16 + $0x18] sm:$0xf]
    %v270 = vld [vmem:[#allocation16 + $0x1c] sm:$0xf]
    %v271 = vld [vmem:[#allocation16 + $0x20] sm:$0xf]
    %v272 = vld [vmem:[#allocation16 + $0x24] sm:$0xf]
    %v273 = vld [vmem:[#allocation16 + $0x28] sm:$0xf]
    %v274 = vld [vmem:[#allocation16 + $0x2c] sm:$0xf]
    %v275 = vld [vmem:[#allocation16 + $0x30] sm:$0xf]
    %v276 = vld [vmem:[#allocation16 + $0x34] sm:$0xf]
    %v277 = vld [vmem:[#allocation16 + $0x38] sm:$0xf]
    %v278 = vld [vmem:[#allocation16 + $0x3c] sm:$0xf]
    %v279 = vld [vmem:[%s11] sm:$0x1]
    %v280 = vld [vmem:[#allocation7] sm:$0xf]
    %v281 = vld [vmem:[#allocation7 + $0x4] sm:$0xf]
    %v282 = vld [vmem:[#allocation7 + $0x8] sm:$0xf]
    %v283 = vld [vmem:[#allocation7 + $0xc] sm:$0xf]
    %v284 = vld [vmem:[#allocation7 + $0x10] sm:$0xf]
    %v285 = vld [vmem:[#allocation7 + $0x14] sm:$0xf]
    %v286 = vld [vmem:[#allocation7 + $0x18] sm:$0xf]
    %v287 = vld [vmem:[#allocation7 + $0x1c] sm:$0xf]
    %v288 = vld [vmem:[#allocation10] sm:$0xff]
    %v289 = vld [vmem:[#allocation10 + $0x8] sm:$0xf]
    %v290 = vld [vmem:[#allocation10 + $0xc] sm:$0xff]
    %v291 = vld [vmem:[#allocation10 + $0x14] sm:$0xf]
    %v292 = vld [vmem:[#allocation10 + $0x18] sm:$0xff]
    %v293 = vld [vmem:[#allocation10 + $0x20] sm:$0xf]
    %v294 = vld [vmem:[#allocation10 + $0x24] sm:$0xff]
    %v295 = vld [vmem:[#allocation10 + $0x2c] sm:$0xf]
    %v296 = vld [vmem:[#allocation10 + $0x30] sm:$0xff]
    %v297 = vld [vmem:[#allocation10 + $0x38] sm:$0xf]
    %v298 = vld [vmem:[#allocation10 + $0x3c] sm:$0xff]
    %v299 = vld [vmem:[#allocation10 + $0x44] sm:$0xf]
    %v300 = vld [vmem:[#allocation10 + $0x48] sm:$0xff]
    %v301 = vld [vmem:[#allocation10 + $0x50] sm:$0xf]
    %v302 = vld [vmem:[#allocation10 + $0x54] sm:$0xff]
    %v303 = vld [vmem:[#allocation10 + $0x5c] sm:$0xf]
    %v304 = vld [vmem:[#allocation10 + $0x60] sm:$0xff]
    %v305 = vld [vmem:[#allocation10 + $0x68] sm:$0xf]
    %v306 = vld [vmem:[#allocation10 + $0x6c] sm:$0xff]
    %v307 = vld [vmem:[#allocation10 + $0x74] sm:$0xf]
    %v308 = vld [vmem:[#allocation10 + $0x78] sm:$0xff]
    %v309 = vld [vmem:[#allocation10 + $0x80] sm:$0xf]
    %v310 = vld [vmem:[#allocation10 + $0x84] sm:$0xff]
    %v311 = vld [vmem:[#allocation10 + $0x8c] sm:$0xf]
    %v312 = vld [vmem:[#allocation10 + $0x90] sm:$0xff]
    %v313 = vld [vmem:[#allocation10 + $0x98] sm:$0xf]
    %v314 = vld [vmem:[#allocation10 + $0x9c] sm:$0xff]
    %v315 = vld [vmem:[#allocation10 + $0xa4] sm:$0xf]
    %v316 = vld [vmem:[#allocation10 + $0xa8] sm:$0xff]
    %v317 = vld [vmem:[#allocation10 + $0xb0] sm:$0xf]
    %v318 = vld [vmem:[#allocation10 + $0xb4] sm:$0xff]
    %v319 = vld [vmem:[#allocation10 + $0xbc] sm:$0xf]
    %v320 = vld [vmem:[%s5] sm:$0x7]
    %v322 = vlaneseq
    %v323 = vshrl.u32 %v322, 7
    %v324 = vsub.s32 0, %v323
    %v325 = vrot.slane %v320, %v324
    %v326 = vlaneseq
    %v327 = vshrl.u32 %v326, 7
    %v328 = vsub.s32 1, %v327
    %v329 = vrot.slane %v320, %v328
    %v330 = vlaneseq
    %v331 = vshrl.u32 %v330, 7
    %v332 = vsub.s32 2, %v331
    %v333 = vrot.slane %v320, %v332
    %v345 = vunpack.c.l.b16 %v280
    %v346 = vunpack.c.l.b16 %v281
    %v347 = vunpack.c.l.b16 %v282
    %v348 = vunpack.c.l.b16 %v283
    %v349 = vunpack.c.l.b16 %v284
    %v350 = vunpack.c.l.b16 %v285
    %v351 = vunpack.c.l.b16 %v286
    %v352 = vunpack.c.l.b16 %v287
    %v353 = vpack.c.b16 %v346, %v345
    %v354 = vpack.c.b16 %v348, %v347
    %v355 = vpack.c.b16 %v350, %v349
    %v356 = vpack.c.b16 %v352, %v351
    %v393 = vunpack.c.l.b16 %v288
    %v394 = vunpack.c.h.b16 %v288
    %v395 = vunpack.c.l.b16 %v289
    %v396 = vunpack.c.l.b16 %v290
    %v397 = vunpack.c.h.b16 %v290
    %v398 = vunpack.c.l.b16 %v291
    %v399 = vunpack.c.l.b16 %v292
    %v400 = vunpack.c.h.b16 %v292
    %v401 = vunpack.c.l.b16 %v293
    %v402 = vunpack.c.l.b16 %v294
    %v403 = vunpack.c.h.b16 %v294
    %v404 = vunpack.c.l.b16 %v295
    %v405 = vunpack.c.l.b16 %v296
    %v406 = vunpack.c.h.b16 %v296
    %v407 = vunpack.c.l.b16 %v297
    %v408 = vunpack.c.l.b16 %v298
    %v409 = vunpack.c.h.b16 %v298
    %v410 = vunpack.c.l.b16 %v299
    %v411 = vunpack.c.l.b16 %v300
    %v412 = vunpack.c.h.b16 %v300
    %v413 = vunpack.c.l.b16 %v301
    %v414 = vunpack.c.l.b16 %v302
    %v415 = vunpack.c.h.b16 %v302
    %v416 = vunpack.c.l.b16 %v303
    %v417 = vunpack.c.l.b16 %v304
    %v418 = vunpack.c.h.b16 %v304
    %v419 = vunpack.c.l.b16 %v305
    %v420 = vunpack.c.l.b16 %v306
    %v421 = vunpack.c.h.b16 %v306
    %v422 = vunpack.c.l.b16 %v307
    %v423 = vunpack.c.l.b16 %v308
    %v424 = vunpack.c.h.b16 %v308
    %v425 = vunpack.c.l.b16 %v309
    %v426 = vunpack.c.l.b16 %v310
    %v427 = vunpack.c.h.b16 %v310
    %v428 = vunpack.c.l.b16 %v311
    %v429 = vunpack.c.l.b16 %v312
    %v430 = vunpack.c.h.b16 %v312
    %v431 = vunpack.c.l.b16 %v313
    %v432 = vunpack.c.l.b16 %v314
    %v433 = vunpack.c.h.b16 %v314
    %v434 = vunpack.c.l.b16 %v315
    %v435 = vunpack.c.l.b16 %v316
    %v436 = vunpack.c.h.b16 %v316
    %v437 = vunpack.c.l.b16 %v317
    %v438 = vunpack.c.l.b16 %v318
    %v439 = vunpack.c.h.b16 %v318
    %v440 = vunpack.c.l.b16 %v319
    %v441 = vpack.c.b16 %v396, %v393
    %v442 = vpack.c.b16 %v397, %v394
    %v443 = vpack.c.b16 %v398, %v395
    %v444 = vpack.c.b16 %v402, %v399
    %v445 = vpack.c.b16 %v403, %v400
    %v446 = vpack.c.b16 %v404, %v401
    %v447 = vpack.c.b16 %v408, %v405
    %v448 = vpack.c.b16 %v409, %v406
    %v449 = vpack.c.b16 %v410, %v407
    %v450 = vpack.c.b16 %v414, %v411
    %v451 = vpack.c.b16 %v415, %v412
    %v452 = vpack.c.b16 %v416, %v413
    %v453 = vpack.c.b16 %v420, %v417
    %v454 = vpack.c.b16 %v421, %v418
    %v455 = vpack.c.b16 %v422, %v419
    %v456 = vpack.c.b16 %v426, %v423
    %v457 = vpack.c.b16 %v427, %v424
    %v458 = vpack.c.b16 %v428, %v425
    %v459 = vpack.c.b16 %v432, %v429
    %v460 = vpack.c.b16 %v433, %v430
    %v461 = vpack.c.b16 %v434, %v431
    %v462 = vpack.c.b16 %v438, %v435
    %v463 = vpack.c.b16 %v439, %v436
    %v464 = vpack.c.b16 %v440, %v437
    %489 = vmatprep.subr.bf16.mxu0 %v463
    %490 = vmatpush1.bf16.msra.mxu0 %v462
    %491 = vmatprep.subr.bf16.mxu0 %v460
    %492 = vmatpush1.bf16.msra.mxu0 %v459
    %493 = vmatprep.subr.bf16.mxu0 %v457
    %494 = vmatpush1.bf16.msra.mxu0 %v456
    %495 = vmatprep.subr.bf16.mxu0 %v454
    %496 = vmatpush1.bf16.msra.mxu0 %v453
    %497 = vmatprep.subr.bf16.mxu0 %v451
    %498 = vmatpush1.bf16.msra.mxu0 %v450
    %499 = vmatprep.subr.bf16.mxu0 %v448
    %500 = vmatpush1.bf16.msra.mxu0 %v447
    %501 = vmatprep.subr.bf16.mxu0 %v445
    %502 = vmatpush1.bf16.msra.mxu0 %v444
    %503 = vmatprep.subr.bf16.mxu0 %v442
    %504 = vmatpush1.bf16.msra.mxu0 %v441
    %505 = vmatprep.subr.bf16.mxu0 0
    %506 = vmatpush2.bf16.msra.mxu0 0
    %507 = vmatprep.subr.bf16.mxu0 0
    %508 = vmatpush2.bf16.msra.mxu0 0
    %509 = vmatprep.subr.bf16.mxu0 0
    %510 = vmatpush2.bf16.msra.mxu0 0
    %511 = vmatprep.subr.bf16.mxu0 0
    %512 = vmatpush2.bf16.msra.mxu0 0
    %513 = vmatprep.subr.bf16.mxu0 0
    %514 = vmatpush2.bf16.msra.mxu0 0
    %515 = vmatprep.subr.bf16.mxu0 0
    %516 = vmatpush2.bf16.msra.mxu0 0
    %517 = vmatprep.subr.bf16.mxu0 0
    %518 = vmatpush2.bf16.msra.mxu0 0
    %519 = vmatprep.subr.bf16.mxu0 0
    %520 = vmatpush2.bf16.msra.mxu0 0
    %521 = vmatprep.mubr.bf16.mxu0 0
    %522 = vmatmul.mubr.bf16.gmra.mxu0 %v353
    %v523 = vpop.f32.mrf.mxu0
    %v524 = vadd.f32 %v325, %v523
    %v525 = vpop.f32.mrf.mxu0
    %v526 = vadd.f32 %v329, %v525
    %v527 = vpop.f32.mrf.mxu0
    %v528 = vadd.f32 %v325, %v527
    %v529 = vpop.f32.mrf.mxu0
    %v530 = vadd.f32 %v329, %v529
    %531 = vmatprep.mubr.bf16.mxu0 0
    %532 = vmatmul.mubr.bf16.gmra.mxu0 %v354
    %v533 = vpop.f32.mrf.mxu0
    %v534 = vadd.f32 %v325, %v533
    %v535 = vpop.f32.mrf.mxu0
    %v536 = vadd.f32 %v329, %v535
    %v537 = vpop.f32.mrf.mxu0
    %v538 = vadd.f32 %v325, %v537
    %v539 = vpop.f32.mrf.mxu0
    %v540 = vadd.f32 %v329, %v539
    %541 = vmatprep.mubr.bf16.mxu0 0
    %542 = vmatmul.mubr.bf16.gmra.mxu0 %v355
    %v543 = vpop.f32.mrf.mxu0
    %v544 = vadd.f32 %v325, %v543
    %v545 = vpop.f32.mrf.mxu0
    %v546 = vadd.f32 %v329, %v545
    %v547 = vpop.f32.mrf.mxu0
    %v548 = vadd.f32 %v325, %v547
    %v549 = vpop.f32.mrf.mxu0
    %v550 = vadd.f32 %v329, %v549
    %551 = vmatprep.mubr.bf16.mxu0 0
    %552 = vmatmul.mubr.bf16.gmra.mxu0 %v356
    %v553 = vpop.f32.mrf.mxu0
    %v554 = vadd.f32 %v325, %v553
    %v555 = vpop.f32.mrf.mxu0
    %v556 = vadd.f32 %v329, %v555
    %v557 = vpop.f32.mrf.mxu0
    %v558 = vadd.f32 %v325, %v557
    %v559 = vpop.f32.mrf.mxu0
    %v560 = vadd.f32 %v329, %v559
    %561 = vdwg.mxu0
    %562 = vmatprep.subr.bf16.mxu0 0
    %563 = vmatpush1.bf16.msra.mxu0 %v464
    %564 = vmatprep.subr.bf16.mxu0 0
    %565 = vmatpush1.bf16.msra.mxu0 %v461
    %566 = vmatprep.subr.bf16.mxu0 0
    %567 = vmatpush1.bf16.msra.mxu0 %v458
    %568 = vmatprep.subr.bf16.mxu0 0
    %569 = vmatpush1.bf16.msra.mxu0 %v455
    %570 = vmatprep.subr.bf16.mxu0 0
    %571 = vmatpush1.bf16.msra.mxu0 %v452
    %572 = vmatprep.subr.bf16.mxu0 0
    %573 = vmatpush1.bf16.msra.mxu0 %v449
    %574 = vmatprep.subr.bf16.mxu0 0
    %575 = vmatpush1.bf16.msra.mxu0 %v446
    %576 = vmatprep.subr.bf16.mxu0 0
    %577 = vmatpush1.bf16.msra.mxu0 %v443
    %578 = vmatprep.subr.bf16.mxu0 0
    %579 = vmatpush2.bf16.msra.mxu0 0
    %580 = vmatprep.subr.bf16.mxu0 0
    %581 = vmatpush2.bf16.msra.mxu0 0
    %582 = vmatprep.subr.bf16.mxu0 0
    %583 = vmatpush2.bf16.msra.mxu0 0
    %584 = vmatprep.subr.bf16.mxu0 0
    %585 = vmatpush2.bf16.msra.mxu0 0
    %586 = vmatprep.subr.bf16.mxu0 0
    %587 = vmatpush2.bf16.msra.mxu0 0
    %588 = vmatprep.subr.bf16.mxu0 0
    %589 = vmatpush2.bf16.msra.mxu0 0
    %590 = vmatprep.subr.bf16.mxu0 0
    %591 = vmatpush2.bf16.msra.mxu0 0
    %592 = vmatprep.subr.bf16.mxu0 0
    %593 = vmatpush2.bf16.msra.mxu0 0
    %594 = vmatprep.mubr.bf16.mxu0 0
    %595 = vmatmul.mubr.bf16.gmra.mxu0 %v353
    %v596 = vpop.f32.mrf.mxu0
    %v597 = vadd.f32 %v333, %v596
    %v598 = vpop.f32.mrf.mxu0
    %v599 = vpop.f32.mrf.mxu0
    %v600 = vadd.f32 %v333, %v599
    %v601 = vpop.f32.mrf.mxu0
    %602 = vmatprep.mubr.bf16.mxu0 0
    %603 = vmatmul.mubr.bf16.gmra.mxu0 %v354
    %v604 = vpop.f32.mrf.mxu0
    %v605 = vadd.f32 %v333, %v604
    %v606 = vpop.f32.mrf.mxu0
    %v607 = vpop.f32.mrf.mxu0
    %v608 = vadd.f32 %v333, %v607
    %v609 = vpop.f32.mrf.mxu0
    %610 = vmatprep.mubr.bf16.mxu0 0
    %611 = vmatmul.mubr.bf16.gmra.mxu0 %v355
    %v612 = vpop.f32.mrf.mxu0
    %v613 = vadd.f32 %v333, %v612
    %v614 = vpop.f32.mrf.mxu0
    %v615 = vpop.f32.mrf.mxu0
    %v616 = vadd.f32 %v333, %v615
    %v617 = vpop.f32.mrf.mxu0
    %618 = vmatprep.mubr.bf16.mxu0 0
    %619 = vmatmul.mubr.bf16.gmra.mxu0 %v356
    %v620 = vpop.f32.mrf.mxu0
    %v621 = vadd.f32 %v333, %v620
    %v622 = vpop.f32.mrf.mxu0
    %v623 = vpop.f32.mrf.mxu0
    %v624 = vadd.f32 %v333, %v623
    %v625 = vpop.f32.mrf.mxu0
    %626 = vdwg.mxu0
    %v628 = vlaneseq
    %v629 = vshrl.u32 %v628, 7
    %v630 = vsub.s32 0, %v629
    %v631 = vrot.slane %v181, %v630
    %v632 = vlaneseq
    %v633 = vshrl.u32 %v632, 7
    %v634 = vsub.s32 1, %v633
    %v635 = vrot.slane %v181, %v634
    %v636 = vlaneseq
    %v637 = vshrl.u32 %v636, 7
    %v638 = vsub.s32 2, %v637
    %v639 = vrot.slane %v181, %v638
    %v675 = vunpack.c.l.b16 %v149
    %v676 = vunpack.c.h.b16 %v149
    %v677 = vunpack.c.l.b16 %v150
    %v678 = vunpack.c.l.b16 %v151
    %v679 = vunpack.c.h.b16 %v151
    %v680 = vunpack.c.l.b16 %v152
    %v681 = vunpack.c.l.b16 %v153
    %v682 = vunpack.c.h.b16 %v153
    %v683 = vunpack.c.l.b16 %v154
    %v684 = vunpack.c.l.b16 %v155
    %v685 = vunpack.c.h.b16 %v155
    %v686 = vunpack.c.l.b16 %v156
    %v687 = vunpack.c.l.b16 %v157
    %v688 = vunpack.c.h.b16 %v157
    %v689 = vunpack.c.l.b16 %v158
    %v690 = vunpack.c.l.b16 %v159
    %v691 = vunpack.c.h.b16 %v159
    %v692 = vunpack.c.l.b16 %v160
    %v693 = vunpack.c.l.b16 %v161
    %v694 = vunpack.c.h.b16 %v161
    %v695 = vunpack.c.l.b16 %v162
    %v696 = vunpack.c.l.b16 %v163
    %v697 = vunpack.c.h.b16 %v163
    %v698 = vunpack.c.l.b16 %v164
    %v699 = vunpack.c.l.b16 %v165
    %v700 = vunpack.c.h.b16 %v165
    %v701 = vunpack.c.l.b16 %v166
    %v702 = vunpack.c.l.b16 %v167
    %v703 = vunpack.c.h.b16 %v167
    %v704 = vunpack.c.l.b16 %v168
    %v705 = vunpack.c.l.b16 %v169
    %v706 = vunpack.c.h.b16 %v169
    %v707 = vunpack.c.l.b16 %v170
    %v708 = vunpack.c.l.b16 %v171
    %v709 = vunpack.c.h.b16 %v171
    %v710 = vunpack.c.l.b16 %v172
    %v711 = vunpack.c.l.b16 %v173
    %v712 = vunpack.c.h.b16 %v173
    %v713 = vunpack.c.l.b16 %v174
    %v714 = vunpack.c.l.b16 %v175
    %v715 = vunpack.c.h.b16 %v175
    %v716 = vunpack.c.l.b16 %v176
    %v717 = vunpack.c.l.b16 %v177
    %v718 = vunpack.c.h.b16 %v177
    %v719 = vunpack.c.l.b16 %v178
    %v720 = vunpack.c.l.b16 %v179
    %v721 = vunpack.c.h.b16 %v179
    %v722 = vunpack.c.l.b16 %v180
    %v723 = vpack.c.b16 %v678, %v675
    %v724 = vpack.c.b16 %v679, %v676
    %v725 = vpack.c.b16 %v680, %v677
    %v726 = vpack.c.b16 %v684, %v681
    %v727 = vpack.c.b16 %v685, %v682
    %v728 = vpack.c.b16 %v686, %v683
    %v729 = vpack.c.b16 %v690, %v687
    %v730 = vpack.c.b16 %v691, %v688
    %v731 = vpack.c.b16 %v692, %v689
    %v732 = vpack.c.b16 %v696, %v693
    %v733 = vpack.c.b16 %v697, %v694
    %v734 = vpack.c.b16 %v698, %v695
    %v735 = vpack.c.b16 %v702, %v699
    %v736 = vpack.c.b16 %v703, %v700
    %v737 = vpack.c.b16 %v704, %v701
    %v738 = vpack.c.b16 %v708, %v705
    %v739 = vpack.c.b16 %v709, %v706
    %v740 = vpack.c.b16 %v710, %v707
    %v741 = vpack.c.b16 %v714, %v711
    %v742 = vpack.c.b16 %v715, %v712
    %v743 = vpack.c.b16 %v716, %v713
    %v744 = vpack.c.b16 %v720, %v717
    %v745 = vpack.c.b16 %v721, %v718
    %v746 = vpack.c.b16 %v722, %v719
    %771 = vmatprep.subr.bf16.mxu0 %v745
    %772 = vmatpush1.bf16.msra.mxu0 %v744
    %773 = vmatprep.subr.bf16.mxu0 %v742
    %774 = vmatpush1.bf16.msra.mxu0 %v741
    %775 = vmatprep.subr.bf16.mxu0 %v739
    %776 = vmatpush1.bf16.msra.mxu0 %v738
    %777 = vmatprep.subr.bf16.mxu0 %v736
    %778 = vmatpush1.bf16.msra.mxu0 %v735
    %779 = vmatprep.subr.bf16.mxu0 %v733
    %780 = vmatpush1.bf16.msra.mxu0 %v732
    %781 = vmatprep.subr.bf16.mxu0 %v730
    %782 = vmatpush1.bf16.msra.mxu0 %v729
    %783 = vmatprep.subr.bf16.mxu0 %v727
    %784 = vmatpush1.bf16.msra.mxu0 %v726
    %785 = vmatprep.subr.bf16.mxu0 %v724
    %786 = vmatpush1.bf16.msra.mxu0 %v723
    %787 = vmatprep.subr.bf16.mxu0 0
    %788 = vmatpush2.bf16.msra.mxu0 0
    %789 = vmatprep.subr.bf16.mxu0 0
    %790 = vmatpush2.bf16.msra.mxu0 0
    %791 = vmatprep.subr.bf16.mxu0 0
    %792 = vmatpush2.bf16.msra.mxu0 0
    %793 = vmatprep.subr.bf16.mxu0 0
    %794 = vmatpush2.bf16.msra.mxu0 0
    %795 = vmatprep.subr.bf16.mxu0 0
    %796 = vmatpush2.bf16.msra.mxu0 0
    %797 = vmatprep.subr.bf16.mxu0 0
    %798 = vmatpush2.bf16.msra.mxu0 0
    %799 = vmatprep.subr.bf16.mxu0 0
    %800 = vmatpush2.bf16.msra.mxu0 0
    %801 = vmatprep.subr.bf16.mxu0 0
    %802 = vmatpush2.bf16.msra.mxu0 0
    %803 = vmatprep.mubr.bf16.mxu0 0
    %804 = vmatmul.mubr.bf16.gmra.mxu0 0
    %v805 = vpop.f32.mrf.mxu0
    %v806 = vadd.f32 %v631, %v805
    %v807 = vpop.f32.mrf.mxu0
    %v808 = vadd.f32 %v635, %v807
    %v809 = vpop.f32.mrf.mxu0
    %v810 = vpop.f32.mrf.mxu0
    %811 = vdwg.mxu0
    %812 = vmatprep.subr.bf16.mxu0 0
    %813 = vmatpush1.bf16.msra.mxu0 %v746
    %814 = vmatprep.subr.bf16.mxu0 0
    %815 = vmatpush1.bf16.msra.mxu0 %v743
    %816 = vmatprep.subr.bf16.mxu0 0
    %817 = vmatpush1.bf16.msra.mxu0 %v740
    %818 = vmatprep.subr.bf16.mxu0 0
    %819 = vmatpush1.bf16.msra.mxu0 %v737
    %820 = vmatprep.subr.bf16.mxu0 0
    %821 = vmatpush1.bf16.msra.mxu0 %v734
    %822 = vmatprep.subr.bf16.mxu0 0
    %823 = vmatpush1.bf16.msra.mxu0 %v731
    %824 = vmatprep.subr.bf16.mxu0 0
    %825 = vmatpush1.bf16.msra.mxu0 %v728
    %826 = vmatprep.subr.bf16.mxu0 0
    %827 = vmatpush1.bf16.msra.mxu0 %v725
    %828 = vmatprep.subr.bf16.mxu0 0
    %829 = vmatpush2.bf16.msra.mxu0 0
    %830 = vmatprep.subr.bf16.mxu0 0
    %831 = vmatpush2.bf16.msra.mxu0 0
    %832 = vmatprep.subr.bf16.mxu0 0
    %833 = vmatpush2.bf16.msra.mxu0 0
    %834 = vmatprep.subr.bf16.mxu0 0
    %835 = vmatpush2.bf16.msra.mxu0 0
    %836 = vmatprep.subr.bf16.mxu0 0
    %837 = vmatpush2.bf16.msra.mxu0 0
    %838 = vmatprep.subr.bf16.mxu0 0
    %839 = vmatpush2.bf16.msra.mxu0 0
    %840 = vmatprep.subr.bf16.mxu0 0
    %841 = vmatpush2.bf16.msra.mxu0 0
    %842 = vmatprep.subr.bf16.mxu0 0
    %843 = vmatpush2.bf16.msra.mxu0 0
    %844 = vmatprep.mubr.bf16.mxu0 0
    %845 = vmatmul.mubr.bf16.gmra.mxu0 0
    %v846 = vpop.f32.mrf.mxu0
    %v847 = vadd.f32 %v639, %v846
    %v848 = vpop.f32.mrf.mxu0
    %v849 = vpop.f32.mrf.mxu0
    %v850 = vpop.f32.mrf.mxu0
    %851 = vdwg.mxu0
    %v852 = vadd.f32 %v524, %v806
    %v853 = vxor.u32 %v852, 2147483648
    %v854 = vmul.f32 %v853, 1.442695
    %v855 = vpow.pop %v854
    %v856 = vadd.f32 %v855, 1.0
    %v857 = vrcp.pop %v856
    %v858 = vmul.f32 1.0, %v857
    %v859 = vadd.f32 %v526, %v808
    %v860 = vxor.u32 %v859, 2147483648
    %v861 = vmul.f32 %v860, 1.442695
    %v862 = vpow.pop %v861
    %v863 = vadd.f32 %v862, 1.0
    %v864 = vrcp.pop %v863
    %v865 = vmul.f32 1.0, %v864
    %v866 = vmul.f32 %v858, %v847
    %v867 = vadd.f32 %v597, %v866
    %v868 = vtanh.pop %v867
    %v869 = vsub.f32 1.0, %v865
    %v870 = vmul.f32 %v869, %v868
    %v871 = vmul.f32 %v865, 0.0
    %v872 = vadd.f32 %v870, %v871
    %v873 = vpack.c.bf16 %v872, %v872
    %874 = vmatprep.subr.bf16.mxu0 %v745
    %875 = vmatpush1.bf16.msra.mxu0 %v744
    %876 = vmatprep.subr.bf16.mxu0 %v742
    %877 = vmatpush1.bf16.msra.mxu0 %v741
    %878 = vmatprep.subr.bf16.mxu0 %v739
    %879 = vmatpush1.bf16.msra.mxu0 %v738
    %880 = vmatprep.subr.bf16.mxu0 %v736
    %881 = vmatpush1.bf16.msra.mxu0 %v735
    %882 = vmatprep.subr.bf16.mxu0 %v733
    %883 = vmatpush1.bf16.msra.mxu0 %v732
    %884 = vmatprep.subr.bf16.mxu0 %v730
    %885 = vmatpush1.bf16.msra.mxu0 %v729
    %886 = vmatprep.subr.bf16.mxu0 %v727
    %887 = vmatpush1.bf16.msra.mxu0 %v726
    %888 = vmatprep.subr.bf16.mxu0 %v724
    %889 = vmatpush1.bf16.msra.mxu0 %v723
    %890 = vmatprep.subr.bf16.mxu0 0
    %891 = vmatpush2.bf16.msra.mxu0 0
    %892 = vmatprep.subr.bf16.mxu0 0
    %893 = vmatpush2.bf16.msra.mxu0 0
    %894 = vmatprep.subr.bf16.mxu0 0
    %895 = vmatpush2.bf16.msra.mxu0 0
    %896 = vmatprep.subr.bf16.mxu0 0
    %897 = vmatpush2.bf16.msra.mxu0 0
    %898 = vmatprep.subr.bf16.mxu0 0
    %899 = vmatpush2.bf16.msra.mxu0 0
    %900 = vmatprep.subr.bf16.mxu0 0
    %901 = vmatpush2.bf16.msra.mxu0 0
    %902 = vmatprep.subr.bf16.mxu0 0
    %903 = vmatpush2.bf16.msra.mxu0 0
    %904 = vmatprep.subr.bf16.mxu0 0
    %905 = vmatpush2.bf16.msra.mxu0 0
    %906 = vmatprep.mubr.bf16.mxu0 0
    %907 = vmatmul.mubr.bf16.gmra.mxu0 %v873
    %v908 = vpop.f32.mrf.mxu0
    %v909 = vadd.f32 %v631, %v908
    %v910 = vpop.f32.mrf.mxu0
    %v911 = vadd.f32 %v635, %v910
    %v912 = vpop.f32.mrf.mxu0
    %v913 = vpop.f32.mrf.mxu0
    %914 = vdwg.mxu0
    %915 = vmatprep.subr.bf16.mxu0 0
    %916 = vmatpush1.bf16.msra.mxu0 %v746
    %917 = vmatprep.subr.bf16.mxu0 0
    %918 = vmatpush1.bf16.msra.mxu0 %v743
    %919 = vmatprep.subr.bf16.mxu0 0
    %920 = vmatpush1.bf16.msra.mxu0 %v740
    %921 = vmatprep.subr.bf16.mxu0 0
    %922 = vmatpush1.bf16.msra.mxu0 %v737
    %923 = vmatprep.subr.bf16.mxu0 0
    %924 = vmatpush1.bf16.msra.mxu0 %v734
    %925 = vmatprep.subr.bf16.mxu0 0
    %926 = vmatpush1.bf16.msra.mxu0 %v731
    %927 = vmatprep.subr.bf16.mxu0 0
    %928 = vmatpush1.bf16.msra.mxu0 %v728
    %929 = vmatprep.subr.bf16.mxu0 0
    %930 = vmatpush1.bf16.msra.mxu0 %v725
    %931 = vmatprep.subr.bf16.mxu0 0
    %932 = vmatpush2.bf16.msra.mxu0 0
    %933 = vmatprep.subr.bf16.mxu0 0
    %934 = vmatpush2.bf16.msra.mxu0 0
    %935 = vmatprep.subr.bf16.mxu0 0
    %936 = vmatpush2.bf16.msra.mxu0 0
    %937 = vmatprep.subr.bf16.mxu0 0
    %938 = vmatpush2.bf16.msra.mxu0 0
    %939 = vmatprep.subr.bf16.mxu0 0
    %940 = vmatpush2.bf16.msra.mxu0 0
    %941 = vmatprep.subr.bf16.mxu0 0
    %942 = vmatpush2.bf16.msra.mxu0 0
    %943 = vmatprep.subr.bf16.mxu0 0
    %944 = vmatpush2.bf16.msra.mxu0 0
    %945 = vmatprep.subr.bf16.mxu0 0
    %946 = vmatpush2.bf16.msra.mxu0 0
    %947 = vmatprep.mubr.bf16.mxu0 0
    %948 = vmatmul.mubr.bf16.gmra.mxu0 %v873
    %v949 = vpop.f32.mrf.mxu0
    %v950 = vadd.f32 %v639, %v949
    %v951 = vpop.f32.mrf.mxu0
    %v952 = vpop.f32.mrf.mxu0
    %v953 = vpop.f32.mrf.mxu0
    %954 = vdwg.mxu0
    %v955 = vadd.f32 %v528, %v909
    %v956 = vxor.u32 %v955, 2147483648
    %v957 = vmul.f32 %v956, 1.442695
    %v958 = vpow.pop %v957
    %v959 = vadd.f32 %v958, 1.0
    %v960 = vrcp.pop %v959
    %v961 = vmul.f32 1.0, %v960
    %v962 = vadd.f32 %v530, %v911
    %v963 = vxor.u32 %v962, 2147483648
    %v964 = vmul.f32 %v963, 1.442695
    %v965 = vpow.pop %v964
    %v966 = vadd.f32 %v965, 1.0
    %v967 = vrcp.pop %v966
    %v968 = vmul.f32 1.0, %v967
    %v969 = vmul.f32 %v961, %v950
    %v970 = vadd.f32 %v600, %v969
    %v971 = vtanh.pop %v970
    %v972 = vsub.f32 1.0, %v968
    %v973 = vmul.f32 %v972, %v971
    %v974 = vmul.f32 %v968, %v872
    %v975 = vadd.f32 %v973, %v974
    %v976 = vpack.c.bf16 %v975, %v975
    %977 = vmatprep.subr.bf16.mxu0 %v745
    %978 = vmatpush1.bf16.msra.mxu0 %v744
    %979 = vmatprep.subr.bf16.mxu0 %v742
    %980 = vmatpush1.bf16.msra.mxu0 %v741
    %981 = vmatprep.subr.bf16.mxu0 %v739
    %982 = vmatpush1.bf16.msra.mxu0 %v738
    %983 = vmatprep.subr.bf16.mxu0 %v736
    %984 = vmatpush1.bf16.msra.mxu0 %v735
    %985 = vmatprep.subr.bf16.mxu0 %v733
    %986 = vmatpush1.bf16.msra.mxu0 %v732
    %987 = vmatprep.subr.bf16.mxu0 %v730
    %988 = vmatpush1.bf16.msra.mxu0 %v729
    %989 = vmatprep.subr.bf16.mxu0 %v727
    %990 = vmatpush1.bf16.msra.mxu0 %v726
    %991 = vmatprep.subr.bf16.mxu0 %v724
    %992 = vmatpush1.bf16.msra.mxu0 %v723
    %993 = vmatprep.subr.bf16.mxu0 0
    %994 = vmatpush2.bf16.msra.mxu0 0
    %995 = vmatprep.subr.bf16.mxu0 0
    %996 = vmatpush2.bf16.msra.mxu0 0
    %997 = vmatprep.subr.bf16.mxu0 0
    %998 = vmatpush2.bf16.msra.mxu0 0
    %999 = vmatprep.subr.bf16.mxu0 0
    %1000 = vmatpush2.bf16.msra.mxu0 0
    %1001 = vmatprep.subr.bf16.mxu0 0
    %1002 = vmatpush2.bf16.msra.mxu0 0
    %1003 = vmatprep.subr.bf16.mxu0 0
    %1004 = vmatpush2.bf16.msra.mxu0 0
    %1005 = vmatprep.subr.bf16.mxu0 0
    %1006 = vmatpush2.bf16.msra.mxu0 0
    %1007 = vmatprep.subr.bf16.mxu0 0
    %1008 = vmatpush2.bf16.msra.mxu0 0
    %1009 = vmatprep.mubr.bf16.mxu0 0
    %1010 = vmatmul.mubr.bf16.gmra.mxu0 %v976
    %v1011 = vpop.f32.mrf.mxu0
    %v1012 = vadd.f32 %v631, %v1011
    %v1013 = vpop.f32.mrf.mxu0
    %v1014 = vadd.f32 %v635, %v1013
    %v1015 = vpop.f32.mrf.mxu0
    %v1016 = vpop.f32.mrf.mxu0
    %1017 = vdwg.mxu0
    %1018 = vmatprep.subr.bf16.mxu0 0
    %1019 = vmatpush1.bf16.msra.mxu0 %v746
    %1020 = vmatprep.subr.bf16.mxu0 0
    %1021 = vmatpush1.bf16.msra.mxu0 %v743
    %1022 = vmatprep.subr.bf16.mxu0 0
    %1023 = vmatpush1.bf16.msra.mxu0 %v740
    %1024 = vmatprep.subr.bf16.mxu0 0
    %1025 = vmatpush1.bf16.msra.mxu0 %v737
    %1026 = vmatprep.subr.bf16.mxu0 0
    %1027 = vmatpush1.bf16.msra.mxu0 %v734
    %1028 = vmatprep.subr.bf16.mxu0 0
    %1029 = vmatpush1.bf16.msra.mxu0 %v731
    %1030 = vmatprep.subr.bf16.mxu0 0
    %1031 = vmatpush1.bf16.msra.mxu0 %v728
    %1032 = vmatprep.subr.bf16.mxu0 0
    %1033 = vmatpush1.bf16.msra.mxu0 %v725
    %1034 = vmatprep.subr.bf16.mxu0 0
    %1035 = vmatpush2.bf16.msra.mxu0 0
    %1036 = vmatprep.subr.bf16.mxu0 0
    %1037 = vmatpush2.bf16.msra.mxu0 0
    %1038 = vmatprep.subr.bf16.mxu0 0
    %1039 = vmatpush2.bf16.msra.mxu0 0
    %1040 = vmatprep.subr.bf16.mxu0 0
    %1041 = vmatpush2.bf16.msra.mxu0 0
    %1042 = vmatprep.subr.bf16.mxu0 0
    %1043 = vmatpush2.bf16.msra.mxu0 0
    %1044 = vmatprep.subr.bf16.mxu0 0
    %1045 = vmatpush2.bf16.msra.mxu0 0
    %1046 = vmatprep.subr.bf16.mxu0 0
    %1047 = vmatpush2.bf16.msra.mxu0 0
    %1048 = vmatprep.subr.bf16.mxu0 0
    %1049 = vmatpush2.bf16.msra.mxu0 0
    %1050 = vmatprep.mubr.bf16.mxu0 0
    %1051 = vmatmul.mubr.bf16.gmra.mxu0 %v976
    %v1052 = vpop.f32.mrf.mxu0
    %v1053 = vadd.f32 %v639, %v1052
    %v1054 = vpop.f32.mrf.mxu0
    %v1055 = vpop.f32.mrf.mxu0
    %v1056 = vpop.f32.mrf.mxu0
    %1057 = vdwg.mxu0
    %v1058 = vadd.f32 %v534, %v1012
    %v1059 = vxor.u32 %v1058, 2147483648
    %v1060 = vmul.f32 %v1059, 1.442695
    %v1061 = vpow.pop %v1060
    %v1062 = vadd.f32 %v1061, 1.0
    %v1063 = vrcp.pop %v1062
    %v1064 = vmul.f32 1.0, %v1063
    %v1065 = vadd.f32 %v536, %v1014
    %v1066 = vxor.u32 %v1065, 2147483648
    %v1067 = vmul.f32 %v1066, 1.442695
    %v1068 = vpow.pop %v1067
    %v1069 = vadd.f32 %v1068, 1.0
    %v1070 = vrcp.pop %v1069
    %v1071 = vmul.f32 1.0, %v1070
    %v1072 = vmul.f32 %v1064, %v1053
    %v1073 = vadd.f32 %v605, %v1072
    %v1074 = vtanh.pop %v1073
    %v1075 = vsub.f32 1.0, %v1071
    %v1076 = vmul.f32 %v1075, %v1074
    %v1077 = vmul.f32 %v1071, %v975
    %v1078 = vadd.f32 %v1076, %v1077
    %v1079 = vpack.c.bf16 %v1078, %v1078
    %1080 = vmatprep.subr.bf16.mxu0 %v745
    %1081 = vmatpush1.bf16.msra.mxu0 %v744
    %1082 = vmatprep.subr.bf16.mxu0 %v742
    %1083 = vmatpush1.bf16.msra.mxu0 %v741
    %1084 = vmatprep.subr.bf16.mxu0 %v739
    %1085 = vmatpush1.bf16.msra.mxu0 %v738
    %1086 = vmatprep.subr.bf16.mxu0 %v736
    %1087 = vmatpush1.bf16.msra.mxu0 %v735
    %1088 = vmatprep.subr.bf16.mxu0 %v733
    %1089 = vmatpush1.bf16.msra.mxu0 %v732
    %1090 = vmatprep.subr.bf16.mxu0 %v730
    %1091 = vmatpush1.bf16.msra.mxu0 %v729
    %1092 = vmatprep.subr.bf16.mxu0 %v727
    %1093 = vmatpush1.bf16.msra.mxu0 %v726
    %1094 = vmatprep.subr.bf16.mxu0 %v724
    %1095 = vmatpush1.bf16.msra.mxu0 %v723
    %1096 = vmatprep.subr.bf16.mxu0 0
    %1097 = vmatpush2.bf16.msra.mxu0 0
    %1098 = vmatprep.subr.bf16.mxu0 0
    %1099 = vmatpush2.bf16.msra.mxu0 0
    %1100 = vmatprep.subr.bf16.mxu0 0
    %1101 = vmatpush2.bf16.msra.mxu0 0
    %1102 = vmatprep.subr.bf16.mxu0 0
    %1103 = vmatpush2.bf16.msra.mxu0 0
    %1104 = vmatprep.subr.bf16.mxu0 0
    %1105 = vmatpush2.bf16.msra.mxu0 0
    %1106 = vmatprep.subr.bf16.mxu0 0
    %1107 = vmatpush2.bf16.msra.mxu0 0
    %1108 = vmatprep.subr.bf16.mxu0 0
    %1109 = vmatpush2.bf16.msra.mxu0 0
    %1110 = vmatprep.subr.bf16.mxu0 0
    %1111 = vmatpush2.bf16.msra.mxu0 0
    %1112 = vmatprep.mubr.bf16.mxu0 0
    %1113 = vmatmul.mubr.bf16.gmra.mxu0 %v1079
    %v1114 = vpop.f32.mrf.mxu0
    %v1115 = vadd.f32 %v631, %v1114
    %v1116 = vpop.f32.mrf.mxu0
    %v1117 = vadd.f32 %v635, %v1116
    %v1118 = vpop.f32.mrf.mxu0
    %v1119 = vpop.f32.mrf.mxu0
    %1120 = vdwg.mxu0
    %1121 = vmatprep.subr.bf16.mxu0 0
    %1122 = vmatpush1.bf16.msra.mxu0 %v746
    %1123 = vmatprep.subr.bf16.mxu0 0
    %1124 = vmatpush1.bf16.msra.mxu0 %v743
    %1125 = vmatprep.subr.bf16.mxu0 0
    %1126 = vmatpush1.bf16.msra.mxu0 %v740
    %1127 = vmatprep.subr.bf16.mxu0 0
    %1128 = vmatpush1.bf16.msra.mxu0 %v737
    %1129 = vmatprep.subr.bf16.mxu0 0
    %1130 = vmatpush1.bf16.msra.mxu0 %v734
    %1131 = vmatprep.subr.bf16.mxu0 0
    %1132 = vmatpush1.bf16.msra.mxu0 %v731
    %1133 = vmatprep.subr.bf16.mxu0 0
    %1134 = vmatpush1.bf16.msra.mxu0 %v728
    %1135 = vmatprep.subr.bf16.mxu0 0
    %1136 = vmatpush1.bf16.msra.mxu0 %v725
    %1137 = vmatprep.subr.bf16.mxu0 0
    %1138 = vmatpush2.bf16.msra.mxu0 0
    %1139 = vmatprep.subr.bf16.mxu0 0
    %1140 = vmatpush2.bf16.msra.mxu0 0
    %1141 = vmatprep.subr.bf16.mxu0 0
    %1142 = vmatpush2.bf16.msra.mxu0 0
    %1143 = vmatprep.subr.bf16.mxu0 0
    %1144 = vmatpush2.bf16.msra.mxu0 0
    %1145 = vmatprep.subr.bf16.mxu0 0
    %1146 = vmatpush2.bf16.msra.mxu0 0
    %1147 = vmatprep.subr.bf16.mxu0 0
    %1148 = vmatpush2.bf16.msra.mxu0 0
    %1149 = vmatprep.subr.bf16.mxu0 0
    %1150 = vmatpush2.bf16.msra.mxu0 0
    %1151 = vmatprep.subr.bf16.mxu0 0
    %1152 = vmatpush2.bf16.msra.mxu0 0
    %1153 = vmatprep.mubr.bf16.mxu0 0
    %1154 = vmatmul.mubr.bf16.gmra.mxu0 %v1079
    %v1155 = vpop.f32.mrf.mxu0
    %v1156 = vadd.f32 %v639, %v1155
    %v1157 = vpop.f32.mrf.mxu0
    %v1158 = vpop.f32.mrf.mxu0
    %v1159 = vpop.f32.mrf.mxu0
    %1160 = vdwg.mxu0
    %v1161 = vadd.f32 %v538, %v1115
    %v1162 = vxor.u32 %v1161, 2147483648
    %v1163 = vmul.f32 %v1162, 1.442695
    %v1164 = vpow.pop %v1163
    %v1165 = vadd.f32 %v1164, 1.0
    %v1166 = vrcp.pop %v1165
    %v1167 = vmul.f32 1.0, %v1166
    %v1168 = vadd.f32 %v540, %v1117
    %v1169 = vxor.u32 %v1168, 2147483648
    %v1170 = vmul.f32 %v1169, 1.442695
    %v1171 = vpow.pop %v1170
    %v1172 = vadd.f32 %v1171, 1.0
    %v1173 = vrcp.pop %v1172
    %v1174 = vmul.f32 1.0, %v1173
    %v1175 = vmul.f32 %v1167, %v1156
    %v1176 = vadd.f32 %v608, %v1175
    %v1177 = vtanh.pop %v1176
    %v1178 = vsub.f32 1.0, %v1174
    %v1179 = vmul.f32 %v1178, %v1177
    %v1180 = vmul.f32 %v1174, %v1078
    %v1181 = vadd.f32 %v1179, %v1180
    %v1182 = vpack.c.bf16 %v1181, %v1181
    %1183 = vmatprep.subr.bf16.mxu0 %v745
    %1184 = vmatpush1.bf16.msra.mxu0 %v744
    %1185 = vmatprep.subr.bf16.mxu0 %v742
    %1186 = vmatpush1.bf16.msra.mxu0 %v741
    %1187 = vmatprep.subr.bf16.mxu0 %v739
    %1188 = vmatpush1.bf16.msra.mxu0 %v738
    %1189 = vmatprep.subr.bf16.mxu0 %v736
    %1190 = vmatpush1.bf16.msra.mxu0 %v735
    %1191 = vmatprep.subr.bf16.mxu0 %v733
    %1192 = vmatpush1.bf16.msra.mxu0 %v732
    %1193 = vmatprep.subr.bf16.mxu0 %v730
    %1194 = vmatpush1.bf16.msra.mxu0 %v729
    %1195 = vmatprep.subr.bf16.mxu0 %v727
    %1196 = vmatpush1.bf16.msra.mxu0 %v726
    %1197 = vmatprep.subr.bf16.mxu0 %v724
    %1198 = vmatpush1.bf16.msra.mxu0 %v723
    %1199 = vmatprep.subr.bf16.mxu0 0
    %1200 = vmatpush2.bf16.msra.mxu0 0
    %1201 = vmatprep.subr.bf16.mxu0 0
    %1202 = vmatpush2.bf16.msra.mxu0 0
    %1203 = vmatprep.subr.bf16.mxu0 0
    %1204 = vmatpush2.bf16.msra.mxu0 0
    %1205 = vmatprep.subr.bf16.mxu0 0
    %1206 = vmatpush2.bf16.msra.mxu0 0
    %1207 = vmatprep.subr.bf16.mxu0 0
    %1208 = vmatpush2.bf16.msra.mxu0 0
    %1209 = vmatprep.subr.bf16.mxu0 0
    %1210 = vmatpush2.bf16.msra.mxu0 0
    %1211 = vmatprep.subr.bf16.mxu0 0
    %1212 = vmatpush2.bf16.msra.mxu0 0
    %1213 = vmatprep.subr.bf16.mxu0 0
    %1214 = vmatpush2.bf16.msra.mxu0 0
    %1215 = vmatprep.mubr.bf16.mxu0 0
    %1216 = vmatmul.mubr.bf16.gmra.mxu0 %v1182
    %v1217 = vpop.f32.mrf.mxu0
    %v1218 = vadd.f32 %v631, %v1217
    %v1219 = vpop.f32.mrf.mxu0
    %v1220 = vadd.f32 %v635, %v1219
    %v1221 = vpop.f32.mrf.mxu0
    %v1222 = vpop.f32.mrf.mxu0
    %1223 = vdwg.mxu0
    %1224 = vmatprep.subr.bf16.mxu0 0
    %1225 = vmatpush1.bf16.msra.mxu0 %v746
    %1226 = vmatprep.subr.bf16.mxu0 0
    %1227 = vmatpush1.bf16.msra.mxu0 %v743
    %1228 = vmatprep.subr.bf16.mxu0 0
    %1229 = vmatpush1.bf16.msra.mxu0 %v740
    %1230 = vmatprep.subr.bf16.mxu0 0
    %1231 = vmatpush1.bf16.msra.mxu0 %v737
    %1232 = vmatprep.subr.bf16.mxu0 0
    %1233 = vmatpush1.bf16.msra.mxu0 %v734
    %1234 = vmatprep.subr.bf16.mxu0 0
    %1235 = vmatpush1.bf16.msra.mxu0 %v731
    %1236 = vmatprep.subr.bf16.mxu0 0
    %1237 = vmatpush1.bf16.msra.mxu0 %v728
    %1238 = vmatprep.subr.bf16.mxu0 0
    %1239 = vmatpush1.bf16.msra.mxu0 %v725
    %1240 = vmatprep.subr.bf16.mxu0 0
    %1241 = vmatpush2.bf16.msra.mxu0 0
    %1242 = vmatprep.subr.bf16.mxu0 0
    %1243 = vmatpush2.bf16.msra.mxu0 0
    %1244 = vmatprep.subr.bf16.mxu0 0
    %1245 = vmatpush2.bf16.msra.mxu0 0
    %1246 = vmatprep.subr.bf16.mxu0 0
    %1247 = vmatpush2.bf16.msra.mxu0 0
    %1248 = vmatprep.subr.bf16.mxu0 0
    %1249 = vmatpush2.bf16.msra.mxu0 0
    %1250 = vmatprep.subr.bf16.mxu0 0
    %1251 = vmatpush2.bf16.msra.mxu0 0
    %1252 = vmatprep.subr.bf16.mxu0 0
    %1253 = vmatpush2.bf16.msra.mxu0 0
    %1254 = vmatprep.subr.bf16.mxu0 0
    %1255 = vmatpush2.bf16.msra.mxu0 0
    %1256 = vmatprep.mubr.bf16.mxu0 0
    %1257 = vmatmul.mubr.bf16.gmra.mxu0 %v1182
    %v1258 = vpop.f32.mrf.mxu0
    %v1259 = vadd.f32 %v639, %v1258
    %v1260 = vpop.f32.mrf.mxu0
    %v1261 = vpop.f32.mrf.mxu0
    %v1262 = vpop.f32.mrf.mxu0
    %1263 = vdwg.mxu0
    %v1264 = vadd.f32 %v544, %v1218
    %v1265 = vxor.u32 %v1264, 2147483648
    %v1266 = vmul.f32 %v1265, 1.442695
    %v1267 = vpow.pop %v1266
    %v1268 = vadd.f32 %v1267, 1.0
    %v1269 = vrcp.pop %v1268
    %v1270 = vmul.f32 1.0, %v1269
    %v1271 = vadd.f32 %v546, %v1220
    %v1272 = vxor.u32 %v1271, 2147483648
    %v1273 = vmul.f32 %v1272, 1.442695
    %v1274 = vpow.pop %v1273
    %v1275 = vadd.f32 %v1274, 1.0
    %v1276 = vrcp.pop %v1275
    %v1277 = vmul.f32 1.0, %v1276
    %v1278 = vmul.f32 %v1270, %v1259
    %v1279 = vadd.f32 %v613, %v1278
    %v1280 = vtanh.pop %v1279
    %v1281 = vsub.f32 1.0, %v1277
    %v1282 = vmul.f32 %v1281, %v1280
    %v1283 = vmul.f32 %v1277, %v1181
    %v1284 = vadd.f32 %v1282, %v1283
    %v1285 = vpack.c.bf16 %v1284, %v1284
    %1286 = vmatprep.subr.bf16.mxu0 %v745
    %1287 = vmatpush1.bf16.msra.mxu0 %v744
    %1288 = vmatprep.subr.bf16.mxu0 %v742
    %1289 = vmatpush1.bf16.msra.mxu0 %v741
    %1290 = vmatprep.subr.bf16.mxu0 %v739
    %1291 = vmatpush1.bf16.msra.mxu0 %v738
    %1292 = vmatprep.subr.bf16.mxu0 %v736
    %1293 = vmatpush1.bf16.msra.mxu0 %v735
    %1294 = vmatprep.subr.bf16.mxu0 %v733
    %1295 = vmatpush1.bf16.msra.mxu0 %v732
    %1296 = vmatprep.subr.bf16.mxu0 %v730
    %1297 = vmatpush1.bf16.msra.mxu0 %v729
    %1298 = vmatprep.subr.bf16.mxu0 %v727
    %1299 = vmatpush1.bf16.msra.mxu0 %v726
    %1300 = vmatprep.subr.bf16.mxu0 %v724
    %1301 = vmatpush1.bf16.msra.mxu0 %v723
    %1302 = vmatprep.subr.bf16.mxu0 0
    %1303 = vmatpush2.bf16.msra.mxu0 0
    %1304 = vmatprep.subr.bf16.mxu0 0
    %1305 = vmatpush2.bf16.msra.mxu0 0
    %1306 = vmatprep.subr.bf16.mxu0 0
    %1307 = vmatpush2.bf16.msra.mxu0 0
    %1308 = vmatprep.subr.bf16.mxu0 0
    %1309 = vmatpush2.bf16.msra.mxu0 0
    %1310 = vmatprep.subr.bf16.mxu0 0
    %1311 = vmatpush2.bf16.msra.mxu0 0
    %1312 = vmatprep.subr.bf16.mxu0 0
    %1313 = vmatpush2.bf16.msra.mxu0 0
    %1314 = vmatprep.subr.bf16.mxu0 0
    %1315 = vmatpush2.bf16.msra.mxu0 0
    %1316 = vmatprep.subr.bf16.mxu0 0
    %1317 = vmatpush2.bf16.msra.mxu0 0
    %1318 = vmatprep.mubr.bf16.mxu0 0
    %1319 = vmatmul.mubr.bf16.gmra.mxu0 %v1285
    %v1320 = vpop.f32.mrf.mxu0
    %v1321 = vadd.f32 %v631, %v1320
    %v1322 = vpop.f32.mrf.mxu0
    %v1323 = vadd.f32 %v635, %v1322
    %v1324 = vpop.f32.mrf.mxu0
    %v1325 = vpop.f32.mrf.mxu0
    %1326 = vdwg.mxu0
    %1327 = vmatprep.subr.bf16.mxu0 0
    %1328 = vmatpush1.bf16.msra.mxu0 %v746
    %1329 = vmatprep.subr.bf16.mxu0 0
    %1330 = vmatpush1.bf16.msra.mxu0 %v743
    %1331 = vmatprep.subr.bf16.mxu0 0
    %1332 = vmatpush1.bf16.msra.mxu0 %v740
    %1333 = vmatprep.subr.bf16.mxu0 0
    %1334 = vmatpush1.bf16.msra.mxu0 %v737
    %1335 = vmatprep.subr.bf16.mxu0 0
    %1336 = vmatpush1.bf16.msra.mxu0 %v734
    %1337 = vmatprep.subr.bf16.mxu0 0
    %1338 = vmatpush1.bf16.msra.mxu0 %v731
    %1339 = vmatprep.subr.bf16.mxu0 0
    %1340 = vmatpush1.bf16.msra.mxu0 %v728
    %1341 = vmatprep.subr.bf16.mxu0 0
    %1342 = vmatpush1.bf16.msra.mxu0 %v725
    %1343 = vmatprep.subr.bf16.mxu0 0
    %1344 = vmatpush2.bf16.msra.mxu0 0
    %1345 = vmatprep.subr.bf16.mxu0 0
    %1346 = vmatpush2.bf16.msra.mxu0 0
    %1347 = vmatprep.subr.bf16.mxu0 0
    %1348 = vmatpush2.bf16.msra.mxu0 0
    %1349 = vmatprep.subr.bf16.mxu0 0
    %1350 = vmatpush2.bf16.msra.mxu0 0
    %1351 = vmatprep.subr.bf16.mxu0 0
    %1352 = vmatpush2.bf16.msra.mxu0 0
    %1353 = vmatprep.subr.bf16.mxu0 0
    %1354 = vmatpush2.bf16.msra.mxu0 0
    %1355 = vmatprep.subr.bf16.mxu0 0
    %1356 = vmatpush2.bf16.msra.mxu0 0
    %1357 = vmatprep.subr.bf16.mxu0 0
    %1358 = vmatpush2.bf16.msra.mxu0 0
    %1359 = vmatprep.mubr.bf16.mxu0 0
    %1360 = vmatmul.mubr.bf16.gmra.mxu0 %v1285
    %v1361 = vpop.f32.mrf.mxu0
    %v1362 = vadd.f32 %v639, %v1361
    %v1363 = vpop.f32.mrf.mxu0
    %v1364 = vpop.f32.mrf.mxu0
    %v1365 = vpop.f32.mrf.mxu0
    %1366 = vdwg.mxu0
    %v1367 = vadd.f32 %v548, %v1321
    %v1368 = vxor.u32 %v1367, 2147483648
    %v1369 = vmul.f32 %v1368, 1.442695
    %v1370 = vpow.pop %v1369
    %v1371 = vadd.f32 %v1370, 1.0
    %v1372 = vrcp.pop %v1371
    %v1373 = vmul.f32 1.0, %v1372
    %v1374 = vadd.f32 %v550, %v1323
    %v1375 = vxor.u32 %v1374, 2147483648
    %v1376 = vmul.f32 %v1375, 1.442695
    %v1377 = vpow.pop %v1376
    %v1378 = vadd.f32 %v1377, 1.0
    %v1379 = vrcp.pop %v1378
    %v1380 = vmul.f32 1.0, %v1379
    %v1381 = vmul.f32 %v1373, %v1362
    %v1382 = vadd.f32 %v616, %v1381
    %v1383 = vtanh.pop %v1382
    %v1384 = vsub.f32 1.0, %v1380
    %v1385 = vmul.f32 %v1384, %v1383
    %v1386 = vmul.f32 %v1380, %v1284
    %v1387 = vadd.f32 %v1385, %v1386
    %v1388 = vpack.c.bf16 %v1387, %v1387
    %1389 = vmatprep.subr.bf16.mxu0 %v745
    %1390 = vmatpush1.bf16.msra.mxu0 %v744
    %1391 = vmatprep.subr.bf16.mxu0 %v742
    %1392 = vmatpush1.bf16.msra.mxu0 %v741
    %1393 = vmatprep.subr.bf16.mxu0 %v739
    %1394 = vmatpush1.bf16.msra.mxu0 %v738
    %1395 = vmatprep.subr.bf16.mxu0 %v736
    %1396 = vmatpush1.bf16.msra.mxu0 %v735
    %1397 = vmatprep.subr.bf16.mxu0 %v733
    %1398 = vmatpush1.bf16.msra.mxu0 %v732
    %1399 = vmatprep.subr.bf16.mxu0 %v730
    %1400 = vmatpush1.bf16.msra.mxu0 %v729
    %1401 = vmatprep.subr.bf16.mxu0 %v727
    %1402 = vmatpush1.bf16.msra.mxu0 %v726
    %1403 = vmatprep.subr.bf16.mxu0 %v724
    %1404 = vmatpush1.bf16.msra.mxu0 %v723
    %1405 = vmatprep.subr.bf16.mxu0 0
    %1406 = vmatpush2.bf16.msra.mxu0 0
    %1407 = vmatprep.subr.bf16.mxu0 0
    %1408 = vmatpush2.bf16.msra.mxu0 0
    %1409 = vmatprep.subr.bf16.mxu0 0
    %1410 = vmatpush2.bf16.msra.mxu0 0
    %1411 = vmatprep.subr.bf16.mxu0 0
    %1412 = vmatpush2.bf16.msra.mxu0 0
    %1413 = vmatprep.subr.bf16.mxu0 0
    %1414 = vmatpush2.bf16.msra.mxu0 0
    %1415 = vmatprep.subr.bf16.mxu0 0
    %1416 = vmatpush2.bf16.msra.mxu0 0
    %1417 = vmatprep.subr.bf16.mxu0 0
    %1418 = vmatpush2.bf16.msra.mxu0 0
    %1419 = vmatprep.subr.bf16.mxu0 0
    %1420 = vmatpush2.bf16.msra.mxu0 0
    %1421 = vmatprep.mubr.bf16.mxu0 0
    %1422 = vmatmul.mubr.bf16.gmra.mxu0 %v1388
    %v1423 = vpop.f32.mrf.mxu0
    %v1424 = vadd.f32 %v631, %v1423
    %v1425 = vpop.f32.mrf.mxu0
    %v1426 = vadd.f32 %v635, %v1425
    %v1427 = vpop.f32.mrf.mxu0
    %v1428 = vpop.f32.mrf.mxu0
    %1429 = vdwg.mxu0
    %1430 = vmatprep.subr.bf16.mxu0 0
    %1431 = vmatpush1.bf16.msra.mxu0 %v746
    %1432 = vmatprep.subr.bf16.mxu0 0
    %1433 = vmatpush1.bf16.msra.mxu0 %v743
    %1434 = vmatprep.subr.bf16.mxu0 0
    %1435 = vmatpush1.bf16.msra.mxu0 %v740
    %1436 = vmatprep.subr.bf16.mxu0 0
    %1437 = vmatpush1.bf16.msra.mxu0 %v737
    %1438 = vmatprep.subr.bf16.mxu0 0
    %1439 = vmatpush1.bf16.msra.mxu0 %v734
    %1440 = vmatprep.subr.bf16.mxu0 0
    %1441 = vmatpush1.bf16.msra.mxu0 %v731
    %1442 = vmatprep.subr.bf16.mxu0 0
    %1443 = vmatpush1.bf16.msra.mxu0 %v728
    %1444 = vmatprep.subr.bf16.mxu0 0
    %1445 = vmatpush1.bf16.msra.mxu0 %v725
    %1446 = vmatprep.subr.bf16.mxu0 0
    %1447 = vmatpush2.bf16.msra.mxu0 0
    %1448 = vmatprep.subr.bf16.mxu0 0
    %1449 = vmatpush2.bf16.msra.mxu0 0
    %1450 = vmatprep.subr.bf16.mxu0 0
    %1451 = vmatpush2.bf16.msra.mxu0 0
    %1452 = vmatprep.subr.bf16.mxu0 0
    %1453 = vmatpush2.bf16.msra.mxu0 0
    %1454 = vmatprep.subr.bf16.mxu0 0
    %1455 = vmatpush2.bf16.msra.mxu0 0
    %1456 = vmatprep.subr.bf16.mxu0 0
    %1457 = vmatpush2.bf16.msra.mxu0 0
    %1458 = vmatprep.subr.bf16.mxu0 0
    %1459 = vmatpush2.bf16.msra.mxu0 0
    %1460 = vmatprep.subr.bf16.mxu0 0
    %1461 = vmatpush2.bf16.msra.mxu0 0
    %1462 = vmatprep.mubr.bf16.mxu0 0
    %1463 = vmatmul.mubr.bf16.gmra.mxu0 %v1388
    %v1464 = vpop.f32.mrf.mxu0
    %v1465 = vadd.f32 %v639, %v1464
    %v1466 = vpop.f32.mrf.mxu0
    %v1467 = vpop.f32.mrf.mxu0
    %v1468 = vpop.f32.mrf.mxu0
    %1469 = vdwg.mxu0
    %v1470 = vadd.f32 %v554, %v1424
    %v1471 = vxor.u32 %v1470, 2147483648
    %v1472 = vmul.f32 %v1471, 1.442695
    %v1473 = vpow.pop %v1472
    %v1474 = vadd.f32 %v1473, 1.0
    %v1475 = vrcp.pop %v1474
    %v1476 = vmul.f32 1.0, %v1475
    %v1477 = vadd.f32 %v556, %v1426
    %v1478 = vxor.u32 %v1477, 2147483648
    %v1479 = vmul.f32 %v1478, 1.442695
    %v1480 = vpow.pop %v1479
    %v1481 = vadd.f32 %v1480, 1.0
    %v1482 = vrcp.pop %v1481
    %v1483 = vmul.f32 1.0, %v1482
    %v1484 = vmul.f32 %v1476, %v1465
    %v1485 = vadd.f32 %v621, %v1484
    %v1486 = vtanh.pop %v1485
    %v1487 = vsub.f32 1.0, %v1483
    %v1488 = vmul.f32 %v1487, %v1486
    %v1489 = vmul.f32 %v1483, %v1387
    %v1490 = vadd.f32 %v1488, %v1489
    %v1491 = vpack.c.bf16 %v1490, %v1490
    %1492 = vmatprep.subr.bf16.mxu0 %v745
    %1493 = vmatpush1.bf16.msra.mxu0 %v744
    %1494 = vmatprep.subr.bf16.mxu0 %v742
    %1495 = vmatpush1.bf16.msra.mxu0 %v741
    %1496 = vmatprep.subr.bf16.mxu0 %v739
    %1497 = vmatpush1.bf16.msra.mxu0 %v738
    %1498 = vmatprep.subr.bf16.mxu0 %v736
    %1499 = vmatpush1.bf16.msra.mxu0 %v735
    %1500 = vmatprep.subr.bf16.mxu0 %v733
    %1501 = vmatpush1.bf16.msra.mxu0 %v732
    %1502 = vmatprep.subr.bf16.mxu0 %v730
    %1503 = vmatpush1.bf16.msra.mxu0 %v729
    %1504 = vmatprep.subr.bf16.mxu0 %v727
    %1505 = vmatpush1.bf16.msra.mxu0 %v726
    %1506 = vmatprep.subr.bf16.mxu0 %v724
    %1507 = vmatpush1.bf16.msra.mxu0 %v723
    %1508 = vmatprep.subr.bf16.mxu0 0
    %1509 = vmatpush2.bf16.msra.mxu0 0
    %1510 = vmatprep.subr.bf16.mxu0 0
    %1511 = vmatpush2.bf16.msra.mxu0 0
    %1512 = vmatprep.subr.bf16.mxu0 0
    %1513 = vmatpush2.bf16.msra.mxu0 0
    %1514 = vmatprep.subr.bf16.mxu0 0
    %1515 = vmatpush2.bf16.msra.mxu0 0
    %1516 = vmatprep.subr.bf16.mxu0 0
    %1517 = vmatpush2.bf16.msra.mxu0 0
    %1518 = vmatprep.subr.bf16.mxu0 0
    %1519 = vmatpush2.bf16.msra.mxu0 0
    %1520 = vmatprep.subr.bf16.mxu0 0
    %1521 = vmatpush2.bf16.msra.mxu0 0
    %1522 = vmatprep.subr.bf16.mxu0 0
    %1523 = vmatpush2.bf16.msra.mxu0 0
    %1524 = vmatprep.mubr.bf16.mxu0 0
    %1525 = vmatmul.mubr.bf16.gmra.mxu0 %v1491
    %v1526 = vpop.f32.mrf.mxu0
    %v1527 = vadd.f32 %v631, %v1526
    %v1528 = vpop.f32.mrf.mxu0
    %v1529 = vadd.f32 %v635, %v1528
    %v1530 = vpop.f32.mrf.mxu0
    %v1531 = vpop.f32.mrf.mxu0
    %1532 = vdwg.mxu0
    %1533 = vmatprep.subr.bf16.mxu0 0
    %1534 = vmatpush1.bf16.msra.mxu0 %v746
    %1535 = vmatprep.subr.bf16.mxu0 0
    %1536 = vmatpush1.bf16.msra.mxu0 %v743
    %1537 = vmatprep.subr.bf16.mxu0 0
    %1538 = vmatpush1.bf16.msra.mxu0 %v740
    %1539 = vmatprep.subr.bf16.mxu0 0
    %1540 = vmatpush1.bf16.msra.mxu0 %v737
    %1541 = vmatprep.subr.bf16.mxu0 0
    %1542 = vmatpush1.bf16.msra.mxu0 %v734
    %1543 = vmatprep.subr.bf16.mxu0 0
    %1544 = vmatpush1.bf16.msra.mxu0 %v731
    %1545 = vmatprep.subr.bf16.mxu0 0
    %1546 = vmatpush1.bf16.msra.mxu0 %v728
    %1547 = vmatprep.subr.bf16.mxu0 0
    %1548 = vmatpush1.bf16.msra.mxu0 %v725
    %1549 = vmatprep.subr.bf16.mxu0 0
    %1550 = vmatpush2.bf16.msra.mxu0 0
    %1551 = vmatprep.subr.bf16.mxu0 0
    %1552 = vmatpush2.bf16.msra.mxu0 0
    %1553 = vmatprep.subr.bf16.mxu0 0
    %1554 = vmatpush2.bf16.msra.mxu0 0
    %1555 = vmatprep.subr.bf16.mxu0 0
    %1556 = vmatpush2.bf16.msra.mxu0 0
    %1557 = vmatprep.subr.bf16.mxu0 0
    %1558 = vmatpush2.bf16.msra.mxu0 0
    %1559 = vmatprep.subr.bf16.mxu0 0
    %1560 = vmatpush2.bf16.msra.mxu0 0
    %1561 = vmatprep.subr.bf16.mxu0 0
    %1562 = vmatpush2.bf16.msra.mxu0 0
    %1563 = vmatprep.subr.bf16.mxu0 0
    %1564 = vmatpush2.bf16.msra.mxu0 0
    %1565 = vmatprep.mubr.bf16.mxu0 0
    %1566 = vmatmul.mubr.bf16.gmra.mxu0 %v1491
    %v1567 = vpop.f32.mrf.mxu0
    %v1568 = vadd.f32 %v639, %v1567
    %v1569 = vpop.f32.mrf.mxu0
    %v1570 = vpop.f32.mrf.mxu0
    %v1571 = vpop.f32.mrf.mxu0
    %1572 = vdwg.mxu0
    %v1573 = vadd.f32 %v558, %v1527
    %v1574 = vxor.u32 %v1573, 2147483648
    %v1575 = vmul.f32 %v1574, 1.442695
    %v1576 = vpow.pop %v1575
    %v1577 = vadd.f32 %v1576, 1.0
    %v1578 = vrcp.pop %v1577
    %v1579 = vmul.f32 1.0, %v1578
    %v1580 = vadd.f32 %v560, %v1529
    %v1581 = vxor.u32 %v1580, 2147483648
    %v1582 = vmul.f32 %v1581, 1.442695
    %v1583 = vpow.pop %v1582
    %v1584 = vadd.f32 %v1583, 1.0
    %v1585 = vrcp.pop %v1584
    %v1586 = vmul.f32 1.0, %v1585
    %v1587 = vmul.f32 %v1579, %v1568
    %v1588 = vadd.f32 %v624, %v1587
    %v1589 = vtanh.pop %v1588
    %v1590 = vsub.f32 1.0, %v1586
    %v1591 = vmul.f32 %v1590, %v1589
    %v1592 = vmul.f32 %v1586, %v1490
    %v1593 = vadd.f32 %v1591, %v1592
    %1594 = vst [vmem:[#allocation17] sm:$0xff] 0.0
    %v1595 = vlaneseq
    %v1596 = vand.u32 %v1595, 127
    %vm1597 = vcmp.lt.s32.totalorder %v1596, 16
    %v1598 = vld [vmem:[#allocation8] sm:$0xf]
    %v1599 = vunpack.c.l.bf16 %v1598
    %1600 = vst [vmem:[#allocation2] sm:$0xff] %v1599
    %v1601 = vld [vmem:[#allocation2] sm:$0xff]
    %v1602 = vpack.c.bf16 %v1601, %v1601
    %v1603 = vpack.c.bf16 %v1593, %v1593
    %v1605 = vlaneseq
    %v1606 = vshrl.u32 %v1605, 7
    %v1607 = vsub.s32 0, %v1606
    %v1608 = vrot.slane %v262, %v1607
    %v1609 = vlaneseq
    %v1610 = vshrl.u32 %v1609, 7
    %v1611 = vsub.s32 1, %v1610
    %v1612 = vrot.slane %v262, %v1611
    %v1613 = vlaneseq
    %v1614 = vshrl.u32 %v1613, 7
    %v1615 = vsub.s32 2, %v1614
    %v1616 = vrot.slane %v262, %v1615
    %v1617 = vlaneseq
    %v1618 = vshrl.u32 %v1617, 7
    %v1619 = vsub.s32 3, %v1618
    %v1620 = vrot.slane %v262, %v1619
    %v1689 = vunpack.c.l.b16 %v198
    %v1690 = vunpack.c.h.b16 %v198
    %v1691 = vunpack.c.l.b16 %v199
    %v1692 = vunpack.c.h.b16 %v199
    %v1693 = vunpack.c.l.b16 %v200
    %v1694 = vunpack.c.h.b16 %v200
    %v1695 = vunpack.c.l.b16 %v201
    %v1696 = vunpack.c.h.b16 %v201
    %v1697 = vunpack.c.l.b16 %v202
    %v1698 = vunpack.c.h.b16 %v202
    %v1699 = vunpack.c.l.b16 %v203
    %v1700 = vunpack.c.h.b16 %v203
    %v1701 = vunpack.c.l.b16 %v204
    %v1702 = vunpack.c.h.b16 %v204
    %v1703 = vunpack.c.l.b16 %v205
    %v1704 = vunpack.c.h.b16 %v205
    %v1705 = vunpack.c.l.b16 %v206
    %v1706 = vunpack.c.h.b16 %v206
    %v1707 = vunpack.c.l.b16 %v207
    %v1708 = vunpack.c.h.b16 %v207
    %v1709 = vunpack.c.l.b16 %v208
    %v1710 = vunpack.c.h.b16 %v208
    %v1711 = vunpack.c.l.b16 %v209
    %v1712 = vunpack.c.h.b16 %v209
    %v1713 = vunpack.c.l.b16 %v210
    %v1714 = vunpack.c.h.b16 %v210
    %v1715 = vunpack.c.l.b16 %v211
    %v1716 = vunpack.c.h.b16 %v211
    %v1717 = vunpack.c.l.b16 %v212
    %v1718 = vunpack.c.h.b16 %v212
    %v1719 = vunpack.c.l.b16 %v213
    %v1720 = vunpack.c.h.b16 %v213
    %v1721 = vunpack.c.l.b16 %v214
    %v1722 = vunpack.c.h.b16 %v214
    %v1723 = vunpack.c.l.b16 %v215
    %v1724 = vunpack.c.h.b16 %v215
    %v1725 = vunpack.c.l.b16 %v216
    %v1726 = vunpack.c.h.b16 %v216
    %v1727 = vunpack.c.l.b16 %v217
    %v1728 = vunpack.c.h.b16 %v217
    %v1729 = vunpack.c.l.b16 %v218
    %v1730 = vunpack.c.h.b16 %v218
    %v1731 = vunpack.c.l.b16 %v219
    %v1732 = vunpack.c.h.b16 %v219
    %v1733 = vunpack.c.l.b16 %v220
    %v1734 = vunpack.c.h.b16 %v220
    %v1735 = vunpack.c.l.b16 %v221
    %v1736 = vunpack.c.h.b16 %v221
    %v1737 = vunpack.c.l.b16 %v222
    %v1738 = vunpack.c.h.b16 %v222
    %v1739 = vunpack.c.l.b16 %v223
    %v1740 = vunpack.c.h.b16 %v223
    %v1741 = vunpack.c.l.b16 %v224
    %v1742 = vunpack.c.h.b16 %v224
    %v1743 = vunpack.c.l.b16 %v225
    %v1744 = vunpack.c.h.b16 %v225
    %v1745 = vunpack.c.l.b16 %v226
    %v1746 = vunpack.c.h.b16 %v226
    %v1747 = vunpack.c.l.b16 %v227
    %v1748 = vunpack.c.h.b16 %v227
    %v1749 = vunpack.c.l.b16 %v228
    %v1750 = vunpack.c.h.b16 %v228
    %v1751 = vunpack.c.l.b16 %v229
    %v1752 = vunpack.c.h.b16 %v229
    %v1753 = vunpack.c.l.b16 %v230
    %v1754 = vunpack.c.h.b16 %v230
    %v1755 = vunpack.c.l.b16 %v231
    %v1756 = vunpack.c.h.b16 %v231
    %v1757 = vunpack.c.l.b16 %v232
    %v1758 = vunpack.c.h.b16 %v232
    %v1759 = vunpack.c.l.b16 %v233
    %v1760 = vunpack.c.h.b16 %v233
    %v1761 = vunpack.c.l.b16 %v234
    %v1762 = vunpack.c.h.b16 %v234
    %v1763 = vunpack.c.l.b16 %v235
    %v1764 = vunpack.c.h.b16 %v235
    %v1765 = vunpack.c.l.b16 %v236
    %v1766 = vunpack.c.h.b16 %v236
    %v1767 = vunpack.c.l.b16 %v237
    %v1768 = vunpack.c.h.b16 %v237
    %v1769 = vunpack.c.l.b16 %v238
    %v1770 = vunpack.c.h.b16 %v238
    %v1771 = vunpack.c.l.b16 %v239
    %v1772 = vunpack.c.h.b16 %v239
    %v1773 = vunpack.c.l.b16 %v240
    %v1774 = vunpack.c.h.b16 %v240
    %v1775 = vunpack.c.l.b16 %v241
    %v1776 = vunpack.c.h.b16 %v241
    %v1777 = vunpack.c.l.b16 %v242
    %v1778 = vunpack.c.h.b16 %v242
    %v1779 = vunpack.c.l.b16 %v243
    %v1780 = vunpack.c.h.b16 %v243
    %v1781 = vunpack.c.l.b16 %v244
    %v1782 = vunpack.c.h.b16 %v244
    %v1783 = vunpack.c.l.b16 %v245
    %v1784 = vunpack.c.h.b16 %v245
    %v1785 = vunpack.c.l.b16 %v246
    %v1786 = vunpack.c.h.b16 %v246
    %v1787 = vunpack.c.l.b16 %v247
    %v1788 = vunpack.c.h.b16 %v247
    %v1789 = vunpack.c.l.b16 %v248
    %v1790 = vunpack.c.h.b16 %v248
    %v1791 = vunpack.c.l.b16 %v249
    %v1792 = vunpack.c.h.b16 %v249
    %v1793 = vunpack.c.l.b16 %v250
    %v1794 = vunpack.c.h.b16 %v250
    %v1795 = vunpack.c.l.b16 %v251
    %v1796 = vunpack.c.h.b16 %v251
    %v1797 = vunpack.c.l.b16 %v252
    %v1798 = vunpack.c.h.b16 %v252
    %v1799 = vunpack.c.l.b16 %v253
    %v1800 = vunpack.c.h.b16 %v253
    %v1801 = vunpack.c.l.b16 %v254
    %v1802 = vunpack.c.h.b16 %v254
    %v1803 = vunpack.c.l.b16 %v255
    %v1804 = vunpack.c.h.b16 %v255
    %v1805 = vunpack.c.l.b16 %v256
    %v1806 = vunpack.c.h.b16 %v256
    %v1807 = vunpack.c.l.b16 %v257
    %v1808 = vunpack.c.h.b16 %v257
    %v1809 = vunpack.c.l.b16 %v258
    %v1810 = vunpack.c.h.b16 %v258
    %v1811 = vunpack.c.l.b16 %v259
    %v1812 = vunpack.c.h.b16 %v259
    %v1813 = vunpack.c.l.b16 %v260
    %v1814 = vunpack.c.h.b16 %v260
    %v1815 = vunpack.c.l.b16 %v261
    %v1816 = vunpack.c.h.b16 %v261
    %v1817 = vpack.c.b16 %v1693, %v1689
    %v1818 = vpack.c.b16 %v1694, %v1690
    %v1819 = vpack.c.b16 %v1695, %v1691
    %v1820 = vpack.c.b16 %v1696, %v1692
    %v1821 = vpack.c.b16 %v1701, %v1697
    %v1822 = vpack.c.b16 %v1702, %v1698
    %v1823 = vpack.c.b16 %v1703, %v1699
    %v1824 = vpack.c.b16 %v1704, %v1700
    %v1825 = vpack.c.b16 %v1709, %v1705
    %v1826 = vpack.c.b16 %v1710, %v1706
    %v1827 = vpack.c.b16 %v1711, %v1707
    %v1828 = vpack.c.b16 %v1712, %v1708
    %v1829 = vpack.c.b16 %v1717, %v1713
    %v1830 = vpack.c.b16 %v1718, %v1714
    %v1831 = vpack.c.b16 %v1719, %v1715
    %v1832 = vpack.c.b16 %v1720, %v1716
    %v1833 = vpack.c.b16 %v1725, %v1721
    %v1834 = vpack.c.b16 %v1726, %v1722
    %v1835 = vpack.c.b16 %v1727, %v1723
    %v1836 = vpack.c.b16 %v1728, %v1724
    %v1837 = vpack.c.b16 %v1733, %v1729
    %v1838 = vpack.c.b16 %v1734, %v1730
    %v1839 = vpack.c.b16 %v1735, %v1731
    %v1840 = vpack.c.b16 %v1736, %v1732
    %v1841 = vpack.c.b16 %v1741, %v1737
    %v1842 = vpack.c.b16 %v1742, %v1738
    %v1843 = vpack.c.b16 %v1743, %v1739
    %v1844 = vpack.c.b16 %v1744, %v1740
    %v1845 = vpack.c.b16 %v1749, %v1745
    %v1846 = vpack.c.b16 %v1750, %v1746
    %v1847 = vpack.c.b16 %v1751, %v1747
    %v1848 = vpack.c.b16 %v1752, %v1748
    %v1849 = vpack.c.b16 %v1757, %v1753
    %v1850 = vpack.c.b16 %v1758, %v1754
    %v1851 = vpack.c.b16 %v1759, %v1755
    %v1852 = vpack.c.b16 %v1760, %v1756
    %v1853 = vpack.c.b16 %v1765, %v1761
    %v1854 = vpack.c.b16 %v1766, %v1762
    %v1855 = vpack.c.b16 %v1767, %v1763
    %v1856 = vpack.c.b16 %v1768, %v1764
    %v1857 = vpack.c.b16 %v1773, %v1769
    %v1858 = vpack.c.b16 %v1774, %v1770
    %v1859 = vpack.c.b16 %v1775, %v1771
    %v1860 = vpack.c.b16 %v1776, %v1772
    %v1861 = vpack.c.b16 %v1781, %v1777
    %v1862 = vpack.c.b16 %v1782, %v1778
    %v1863 = vpack.c.b16 %v1783, %v1779
    %v1864 = vpack.c.b16 %v1784, %v1780
    %v1865 = vpack.c.b16 %v1789, %v1785
    %v1866 = vpack.c.b16 %v1790, %v1786
    %v1867 = vpack.c.b16 %v1791, %v1787
    %v1868 = vpack.c.b16 %v1792, %v1788
    %v1869 = vpack.c.b16 %v1797, %v1793
    %v1870 = vpack.c.b16 %v1798, %v1794
    %v1871 = vpack.c.b16 %v1799, %v1795
    %v1872 = vpack.c.b16 %v1800, %v1796
    %v1873 = vpack.c.b16 %v1805, %v1801
    %v1874 = vpack.c.b16 %v1806, %v1802
    %v1875 = vpack.c.b16 %v1807, %v1803
    %v1876 = vpack.c.b16 %v1808, %v1804
    %v1877 = vpack.c.b16 %v1813, %v1809
    %v1878 = vpack.c.b16 %v1814, %v1810
    %v1879 = vpack.c.b16 %v1815, %v1811
    %v1880 = vpack.c.b16 %v1816, %v1812
    %1945 = vmatprep.subr.bf16.mxu0 %v1846
    %1946 = vmatpush1.bf16.msra.mxu0 %v1845
    %1947 = vmatprep.subr.bf16.mxu0 %v1842
    %1948 = vmatpush1.bf16.msra.mxu0 %v1841
    %1949 = vmatprep.subr.bf16.mxu0 %v1838
    %1950 = vmatpush1.bf16.msra.mxu0 %v1837
    %1951 = vmatprep.subr.bf16.mxu0 %v1834
    %1952 = vmatpush1.bf16.msra.mxu0 %v1833
    %1953 = vmatprep.subr.bf16.mxu0 %v1830
    %1954 = vmatpush1.bf16.msra.mxu0 %v1829
    %1955 = vmatprep.subr.bf16.mxu0 %v1826
    %1956 = vmatpush1.bf16.msra.mxu0 %v1825
    %1957 = vmatprep.subr.bf16.mxu0 %v1822
    %1958 = vmatpush1.bf16.msra.mxu0 %v1821
    %1959 = vmatprep.subr.bf16.mxu0 %v1818
    %1960 = vmatpush1.bf16.msra.mxu0 %v1817
    %1961 = vmatprep.subr.bf16.mxu0 %v1878
    %1962 = vmatpush2.bf16.msra.mxu0 %v1877
    %1963 = vmatprep.subr.bf16.mxu0 %v1874
    %1964 = vmatpush2.bf16.msra.mxu0 %v1873
    %1965 = vmatprep.subr.bf16.mxu0 %v1870
    %1966 = vmatpush2.bf16.msra.mxu0 %v1869
    %1967 = vmatprep.subr.bf16.mxu0 %v1866
    %1968 = vmatpush2.bf16.msra.mxu0 %v1865
    %1969 = vmatprep.subr.bf16.mxu0 %v1862
    %1970 = vmatpush2.bf16.msra.mxu0 %v1861
    %1971 = vmatprep.subr.bf16.mxu0 %v1858
    %1972 = vmatpush2.bf16.msra.mxu0 %v1857
    %1973 = vmatprep.subr.bf16.mxu0 %v1854
    %1974 = vmatpush2.bf16.msra.mxu0 %v1853
    %1975 = vmatprep.subr.bf16.mxu0 %v1850
    %1976 = vmatpush2.bf16.msra.mxu0 %v1849
    %1977 = vmatprep.mubr.bf16.mxu0 %v1603
    %1978 = vmatmul.mubr.bf16.gmra.mxu0 %v1602
    %v1979 = vpop.f32.mrf.mxu0
    %v1980 = vadd.f32 %v1608, %v1979
    %v1981 = vpop.f32.mrf.mxu0
    %v1982 = vadd.f32 %v1612, %v1981
    %v1983 = vpop.f32.mrf.mxu0
    %v1984 = vpop.f32.mrf.mxu0
    %1985 = vdwg.mxu0
    %1986 = vmatprep.subr.bf16.mxu0 %v1848
    %1987 = vmatpush1.bf16.msra.mxu0 %v1847
    %1988 = vmatprep.subr.bf16.mxu0 %v1844
    %1989 = vmatpush1.bf16.msra.mxu0 %v1843
    %1990 = vmatprep.subr.bf16.mxu0 %v1840
    %1991 = vmatpush1.bf16.msra.mxu0 %v1839
    %1992 = vmatprep.subr.bf16.mxu0 %v1836
    %1993 = vmatpush1.bf16.msra.mxu0 %v1835
    %1994 = vmatprep.subr.bf16.mxu0 %v1832
    %1995 = vmatpush1.bf16.msra.mxu0 %v1831
    %1996 = vmatprep.subr.bf16.mxu0 %v1828
    %1997 = vmatpush1.bf16.msra.mxu0 %v1827
    %1998 = vmatprep.subr.bf16.mxu0 %v1824
    %1999 = vmatpush1.bf16.msra.mxu0 %v1823
    %2000 = vmatprep.subr.bf16.mxu0 %v1820
    %2001 = vmatpush1.bf16.msra.mxu0 %v1819
    %2002 = vmatprep.subr.bf16.mxu0 %v1880
    %2003 = vmatpush2.bf16.msra.mxu0 %v1879
    %2004 = vmatprep.subr.bf16.mxu0 %v1876
    %2005 = vmatpush2.bf16.msra.mxu0 %v1875
    %2006 = vmatprep.subr.bf16.mxu0 %v1872
    %2007 = vmatpush2.bf16.msra.mxu0 %v1871
    %2008 = vmatprep.subr.bf16.mxu0 %v1868
    %2009 = vmatpush2.bf16.msra.mxu0 %v1867
    %2010 = vmatprep.subr.bf16.mxu0 %v1864
    %2011 = vmatpush2.bf16.msra.mxu0 %v1863
    %2012 = vmatprep.subr.bf16.mxu0 %v1860
    %2013 = vmatpush2.bf16.msra.mxu0 %v1859
    %2014 = vmatprep.subr.bf16.mxu0 %v1856
    %2015 = vmatpush2.bf16.msra.mxu0 %v1855
    %2016 = vmatprep.subr.bf16.mxu0 %v1852
    %2017 = vmatpush2.bf16.msra.mxu0 %v1851
    %2018 = vmatprep.mubr.bf16.mxu0 %v1603
    %2019 = vmatmul.mubr.bf16.gmra.mxu0 %v1602
    %v2020 = vpop.f32.mrf.mxu0
    %v2021 = vadd.f32 %v1616, %v2020
    %v2022 = vpop.f32.mrf.mxu0
    %v2023 = vadd.f32 %v1620, %v2022
    %v2024 = vpop.f32.mrf.mxu0
    %v2025 = vpop.f32.mrf.mxu0
    %2026 = vdwg.mxu0
    %v2027 = vxor.u32 %v1980, 2147483648
    %v2028 = vmul.f32 %v2027, 1.442695
    %v2029 = vpow.pop %v2028
    %v2030 = vadd.f32 %v2029, 1.0
    %v2031 = vrcp.pop %v2030
    %v2032 = vmul.f32 1.0, %v2031
    %v2033 = vxor.u32 %v1982, 2147483648
    %v2034 = vmul.f32 %v2033, 1.442695
    %v2035 = vpow.pop %v2034
    %v2036 = vadd.f32 %v2035, 1.0
    %v2037 = vrcp.pop %v2036
    %v2038 = vmul.f32 1.0, %v2037
    %v2039 = vmul.f32 %v2032, %v2023
    %v2040 = vadd.f32 %v2021, %v2039
    %v2041 = vtanh.pop %v2040
    %v2042 = vsub.f32 1.0, %v2038
    %v2043 = vmul.f32 %v2042, %v2041
    %v2044 = vmul.f32 %v2038, %v1593
    %v2045 = vadd.f32 %v2043, %v2044
    %v2046 = vpack.c.bf16 %v2045, %v2045
    %v2048 = vlaneseq
    %v2049 = vshrl.u32 %v2048, 7
    %v2050 = vsub.s32 0, %v2049
    %v2051 = vrot.slane %v279, %v2050
    %v2069 = vunpack.c.l.b16 %v263
    %v2070 = vunpack.c.l.b16 %v264
    %v2071 = vunpack.c.l.b16 %v265
    %v2072 = vunpack.c.l.b16 %v266
    %v2073 = vunpack.c.l.b16 %v267
    %v2074 = vunpack.c.l.b16 %v268
    %v2075 = vunpack.c.l.b16 %v269
    %v2076 = vunpack.c.l.b16 %v270
    %v2077 = vunpack.c.l.b16 %v271
    %v2078 = vunpack.c.l.b16 %v272
    %v2079 = vunpack.c.l.b16 %v273
    %v2080 = vunpack.c.l.b16 %v274
    %v2081 = vunpack.c.l.b16 %v275
    %v2082 = vunpack.c.l.b16 %v276
    %v2083 = vunpack.c.l.b16 %v277
    %v2084 = vunpack.c.l.b16 %v278
    %v2085 = vpack.c.b16 %v2070, %v2069
    %v2086 = vpack.c.b16 %v2072, %v2071
    %v2087 = vpack.c.b16 %v2074, %v2073
    %v2088 = vpack.c.b16 %v2076, %v2075
    %v2089 = vpack.c.b16 %v2078, %v2077
    %v2090 = vpack.c.b16 %v2080, %v2079
    %v2091 = vpack.c.b16 %v2082, %v2081
    %v2092 = vpack.c.b16 %v2084, %v2083
    %2101 = vmatprep.subr.bf16.mxu0 0
    %2102 = vmatpush1.bf16.msra.mxu0 %v2092
    %2103 = vmatprep.subr.bf16.mxu0 0
    %2104 = vmatpush1.bf16.msra.mxu0 %v2091
    %2105 = vmatprep.subr.bf16.mxu0 0
    %2106 = vmatpush1.bf16.msra.mxu0 %v2090
    %2107 = vmatprep.subr.bf16.mxu0 0
    %2108 = vmatpush1.bf16.msra.mxu0 %v2089
    %2109 = vmatprep.subr.bf16.mxu0 0
    %2110 = vmatpush1.bf16.msra.mxu0 %v2088
    %2111 = vmatprep.subr.bf16.mxu0 0
    %2112 = vmatpush1.bf16.msra.mxu0 %v2087
    %2113 = vmatprep.subr.bf16.mxu0 0
    %2114 = vmatpush1.bf16.msra.mxu0 %v2086
    %2115 = vmatprep.subr.bf16.mxu0 0
    %2116 = vmatpush1.bf16.msra.mxu0 %v2085
    %2117 = vmatprep.subr.bf16.mxu0 0
    %2118 = vmatpush2.bf16.msra.mxu0 0
    %2119 = vmatprep.subr.bf16.mxu0 0
    %2120 = vmatpush2.bf16.msra.mxu0 0
    %2121 = vmatprep.subr.bf16.mxu0 0
    %2122 = vmatpush2.bf16.msra.mxu0 0
    %2123 = vmatprep.subr.bf16.mxu0 0
    %2124 = vmatpush2.bf16.msra.mxu0 0
    %2125 = vmatprep.subr.bf16.mxu0 0
    %2126 = vmatpush2.bf16.msra.mxu0 0
    %2127 = vmatprep.subr.bf16.mxu0 0
    %2128 = vmatpush2.bf16.msra.mxu0 0
    %2129 = vmatprep.subr.bf16.mxu0 0
    %2130 = vmatpush2.bf16.msra.mxu0 0
    %2131 = vmatprep.subr.bf16.mxu0 0
    %2132 = vmatpush2.bf16.msra.mxu0 0
    %2133 = vmatprep.mubr.bf16.mxu0 0
    %2134 = vmatmul.mubr.bf16.gmra.mxu0 %v2046
    %v2135 = vpop.f32.mrf.mxu0
    %v2136 = vadd.f32 %v2051, %v2135
    %v2137 = vpop.f32.mrf.mxu0
    %v2138 = vpop.f32.mrf.mxu0
    %v2139 = vpop.f32.mrf.mxu0
    %2140 = vdwg.mxu0
    %s2141 = scalar_lea.vmem [#allocation17], 8
    %2142 = vst [vmem:[%s2141] sm:$0xff] %v2136
    %s2143 = sld [smem:[#allocation3 + $0x1]]
    %p2144 = scmp.eq.s32.totalorder %s2143, 1
    // Predicated region
    $region82: #{tpu_custom_call.1} parent=1 // pred_check
      %p2145 = pneg %p2144
    $region83: #{tpu_custom_call.1} parent=1 // pred_check_branch
      %2147 = sbr.rel (%p2145) target = $region85
    $region84: #{tpu_custom_call.1} parent=1 // pred_region
      %v2148 = vld [vmem:[#allocation8 + $0x4] sm:$0xf]
      %v2149 = vunpack.c.l.bf16 %v2148
      %2150 = vst [vmem:[#allocation2] sm:$0xff] %v2149
    $region85: #{tpu_custom_call.1} parent=1 // pred_fallthru
      _
    %p2151 = scmp.eq.s32.totalorder %s2143, 0
    // Predicated region
    $region86: #{tpu_custom_call.1} parent=1 // pred_check
      %p2152 = pneg %p2151
    $region87: #{tpu_custom_call.1} parent=1 // pred_check_branch
      %2154 = sbr.rel (%p2152) target = $region89
    $region88: #{tpu_custom_call.1} parent=1 // pred_region
      %v2155 = vsel %vm1597, %v2136, -1e+30
      %2156 = vmax.xlane.f32.xlu0 %v2155
      %v2157 = vpop.xlane.xlu0 %2156
      %vm2158 = vcmp.eq.f32.partialorder %v2155, %v2157
      %v2159 = vsel %vm2158, %v1596, 128
      %v2160 = vand.u32 %v2159, 65535
      %v2161 = vshra.s32 %v2159, 16
      %v2162 = vcvt.s32.f32 %v2160
      %v2163 = vcvt.s32.f32 %v2161
      %2164 = vmin.xlane.f32.xlu0 %v2163
      %v2165 = vpop.xlane.xlu0 %2164
      %vm2166 = vcmp.eq.f32.partialorder %v2163, %v2165
      %v2167 = vsel %vm2166, %v2162, inf
      %2168 = vmin.xlane.f32.xlu0 %v2167
      %v2169 = vpop.xlane.xlu0 %2168
      %v2170 = vcvt.f32.s32 %v2169
      %v2171 = vcvt.f32.s32 %v2165
      %v2172 = vshll.u32 %v2171, 16
      %v2173 = vadd.s32 %v2172, %v2170
      %vm2174 = vcmp.eq.s32.totalorder %v1596, %v2173
      %v2175 = vsel %vm2174, 1, 0
      %v2176 = vcvt.s32.f32 %v2175
      %v2177 = vpack.c.bf16 %v2176, %v2176
      %v2194 = vunpack.c.l.b16 %v182
      %v2195 = vunpack.c.l.b16 %v183
      %v2196 = vunpack.c.l.b16 %v184
      %v2197 = vunpack.c.l.b16 %v185
      %v2198 = vunpack.c.l.b16 %v186
      %v2199 = vunpack.c.l.b16 %v187
      %v2200 = vunpack.c.l.b16 %v188
      %v2201 = vunpack.c.l.b16 %v189
      %v2202 = vunpack.c.l.b16 %v190
      %v2203 = vunpack.c.l.b16 %v191
      %v2204 = vunpack.c.l.b16 %v192
      %v2205 = vunpack.c.l.b16 %v193
      %v2206 = vunpack.c.l.b16 %v194
      %v2207 = vunpack.c.l.b16 %v195
      %v2208 = vunpack.c.l.b16 %v196
      %v2209 = vunpack.c.l.b16 %v197
      %v2210 = vpack.c.b16 %v2195, %v2194
      %v2211 = vpack.c.b16 %v2197, %v2196
      %v2212 = vpack.c.b16 %v2199, %v2198
      %v2213 = vpack.c.b16 %v2201, %v2200
      %v2214 = vpack.c.b16 %v2203, %v2202
      %v2215 = vpack.c.b16 %v2205, %v2204
      %v2216 = vpack.c.b16 %v2207, %v2206
      %v2217 = vpack.c.b16 %v2209, %v2208
      %2226 = vmatprep.subr.bf16.mxu0 0
      %2227 = vmatpush1.bf16.msra.mxu0 %v2217
      %2228 = vmatprep.subr.bf16.mxu0 0
      %2229 = vmatpush1.bf16.msra.mxu0 %v2216
      %2230 = vmatprep.subr.bf16.mxu0 0
      %2231 = vmatpush1.bf16.msra.mxu0 %v2215
      %2232 = vmatprep.subr.bf16.mxu0 0
      %2233 = vmatpush1.bf16.msra.mxu0 %v2214
      %2234 = vmatprep.subr.bf16.mxu0 0
      %2235 = vmatpush1.bf16.msra.mxu0 %v2213
      %2236 = vmatprep.subr.bf16.mxu0 0
      %2237 = vmatpush1.bf16.msra.mxu0 %v2212
      %2238 = vmatprep.subr.bf16.mxu0 0
      %2239 = vmatpush1.bf16.msra.mxu0 %v2211
      %2240 = vmatprep.subr.bf16.mxu0 0
      %2241 = vmatpush1.bf16.msra.mxu0 %v2210
      %2242 = vmatprep.subr.bf16.mxu0 0
      %2243 = vmatpush2.bf16.msra.mxu0 0
      %2244 = vmatprep.subr.bf16.mxu0 0
      %2245 = vmatpush2.bf16.msra.mxu0 0
      %2246 = vmatprep.subr.bf16.mxu0 0
      %2247 = vmatpush2.bf16.msra.mxu0 0
      %2248 = vmatprep.subr.bf16.mxu0 0
      %2249 = vmatpush2.bf16.msra.mxu0 0
      %2250 = vmatprep.subr.bf16.mxu0 0
      %2251 = vmatpush2.bf16.msra.mxu0 0
      %2252 = vmatprep.subr.bf16.mxu0 0
      %2253 = vmatpush2.bf16.msra.mxu0 0
      %2254 = vmatprep.subr.bf16.mxu0 0
      %2255 = vmatpush2.bf16.msra.mxu0 0
      %2256 = vmatprep.subr.bf16.mxu0 0
      %2257 = vmatpush2.bf16.msra.mxu0 0
      %2258 = vmatprep.mubr.bf16.mxu0 0
      %2259 = vmatmul.mubr.bf16.gmra.mxu0 %v2177
      %v2260 = vpop.f32.mrf.mxu0
      %v2261 = vadd.f32 0.0, %v2260
      %v2262 = vpop.f32.mrf.mxu0
      %v2263 = vpop.f32.mrf.mxu0
      %v2264 = vpop.f32.mrf.mxu0
      %2265 = vdwg.mxu0
      %2266 = vst [vmem:[#allocation2] sm:$0xff] %v2261
    $region89: #{tpu_custom_call.1} parent=1 // pred_fallthru
      _
    %v2267 = vld [vmem:[#allocation2] sm:$0xff]
    %v2268 = vpack.c.bf16 %v2267, %v2267
    %2269 = vmatprep.subr.bf16.mxu0 %v1846
    %2270 = vmatpush1.bf16.msra.mxu0 %v1845
    %2271 = vmatprep.subr.bf16.mxu0 %v1842
    %2272 = vmatpush1.bf16.msra.mxu0 %v1841
    %2273 = vmatprep.subr.bf16.mxu0 %v1838
    %2274 = vmatpush1.bf16.msra.mxu0 %v1837
    %2275 = vmatprep.subr.bf16.mxu0 %v1834
    %2276 = vmatpush1.bf16.msra.mxu0 %v1833
    %2277 = vmatprep.subr.bf16.mxu0 %v1830
    %2278 = vmatpush1.bf16.msra.mxu0 %v1829
    %2279 = vmatprep.subr.bf16.mxu0 %v1826
    %2280 = vmatpush1.bf16.msra.mxu0 %v1825
    %2281 = vmatprep.subr.bf16.mxu0 %v1822
    %2282 = vmatpush1.bf16.msra.mxu0 %v1821
    %2283 = vmatprep.subr.bf16.mxu0 %v1818
    %2284 = vmatpush1.bf16.msra.mxu0 %v1817
    %2285 = vmatprep.subr.bf16.mxu0 %v1878
    %2286 = vmatpush2.bf16.msra.mxu0 %v1877
    %2287 = vmatprep.subr.bf16.mxu0 %v1874
    %2288 = vmatpush2.bf16.msra.mxu0 %v1873
    %2289 = vmatprep.subr.bf16.mxu0 %v1870
    %2290 = vmatpush2.bf16.msra.mxu0 %v1869
    %2291 = vmatprep.subr.bf16.mxu0 %v1866
    %2292 = vmatpush2.bf16.msra.mxu0 %v1865
    %2293 = vmatprep.subr.bf16.mxu0 %v1862
    %2294 = vmatpush2.bf16.msra.mxu0 %v1861
    %2295 = vmatprep.subr.bf16.mxu0 %v1858
    %2296 = vmatpush2.bf16.msra.mxu0 %v1857
    %2297 = vmatprep.subr.bf16.mxu0 %v1854
    %2298 = vmatpush2.bf16.msra.mxu0 %v1853
    %2299 = vmatprep.subr.bf16.mxu0 %v1850
    %2300 = vmatpush2.bf16.msra.mxu0 %v1849
    %2301 = vmatprep.mubr.bf16.mxu0 %v2046
    %2302 = vmatmul.mubr.bf16.gmra.mxu0 %v2268
    %v2303 = vpop.f32.mrf.mxu0
    %v2304 = vadd.f32 %v1608, %v2303
    %v2305 = vpop.f32.mrf.mxu0
    %v2306 = vadd.f32 %v1612, %v2305
    %v2307 = vpop.f32.mrf.mxu0
    %v2308 = vpop.f32.mrf.mxu0
    %2309 = vdwg.mxu0
    %2310 = vmatprep.subr.bf16.mxu0 %v1848
    %2311 = vmatpush1.bf16.msra.mxu0 %v1847
    %2312 = vmatprep.subr.bf16.mxu0 %v1844
    %2313 = vmatpush1.bf16.msra.mxu0 %v1843
    %2314 = vmatprep.subr.bf16.mxu0 %v1840
    %2315 = vmatpush1.bf16.msra.mxu0 %v1839
    %2316 = vmatprep.subr.bf16.mxu0 %v1836
    %2317 = vmatpush1.bf16.msra.mxu0 %v1835
    %2318 = vmatprep.subr.bf16.mxu0 %v1832
    %2319 = vmatpush1.bf16.msra.mxu0 %v1831
    %2320 = vmatprep.subr.bf16.mxu0 %v1828
    %2321 = vmatpush1.bf16.msra.mxu0 %v1827
    %2322 = vmatprep.subr.bf16.mxu0 %v1824
    %2323 = vmatpush1.bf16.msra.mxu0 %v1823
    %2324 = vmatprep.subr.bf16.mxu0 %v1820
    %2325 = vmatpush1.bf16.msra.mxu0 %v1819
    %2326 = vmatprep.subr.bf16.mxu0 %v1880
    %2327 = vmatpush2.bf16.msra.mxu0 %v1879
    %2328 = vmatprep.subr.bf16.mxu0 %v1876
    %2329 = vmatpush2.bf16.msra.mxu0 %v1875
    %2330 = vmatprep.subr.bf16.mxu0 %v1872
    %2331 = vmatpush2.bf16.msra.mxu0 %v1871
    %2332 = vmatprep.subr.bf16.mxu0 %v1868
    %2333 = vmatpush2.bf16.msra.mxu0 %v1867
    %2334 = vmatprep.subr.bf16.mxu0 %v1864
    %2335 = vmatpush2.bf16.msra.mxu0 %v1863
    %2336 = vmatprep.subr.bf16.mxu0 %v1860
    %2337 = vmatpush2.bf16.msra.mxu0 %v1859
    %2338 = vmatprep.subr.bf16.mxu0 %v1856
    %2339 = vmatpush2.bf16.msra.mxu0 %v1855
    %2340 = vmatprep.subr.bf16.mxu0 %v1852
    %2341 = vmatpush2.bf16.msra.mxu0 %v1851
    %2342 = vmatprep.mubr.bf16.mxu0 %v2046
    %2343 = vmatmul.mubr.bf16.gmra.mxu0 %v2268
    %v2344 = vpop.f32.mrf.mxu0
    %v2345 = vadd.f32 %v1616, %v2344
    %v2346 = vpop.f32.mrf.mxu0
    %v2347 = vadd.f32 %v1620, %v2346
    %v2348 = vpop.f32.mrf.mxu0
    %v2349 = vpop.f32.mrf.mxu0
    %2350 = vdwg.mxu0
    %v2351 = vxor.u32 %v2304, 2147483648
    %v2352 = vmul.f32 %v2351, 1.442695
    %v2353 = vpow.pop %v2352
    %v2354 = vadd.f32 %v2353, 1.0
    %v2355 = vrcp.pop %v2354
    %v2356 = vmul.f32 1.0, %v2355
    %v2357 = vxor.u32 %v2306, 2147483648
    %v2358 = vmul.f32 %v2357, 1.442695
    %v2359 = vpow.pop %v2358
    %v2360 = vadd.f32 %v2359, 1.0
    %v2361 = vrcp.pop %v2360
    %v2362 = vmul.f32 1.0, %v2361
    %v2363 = vmul.f32 %v2356, %v2347
    %v2364 = vadd.f32 %v2345, %v2363
    %v2365 = vtanh.pop %v2364
    %v2366 = vsub.f32 1.0, %v2362
    %v2367 = vmul.f32 %v2366, %v2365
    %v2368 = vmul.f32 %v2362, %v2045
    %v2369 = vadd.f32 %v2367, %v2368
    %v2370 = vpack.c.bf16 %v2369, %v2369
    %2371 = vmatprep.subr.bf16.mxu0 0
    %2372 = vmatpush1.bf16.msra.mxu0 %v2092
    %2373 = vmatprep.subr.bf16.mxu0 0
    %2374 = vmatpush1.bf16.msra.mxu0 %v2091
    %2375 = vmatprep.subr.bf16.mxu0 0
    %2376 = vmatpush1.bf16.msra.mxu0 %v2090
    %2377 = vmatprep.subr.bf16.mxu0 0
    %2378 = vmatpush1.bf16.msra.mxu0 %v2089
    %2379 = vmatprep.subr.bf16.mxu0 0
    %2380 = vmatpush1.bf16.msra.mxu0 %v2088
    %2381 = vmatprep.subr.bf16.mxu0 0
    %2382 = vmatpush1.bf16.msra.mxu0 %v2087
    %2383 = vmatprep.subr.bf16.mxu0 0
    %2384 = vmatpush1.bf16.msra.mxu0 %v2086
    %2385 = vmatprep.subr.bf16.mxu0 0
    %2386 = vmatpush1.bf16.msra.mxu0 %v2085
    %2387 = vmatprep.subr.bf16.mxu0 0
    %2388 = vmatpush2.bf16.msra.mxu0 0
    %2389 = vmatprep.subr.bf16.mxu0 0
    %2390 = vmatpush2.bf16.msra.mxu0 0
    %2391 = vmatprep.subr.bf16.mxu0 0
    %2392 = vmatpush2.bf16.msra.mxu0 0
    %2393 = vmatprep.subr.bf16.mxu0 0
    %2394 = vmatpush2.bf16.msra.mxu0 0
    %2395 = vmatprep.subr.bf16.mxu0 0
    %2396 = vmatpush2.bf16.msra.mxu0 0
    %2397 = vmatprep.subr.bf16.mxu0 0
    %2398 = vmatpush2.bf16.msra.mxu0 0
    %2399 = vmatprep.subr.bf16.mxu0 0
    %2400 = vmatpush2.bf16.msra.mxu0 0
    %2401 = vmatprep.subr.bf16.mxu0 0
    %2402 = vmatpush2.bf16.msra.mxu0 0
    %2403 = vmatprep.mubr.bf16.mxu0 0
    %2404 = vmatmul.mubr.bf16.gmra.mxu0 %v2370
    %v2405 = vpop.f32.mrf.mxu0
    %v2406 = vadd.f32 %v2051, %v2405
    %v2407 = vpop.f32.mrf.mxu0
    %v2408 = vpop.f32.mrf.mxu0
    %v2409 = vpop.f32.mrf.mxu0
    %2410 = vdwg.mxu0
    %s2411 = scalar_lea.vmem [#allocation17], 16
    %2412 = vst [vmem:[%s2411] sm:$0xff] %v2406
    %s2413 = sld [smem:[#allocation3 + $0x2]]
    %p2414 = scmp.eq.s32.totalorder %s2413, 1
    // Predicated region
    $region90: #{tpu_custom_call.1} parent=1 // pred_check
      %p2415 = pneg %p2414
    $region91: #{tpu_custom_call.1} parent=1 // pred_check_branch
      %2417 = sbr.rel (%p2415) target = $region93
    $region92: #{tpu_custom_call.1} parent=1 // pred_region
      %v2418 = vld [vmem:[#allocation8 + $0x8] sm:$0xf]
      %v2419 = vunpack.c.l.bf16 %v2418
      %2420 = vst [vmem:[#allocation2] sm:$0xff] %v2419
    $region93: #{tpu_custom_call.1} parent=1 // pred_fallthru
      _
    %p2421 = scmp.eq.s32.totalorder %s2413, 0
    // Predicated region
    $region94: #{tpu_custom_call.1} parent=1 // pred_check
      %p2422 = pneg %p2421
    $region95: #{tpu_custom_call.1} parent=1 // pred_check_branch
      %2424 = sbr.rel (%p2422) target = $region97
    $region96: #{tpu_custom_call.1} parent=1 // pred_region
      %v2425 = vsel %vm1597, %v2406, -1e+30
      %2426 = vmax.xlane.f32.xlu0 %v2425
      %v2427 = vpop.xlane.xlu0 %2426
      %vm2428 = vcmp.eq.f32.partialorder %v2425, %v2427
      %v2429 = vsel %vm2428, %v1596, 128
      %v2430 = vand.u32 %v2429, 65535
      %v2431 = vshra.s32 %v2429, 16
      %v2432 = vcvt.s32.f32 %v2430
      %v2433 = vcvt.s32.f32 %v2431
      %2434 = vmin.xlane.f32.xlu0 %v2433
      %v2435 = vpop.xlane.xlu0 %2434
      %vm2436 = vcmp.eq.f32.partialorder %v2433, %v2435
      %v2437 = vsel %vm2436, %v2432, inf
      %2438 = vmin.xlane.f32.xlu0 %v2437
      %v2439 = vpop.xlane.xlu0 %2438
      %v2440 = vcvt.f32.s32 %v2439
      %v2441 = vcvt.f32.s32 %v2435
      %v2442 = vshll.u32 %v2441, 16
      %v2443 = vadd.s32 %v2442, %v2440
      %vm2444 = vcmp.eq.s32.totalorder %v1596, %v2443
      %v2445 = vsel %vm2444, 1, 0
      %v2446 = vcvt.s32.f32 %v2445
      %v2447 = vpack.c.bf16 %v2446, %v2446
      %v2464 = vunpack.c.l.b16 %v182
      %v2465 = vunpack.c.l.b16 %v183
      %v2466 = vunpack.c.l.b16 %v184
      %v2467 = vunpack.c.l.b16 %v185
      %v2468 = vunpack.c.l.b16 %v186
      %v2469 = vunpack.c.l.b16 %v187
      %v2470 = vunpack.c.l.b16 %v188
      %v2471 = vunpack.c.l.b16 %v189
      %v2472 = vunpack.c.l.b16 %v190
      %v2473 = vunpack.c.l.b16 %v191
      %v2474 = vunpack.c.l.b16 %v192
      %v2475 = vunpack.c.l.b16 %v193
      %v2476 = vunpack.c.l.b16 %v194
      %v2477 = vunpack.c.l.b16 %v195
      %v2478 = vunpack.c.l.b16 %v196
      %v2479 = vunpack.c.l.b16 %v197
      %v2480 = vpack.c.b16 %v2465, %v2464
      %v2481 = vpack.c.b16 %v2467, %v2466
      %v2482 = vpack.c.b16 %v2469, %v2468
      %v2483 = vpack.c.b16 %v2471, %v2470
      %v2484 = vpack.c.b16 %v2473, %v2472
      %v2485 = vpack.c.b16 %v2475, %v2474
      %v2486 = vpack.c.b16 %v2477, %v2476
      %v2487 = vpack.c.b16 %v2479, %v2478
      %2496 = vmatprep.subr.bf16.mxu0 0
      %2497 = vmatpush1.bf16.msra.mxu0 %v2487
      %2498 = vmatprep.subr.bf16.mxu0 0
      %2499 = vmatpush1.bf16.msra.mxu0 %v2486
      %2500 = vmatprep.subr.bf16.mxu0 0
      %2501 = vmatpush1.bf16.msra.mxu0 %v2485
      %2502 = vmatprep.subr.bf16.mxu0 0
      %2503 = vmatpush1.bf16.msra.mxu0 %v2484
      %2504 = vmatprep.subr.bf16.mxu0 0
      %2505 = vmatpush1.bf16.msra.mxu0 %v2483
      %2506 = vmatprep.subr.bf16.mxu0 0
      %2507 = vmatpush1.bf16.msra.mxu0 %v2482
      %2508 = vmatprep.subr.bf16.mxu0 0
      %2509 = vmatpush1.bf16.msra.mxu0 %v2481
      %2510 = vmatprep.subr.bf16.mxu0 0
      %2511 = vmatpush1.bf16.msra.mxu0 %v2480
      %2512 = vmatprep.subr.bf16.mxu0 0
      %2513 = vmatpush2.bf16.msra.mxu0 0
      %2514 = vmatprep.subr.bf16.mxu0 0
      %2515 = vmatpush2.bf16.msra.mxu0 0
      %2516 = vmatprep.subr.bf16.mxu0 0
      %2517 = vmatpush2.bf16.msra.mxu0 0
      %2518 = vmatprep.subr.bf16.mxu0 0
      %2519 = vmatpush2.bf16.msra.mxu0 0
      %2520 = vmatprep.subr.bf16.mxu0 0
      %2521 = vmatpush2.bf16.msra.mxu0 0
      %2522 = vmatprep.subr.bf16.mxu0 0
      %2523 = vmatpush2.bf16.msra.mxu0 0
      %2524 = vmatprep.subr.bf16.mxu0 0
      %2525 = vmatpush2.bf16.msra.mxu0 0
      %2526 = vmatprep.subr.bf16.mxu0 0
      %2527 = vmatpush2.bf16.msra.mxu0 0
      %2528 = vmatprep.mubr.bf16.mxu0 0
      %2529 = vmatmul.mubr.bf16.gmra.mxu0 %v2447
      %v2530 = vpop.f32.mrf.mxu0
      %v2531 = vadd.f32 0.0, %v2530
      %v2532 = vpop.f32.mrf.mxu0
      %v2533 = vpop.f32.mrf.mxu0
      %v2534 = vpop.f32.mrf.mxu0
      %2535 = vdwg.mxu0
      %2536 = vst [vmem:[#allocation2] sm:$0xff] %v2531
    $region97: #{tpu_custom_call.1} parent=1 // pred_fallthru
      _
    %v2537 = vld [vmem:[#allocation2] sm:$0xff]
    %v2538 = vpack.c.bf16 %v2537, %v2537
    %2539 = vmatprep.subr.bf16.mxu0 %v1846
    %2540 = vmatpush1.bf16.msra.mxu0 %v1845
    %2541 = vmatprep.subr.bf16.mxu0 %v1842
    %2542 = vmatpush1.bf16.msra.mxu0 %v1841
    %2543 = vmatprep.subr.bf16.mxu0 %v1838
    %2544 = vmatpush1.bf16.msra.mxu0 %v1837
    %2545 = vmatprep.subr.bf16.mxu0 %v1834
    %2546 = vmatpush1.bf16.msra.mxu0 %v1833
    %2547 = vmatprep.subr.bf16.mxu0 %v1830
    %2548 = vmatpush1.bf16.msra.mxu0 %v1829
    %2549 = vmatprep.subr.bf16.mxu0 %v1826
    %2550 = vmatpush1.bf16.msra.mxu0 %v1825
    %2551 = vmatprep.subr.bf16.mxu0 %v1822
    %2552 = vmatpush1.bf16.msra.mxu0 %v1821
    %2553 = vmatprep.subr.bf16.mxu0 %v1818
    %2554 = vmatpush1.bf16.msra.mxu0 %v1817
    %2555 = vmatprep.subr.bf16.mxu0 %v1878
    %2556 = vmatpush2.bf16.msra.mxu0 %v1877
    %2557 = vmatprep.subr.bf16.mxu0 %v1874
    %2558 = vmatpush2.bf16.msra.mxu0 %v1873
    %2559 = vmatprep.subr.bf16.mxu0 %v1870
    %2560 = vmatpush2.bf16.msra.mxu0 %v1869
    %2561 = vmatprep.subr.bf16.mxu0 %v1866
    %2562 = vmatpush2.bf16.msra.mxu0 %v1865
    %2563 = vmatprep.subr.bf16.mxu0 %v1862
    %2564 = vmatpush2.bf16.msra.mxu0 %v1861
    %2565 = vmatprep.subr.bf16.mxu0 %v1858
    %2566 = vmatpush2.bf16.msra.mxu0 %v1857
    %2567 = vmatprep.subr.bf16.mxu0 %v1854
    %2568 = vmatpush2.bf16.msra.mxu0 %v1853
    %2569 = vmatprep.subr.bf16.mxu0 %v1850
    %2570 = vmatpush2.bf16.msra.mxu0 %v1849
    %2571 = vmatprep.mubr.bf16.mxu0 %v2370
    %2572 = vmatmul.mubr.bf16.gmra.mxu0 %v2538
    %v2573 = vpop.f32.mrf.mxu0
    %v2574 = vadd.f32 %v1608, %v2573
    %v2575 = vpop.f32.mrf.mxu0
    %v2576 = vadd.f32 %v1612, %v2575
    %v2577 = vpop.f32.mrf.mxu0
    %v2578 = vpop.f32.mrf.mxu0
    %2579 = vdwg.mxu0
    %2580 = vmatprep.subr.bf16.mxu0 %v1848
    %2581 = vmatpush1.bf16.msra.mxu0 %v1847
    %2582 = vmatprep.subr.bf16.mxu0 %v1844
    %2583 = vmatpush1.bf16.msra.mxu0 %v1843
    %2584 = vmatprep.subr.bf16.mxu0 %v1840
    %2585 = vmatpush1.bf16.msra.mxu0 %v1839
    %2586 = vmatprep.subr.bf16.mxu0 %v1836
    %2587 = vmatpush1.bf16.msra.mxu0 %v1835
    %2588 = vmatprep.subr.bf16.mxu0 %v1832
    %2589 = vmatpush1.bf16.msra.mxu0 %v1831
    %2590 = vmatprep.subr.bf16.mxu0 %v1828
    %2591 = vmatpush1.bf16.msra.mxu0 %v1827
    %2592 = vmatprep.subr.bf16.mxu0 %v1824
    %2593 = vmatpush1.bf16.msra.mxu0 %v1823
    %2594 = vmatprep.subr.bf16.mxu0 %v1820
    %2595 = vmatpush1.bf16.msra.mxu0 %v1819
    %2596 = vmatprep.subr.bf16.mxu0 %v1880
    %2597 = vmatpush2.bf16.msra.mxu0 %v1879
    %2598 = vmatprep.subr.bf16.mxu0 %v1876
    %2599 = vmatpush2.bf16.msra.mxu0 %v1875
    %2600 = vmatprep.subr.bf16.mxu0 %v1872
    %2601 = vmatpush2.bf16.msra.mxu0 %v1871
    %2602 = vmatprep.subr.bf16.mxu0 %v1868
    %2603 = vmatpush2.bf16.msra.mxu0 %v1867
    %2604 = vmatprep.subr.bf16.mxu0 %v1864
    %2605 = vmatpush2.bf16.msra.mxu0 %v1863
    %2606 = vmatprep.subr.bf16.mxu0 %v1860
    %2607 = vmatpush2.bf16.msra.mxu0 %v1859
    %2608 = vmatprep.subr.bf16.mxu0 %v1856
    %2609 = vmatpush2.bf16.msra.mxu0 %v1855
    %2610 = vmatprep.subr.bf16.mxu0 %v1852
    %2611 = vmatpush2.bf16.msra.mxu0 %v1851
    %2612 = vmatprep.mubr.bf16.mxu0 %v2370
    %2613 = vmatmul.mubr.bf16.gmra.mxu0 %v2538
    %v2614 = vpop.f32.mrf.mxu0
    %v2615 = vadd.f32 %v1616, %v2614
    %v2616 = vpop.f32.mrf.mxu0
    %v2617 = vadd.f32 %v1620, %v2616
    %v2618 = vpop.f32.mrf.mxu0
    %v2619 = vpop.f32.mrf.mxu0
    %2620 = vdwg.mxu0
    %v2621 = vxor.u32 %v2574, 2147483648
    %v2622 = vmul.f32 %v2621, 1.442695
    %v2623 = vpow.pop %v2622
    %v2624 = vadd.f32 %v2623, 1.0
    %v2625 = vrcp.pop %v2624
    %v2626 = vmul.f32 1.0, %v2625
    %v2627 = vxor.u32 %v2576, 2147483648
    %v2628 = vmul.f32 %v2627, 1.442695
    %v2629 = vpow.pop %v2628
    %v2630 = vadd.f32 %v2629, 1.0
    %v2631 = vrcp.pop %v2630
    %v2632 = vmul.f32 1.0, %v2631
    %v2633 = vmul.f32 %v2626, %v2617
    %v2634 = vadd.f32 %v2615, %v2633
    %v2635 = vtanh.pop %v2634
    %v2636 = vsub.f32 1.0, %v2632
    %v2637 = vmul.f32 %v2636, %v2635
    %v2638 = vmul.f32 %v2632, %v2369
    %v2639 = vadd.f32 %v2637, %v2638
    %v2640 = vpack.c.bf16 %v2639, %v2639
    %2641 = vmatprep.subr.bf16.mxu0 0
    %2642 = vmatpush1.bf16.msra.mxu0 %v2092
    %2643 = vmatprep.subr.bf16.mxu0 0
    %2644 = vmatpush1.bf16.msra.mxu0 %v2091
    %2645 = vmatprep.subr.bf16.mxu0 0
    %2646 = vmatpush1.bf16.msra.mxu0 %v2090
    %2647 = vmatprep.subr.bf16.mxu0 0
    %2648 = vmatpush1.bf16.msra.mxu0 %v2089
    %2649 = vmatprep.subr.bf16.mxu0 0
    %2650 = vmatpush1.bf16.msra.mxu0 %v2088
    %2651 = vmatprep.subr.bf16.mxu0 0
    %2652 = vmatpush1.bf16.msra.mxu0 %v2087
    %2653 = vmatprep.subr.bf16.mxu0 0
    %2654 = vmatpush1.bf16.msra.mxu0 %v2086
    %2655 = vmatprep.subr.bf16.mxu0 0
    %2656 = vmatpush1.bf16.msra.mxu0 %v2085
    %2657 = vmatprep.subr.bf16.mxu0 0
    %2658 = vmatpush2.bf16.msra.mxu0 0
    %2659 = vmatprep.subr.bf16.mxu0 0
    %2660 = vmatpush2.bf16.msra.mxu0 0
    %2661 = vmatprep.subr.bf16.mxu0 0
    %2662 = vmatpush2.bf16.msra.mxu0 0
    %2663 = vmatprep.subr.bf16.mxu0 0
    %2664 = vmatpush2.bf16.msra.mxu0 0
    %2665 = vmatprep.subr.bf16.mxu0 0
    %2666 = vmatpush2.bf16.msra.mxu0 0
    %2667 = vmatprep.subr.bf16.mxu0 0
    %2668 = vmatpush2.bf16.msra.mxu0 0
    %2669 = vmatprep.subr.bf16.mxu0 0
    %2670 = vmatpush2.bf16.msra.mxu0 0
    %2671 = vmatprep.subr.bf16.mxu0 0
    %2672 = vmatpush2.bf16.msra.mxu0 0
    %2673 = vmatprep.mubr.bf16.mxu0 0
    %2674 = vmatmul.mubr.bf16.gmra.mxu0 %v2640
    %v2675 = vpop.f32.mrf.mxu0
    %v2676 = vadd.f32 %v2051, %v2675
    %v2677 = vpop.f32.mrf.mxu0
    %v2678 = vpop.f32.mrf.mxu0
    %v2679 = vpop.f32.mrf.mxu0
    %2680 = vdwg.mxu0
    %s2681 = scalar_lea.vmem [#allocation17], 24
    %2682 = vst [vmem:[%s2681] sm:$0xff] %v2676
    %s2683 = sld [smem:[#allocation3 + $0x3]]
    %p2684 = scmp.eq.s32.totalorder %s2683, 1
    // Predicated region
    $region98: #{tpu_custom_call.1} parent=1 // pred_check
      %p2685 = pneg %p2684
    $region99: #{tpu_custom_call.1} parent=1 // pred_check_branch
      %2687 = sbr.rel (%p2685) target = $region101
    $region100: #{tpu_custom_call.1} parent=1 // pred_region
      %v2688 = vld [vmem:[#allocation8 + $0xc] sm:$0xf]
      %v2689 = vunpack.c.l.bf16 %v2688
      %2690 = vst [vmem:[#allocation2] sm:$0xff] %v2689
    $region101: #{tpu_custom_call.1} parent=1 // pred_fallthru
      _
    %p2691 = scmp.eq.s32.totalorder %s2683, 0
    // Predicated region
    $region102: #{tpu_custom_call.1} parent=1 // pred_check
      %p2692 = pneg %p2691
    $region103: #{tpu_custom_call.1} parent=1 // pred_check_branch
      %2694 = sbr.rel (%p2692) target = $region105
    $region104: #{tpu_custom_call.1} parent=1 // pred_region
      %v2695 = vsel %vm1597, %v2676, -1e+30
      %2696 = vmax.xlane.f32.xlu0 %v2695
      %v2697 = vpop.xlane.xlu0 %2696
      %vm2698 = vcmp.eq.f32.partialorder %v2695, %v2697
      %v2699 = vsel %vm2698, %v1596, 128
      %v2700 = vand.u32 %v2699, 65535
      %v2701 = vshra.s32 %v2699, 16
      %v2702 = vcvt.s32.f32 %v2700
      %v2703 = vcvt.s32.f32 %v2701
      %2704 = vmin.xlane.f32.xlu0 %v2703
      %v2705 = vpop.xlane.xlu0 %2704
      %vm2706 = vcmp.eq.f32.partialorder %v2703, %v2705
      %v2707 = vsel %vm2706, %v2702, inf
      %2708 = vmin.xlane.f32.xlu0 %v2707
      %v2709 = vpop.xlane.xlu0 %2708
      %v2710 = vcvt.f32.s32 %v2709
      %v2711 = vcvt.f32.s32 %v2705
      %v2712 = vshll.u32 %v2711, 16
      %v2713 = vadd.s32 %v2712, %v2710
      %vm2714 = vcmp.eq.s32.totalorder %v1596, %v2713
      %v2715 = vsel %vm2714, 1, 0
      %v2716 = vcvt.s32.f32 %v2715
      %v2717 = vpack.c.bf16 %v2716, %v2716
      %v2734 = vunpack.c.l.b16 %v182
      %v2735 = vunpack.c.l.b16 %v183
      %v2736 = vunpack.c.l.b16 %v184
      %v2737 = vunpack.c.l.b16 %v185
      %v2738 = vunpack.c.l.b16 %v186
      %v2739 = vunpack.c.l.b16 %v187
      %v2740 = vunpack.c.l.b16 %v188
      %v2741 = vunpack.c.l.b16 %v189
      %v2742 = vunpack.c.l.b16 %v190
      %v2743 = vunpack.c.l.b16 %v191
      %v2744 = vunpack.c.l.b16 %v192
      %v2745 = vunpack.c.l.b16 %v193
      %v2746 = vunpack.c.l.b16 %v194
      %v2747 = vunpack.c.l.b16 %v195
      %v2748 = vunpack.c.l.b16 %v196
      %v2749 = vunpack.c.l.b16 %v197
      %v2750 = vpack.c.b16 %v2735, %v2734
      %v2751 = vpack.c.b16 %v2737, %v2736
      %v2752 = vpack.c.b16 %v2739, %v2738
      %v2753 = vpack.c.b16 %v2741, %v2740
      %v2754 = vpack.c.b16 %v2743, %v2742
      %v2755 = vpack.c.b16 %v2745, %v2744
      %v2756 = vpack.c.b16 %v2747, %v2746
      %v2757 = vpack.c.b16 %v2749, %v2748
      %2766 = vmatprep.subr.bf16.mxu0 0
      %2767 = vmatpush1.bf16.msra.mxu0 %v2757
      %2768 = vmatprep.subr.bf16.mxu0 0
      %2769 = vmatpush1.bf16.msra.mxu0 %v2756
      %2770 = vmatprep.subr.bf16.mxu0 0
      %2771 = vmatpush1.bf16.msra.mxu0 %v2755
      %2772 = vmatprep.subr.bf16.mxu0 0
      %2773 = vmatpush1.bf16.msra.mxu0 %v2754
      %2774 = vmatprep.subr.bf16.mxu0 0
      %2775 = vmatpush1.bf16.msra.mxu0 %v2753
      %2776 = vmatprep.subr.bf16.mxu0 0
      %2777 = vmatpush1.bf16.msra.mxu0 %v2752
      %2778 = vmatprep.subr.bf16.mxu0 0
      %2779 = vmatpush1.bf16.msra.mxu0 %v2751
      %2780 = vmatprep.subr.bf16.mxu0 0
      %2781 = vmatpush1.bf16.msra.mxu0 %v2750
      %2782 = vmatprep.subr.bf16.mxu0 0
      %2783 = vmatpush2.bf16.msra.mxu0 0
      %2784 = vmatprep.subr.bf16.mxu0 0
      %2785 = vmatpush2.bf16.msra.mxu0 0
      %2786 = vmatprep.subr.bf16.mxu0 0
      %2787 = vmatpush2.bf16.msra.mxu0 0
      %2788 = vmatprep.subr.bf16.mxu0 0
      %2789 = vmatpush2.bf16.msra.mxu0 0
      %2790 = vmatprep.subr.bf16.mxu0 0
      %2791 = vmatpush2.bf16.msra.mxu0 0
      %2792 = vmatprep.subr.bf16.mxu0 0
      %2793 = vmatpush2.bf16.msra.mxu0 0
      %2794 = vmatprep.subr.bf16.mxu0 0
      %2795 = vmatpush2.bf16.msra.mxu0 0
      %2796 = vmatprep.subr.bf16.mxu0 0
      %2797 = vmatpush2.bf16.msra.mxu0 0
      %2798 = vmatprep.mubr.bf16.mxu0 0
      %2799 = vmatmul.mubr.bf16.gmra.mxu0 %v2717
      %v2800 = vpop.f32.mrf.mxu0
      %v2801 = vadd.f32 0.0, %v2800
      %v2802 = vpop.f32.mrf.mxu0
      %v2803 = vpop.f32.mrf.mxu0
      %v2804 = vpop.f32.mrf.mxu0
      %2805 = vdwg.mxu0
      %2806 = vst [vmem:[#allocation2] sm:$0xff] %v2801
    $region105: #{tpu_custom_call.1} parent=1 // pred_fallthru
      _
    %v2807 = vld [vmem:[#allocation2] sm:$0xff]
    %v2808 = vpack.c.bf16 %v2807, %v2807
    %2809 = vmatprep.subr.bf16.mxu0 %v1846
    %2810 = vmatpush1.bf16.msra.mxu0 %v1845
    %2811 = vmatprep.subr.bf16.mxu0 %v1842
    %2812 = vmatpush1.bf16.msra.mxu0 %v1841
    %2813 = vmatprep.subr.bf16.mxu0 %v1838
    %2814 = vmatpush1.bf16.msra.mxu0 %v1837
    %2815 = vmatprep.subr.bf16.mxu0 %v1834
    %2816 = vmatpush1.bf16.msra.mxu0 %v1833
    %2817 = vmatprep.subr.bf16.mxu0 %v1830
    %2818 = vmatpush1.bf16.msra.mxu0 %v1829
    %2819 = vmatprep.subr.bf16.mxu0 %v1826
    %2820 = vmatpush1.bf16.msra.mxu0 %v1825
    %2821 = vmatprep.subr.bf16.mxu0 %v1822
    %2822 = vmatpush1.bf16.msra.mxu0 %v1821
    %2823 = vmatprep.subr.bf16.mxu0 %v1818
    %2824 = vmatpush1.bf16.msra.mxu0 %v1817
    %2825 = vmatprep.subr.bf16.mxu0 %v1878
    %2826 = vmatpush2.bf16.msra.mxu0 %v1877
    %2827 = vmatprep.subr.bf16.mxu0 %v1874
    %2828 = vmatpush2.bf16.msra.mxu0 %v1873
    %2829 = vmatprep.subr.bf16.mxu0 %v1870
    %2830 = vmatpush2.bf16.msra.mxu0 %v1869
    %2831 = vmatprep.subr.bf16.mxu0 %v1866
    %2832 = vmatpush2.bf16.msra.mxu0 %v1865
    %2833 = vmatprep.subr.bf16.mxu0 %v1862
    %2834 = vmatpush2.bf16.msra.mxu0 %v1861
    %2835 = vmatprep.subr.bf16.mxu0 %v1858
    %2836 = vmatpush2.bf16.msra.mxu0 %v1857
    %2837 = vmatprep.subr.bf16.mxu0 %v1854
    %2838 = vmatpush2.bf16.msra.mxu0 %v1853
    %2839 = vmatprep.subr.bf16.mxu0 %v1850
    %2840 = vmatpush2.bf16.msra.mxu0 %v1849
    %2841 = vmatprep.mubr.bf16.mxu0 %v2640
    %2842 = vmatmul.mubr.bf16.gmra.mxu0 %v2808
    %v2843 = vpop.f32.mrf.mxu0
    %v2844 = vadd.f32 %v1608, %v2843
    %v2845 = vpop.f32.mrf.mxu0
    %v2846 = vadd.f32 %v1612, %v2845
    %v2847 = vpop.f32.mrf.mxu0
    %v2848 = vpop.f32.mrf.mxu0
    %2849 = vdwg.mxu0
    %2850 = vmatprep.subr.bf16.mxu0 %v1848
    %2851 = vmatpush1.bf16.msra.mxu0 %v1847
    %2852 = vmatprep.subr.bf16.mxu0 %v1844
    %2853 = vmatpush1.bf16.msra.mxu0 %v1843
    %2854 = vmatprep.subr.bf16.mxu0 %v1840
    %2855 = vmatpush1.bf16.msra.mxu0 %v1839
    %2856 = vmatprep.subr.bf16.mxu0 %v1836
    %2857 = vmatpush1.bf16.msra.mxu0 %v1835
    %2858 = vmatprep.subr.bf16.mxu0 %v1832
    %2859 = vmatpush1.bf16.msra.mxu0 %v1831
    %2860 = vmatprep.subr.bf16.mxu0 %v1828
    %2861 = vmatpush1.bf16.msra.mxu0 %v1827
    %2862 = vmatprep.subr.bf16.mxu0 %v1824
    %2863 = vmatpush1.bf16.msra.mxu0 %v1823
    %2864 = vmatprep.subr.bf16.mxu0 %v1820
    %2865 = vmatpush1.bf16.msra.mxu0 %v1819
    %2866 = vmatprep.subr.bf16.mxu0 %v1880
    %2867 = vmatpush2.bf16.msra.mxu0 %v1879
    %2868 = vmatprep.subr.bf16.mxu0 %v1876
    %2869 = vmatpush2.bf16.msra.mxu0 %v1875
    %2870 = vmatprep.subr.bf16.mxu0 %v1872
    %2871 = vmatpush2.bf16.msra.mxu0 %v1871
    %2872 = vmatprep.subr.bf16.mxu0 %v1868
    %2873 = vmatpush2.bf16.msra.mxu0 %v1867
    %2874 = vmatprep.subr.bf16.mxu0 %v1864
    %2875 = vmatpush2.bf16.msra.mxu0 %v1863
    %2876 = vmatprep.subr.bf16.mxu0 %v1860
    %2877 = vmatpush2.bf16.msra.mxu0 %v1859
    %2878 = vmatprep.subr.bf16.mxu0 %v1856
    %2879 = vmatpush2.bf16.msra.mxu0 %v1855
    %2880 = vmatprep.subr.bf16.mxu0 %v1852
    %2881 = vmatpush2.bf16.msra.mxu0 %v1851
    %2882 = vmatprep.mubr.bf16.mxu0 %v2640
    %2883 = vmatmul.mubr.bf16.gmra.mxu0 %v2808
    %v2884 = vpop.f32.mrf.mxu0
    %v2885 = vadd.f32 %v1616, %v2884
    %v2886 = vpop.f32.mrf.mxu0
    %v2887 = vadd.f32 %v1620, %v2886
    %v2888 = vpop.f32.mrf.mxu0
    %v2889 = vpop.f32.mrf.mxu0
    %2890 = vdwg.mxu0
    %v2891 = vxor.u32 %v2844, 2147483648
    %v2892 = vmul.f32 %v2891, 1.442695
    %v2893 = vpow.pop %v2892
    %v2894 = vadd.f32 %v2893, 1.0
    %v2895 = vrcp.pop %v2894
    %v2896 = vmul.f32 1.0, %v2895
    %v2897 = vxor.u32 %v2846, 2147483648
    %v2898 = vmul.f32 %v2897, 1.442695
    %v2899 = vpow.pop %v2898
    %v2900 = vadd.f32 %v2899, 1.0
    %v2901 = vrcp.pop %v2900
    %v2902 = vmul.f32 1.0, %v2901
    %v2903 = vmul.f32 %v2896, %v2887
    %v2904 = vadd.f32 %v2885, %v2903
    %v2905 = vtanh.pop %v2904
    %v2906 = vsub.f32 1.0, %v2902
    %v2907 = vmul.f32 %v2906, %v2905
    %v2908 = vmul.f32 %v2902, %v2639
    %v2909 = vadd.f32 %v2907, %v2908
    %v2910 = vpack.c.bf16 %v2909, %v2909
    %2911 = vmatprep.subr.bf16.mxu0 0
    %2912 = vmatpush1.bf16.msra.mxu0 %v2092
    %2913 = vmatprep.subr.bf16.mxu0 0
    %2914 = vmatpush1.bf16.msra.mxu0 %v2091
    %2915 = vmatprep.subr.bf16.mxu0 0
    %2916 = vmatpush1.bf16.msra.mxu0 %v2090
    %2917 = vmatprep.subr.bf16.mxu0 0
    %2918 = vmatpush1.bf16.msra.mxu0 %v2089
    %2919 = vmatprep.subr.bf16.mxu0 0
    %2920 = vmatpush1.bf16.msra.mxu0 %v2088
    %2921 = vmatprep.subr.bf16.mxu0 0
    %2922 = vmatpush1.bf16.msra.mxu0 %v2087
    %2923 = vmatprep.subr.bf16.mxu0 0
    %2924 = vmatpush1.bf16.msra.mxu0 %v2086
    %2925 = vmatprep.subr.bf16.mxu0 0
    %2926 = vmatpush1.bf16.msra.mxu0 %v2085
    %2927 = vmatprep.subr.bf16.mxu0 0
    %2928 = vmatpush2.bf16.msra.mxu0 0
    %2929 = vmatprep.subr.bf16.mxu0 0
    %2930 = vmatpush2.bf16.msra.mxu0 0
    %2931 = vmatprep.subr.bf16.mxu0 0
    %2932 = vmatpush2.bf16.msra.mxu0 0
    %2933 = vmatprep.subr.bf16.mxu0 0
    %2934 = vmatpush2.bf16.msra.mxu0 0
    %2935 = vmatprep.subr.bf16.mxu0 0
    %2936 = vmatpush2.bf16.msra.mxu0 0
    %2937 = vmatprep.subr.bf16.mxu0 0
    %2938 = vmatpush2.bf16.msra.mxu0 0
    %2939 = vmatprep.subr.bf16.mxu0 0
    %2940 = vmatpush2.bf16.msra.mxu0 0
    %2941 = vmatprep.subr.bf16.mxu0 0
    %2942 = vmatpush2.bf16.msra.mxu0 0
    %2943 = vmatprep.mubr.bf16.mxu0 0
    %2944 = vmatmul.mubr.bf16.gmra.mxu0 %v2910
    %v2945 = vpop.f32.mrf.mxu0
    %v2946 = vadd.f32 %v2051, %v2945
    %v2947 = vpop.f32.mrf.mxu0
    %v2948 = vpop.f32.mrf.mxu0
    %v2949 = vpop.f32.mrf.mxu0
    %2950 = vdwg.mxu0
    %s2951 = scalar_lea.vmem [#allocation17], 32
    %2952 = vst [vmem:[%s2951] sm:$0xff] %v2946
    %s2953 = sld [smem:[#allocation3 + $0x4]]
    %p2954 = scmp.eq.s32.totalorder %s2953, 1
    // Predicated region
    $region106: #{tpu_custom_call.1} parent=1 // pred_check
      %p2955 = pneg %p2954
    $region107: #{tpu_custom_call.1} parent=1 // pred_check_branch
      %2957 = sbr.rel (%p2955) target = $region109
    $region108: #{tpu_custom_call.1} parent=1 // pred_region
      %v2958 = vld [vmem:[#allocation8 + $0x10] sm:$0xf]
      %v2959 = vunpack.c.l.bf16 %v2958
      %2960 = vst [vmem:[#allocation2] sm:$0xff] %v2959
    $region109: #{tpu_custom_call.1} parent=1 // pred_fallthru
      _
    %p2961 = scmp.eq.s32.totalorder %s2953, 0
    // Predicated region
    $region110: #{tpu_custom_call.1} parent=1 // pred_check
      %p2962 = pneg %p2961
    $region111: #{tpu_custom_call.1} parent=1 // pred_check_branch
      %2964 = sbr.rel (%p2962) target = $region113
    $region112: #{tpu_custom_call.1} parent=1 // pred_region
      %v2965 = vsel %vm1597, %v2946, -1e+30
      %2966 = vmax.xlane.f32.xlu0 %v2965
      %v2967 = vpop.xlane.xlu0 %2966
      %vm2968 = vcmp.eq.f32.partialorder %v2965, %v2967
      %v2969 = vsel %vm2968, %v1596, 128
      %v2970 = vand.u32 %v2969, 65535
      %v2971 = vshra.s32 %v2969, 16
      %v2972 = vcvt.s32.f32 %v2970
      %v2973 = vcvt.s32.f32 %v2971
      %2974 = vmin.xlane.f32.xlu0 %v2973
      %v2975 = vpop.xlane.xlu0 %2974
      %vm2976 = vcmp.eq.f32.partialorder %v2973, %v2975
      %v2977 = vsel %vm2976, %v2972, inf
      %2978 = vmin.xlane.f32.xlu0 %v2977
      %v2979 = vpop.xlane.xlu0 %2978
      %v2980 = vcvt.f32.s32 %v2979
      %v2981 = vcvt.f32.s32 %v2975
      %v2982 = vshll.u32 %v2981, 16
      %v2983 = vadd.s32 %v2982, %v2980
      %vm2984 = vcmp.eq.s32.totalorder %v1596, %v2983
      %v2985 = vsel %vm2984, 1, 0
      %v2986 = vcvt.s32.f32 %v2985
      %v2987 = vpack.c.bf16 %v2986, %v2986
      %v3004 = vunpack.c.l.b16 %v182
      %v3005 = vunpack.c.l.b16 %v183
      %v3006 = vunpack.c.l.b16 %v184
      %v3007 = vunpack.c.l.b16 %v185
      %v3008 = vunpack.c.l.b16 %v186
      %v3009 = vunpack.c.l.b16 %v187
      %v3010 = vunpack.c.l.b16 %v188
      %v3011 = vunpack.c.l.b16 %v189
      %v3012 = vunpack.c.l.b16 %v190
      %v3013 = vunpack.c.l.b16 %v191
      %v3014 = vunpack.c.l.b16 %v192
      %v3015 = vunpack.c.l.b16 %v193
      %v3016 = vunpack.c.l.b16 %v194
      %v3017 = vunpack.c.l.b16 %v195
      %v3018 = vunpack.c.l.b16 %v196
      %v3019 = vunpack.c.l.b16 %v197
      %v3020 = vpack.c.b16 %v3005, %v3004
      %v3021 = vpack.c.b16 %v3007, %v3006
      %v3022 = vpack.c.b16 %v3009, %v3008
      %v3023 = vpack.c.b16 %v3011, %v3010
      %v3024 = vpack.c.b16 %v3013, %v3012
      %v3025 = vpack.c.b16 %v3015, %v3014
      %v3026 = vpack.c.b16 %v3017, %v3016
      %v3027 = vpack.c.b16 %v3019, %v3018
      %3036 = vmatprep.subr.bf16.mxu0 0
      %3037 = vmatpush1.bf16.msra.mxu0 %v3027
      %3038 = vmatprep.subr.bf16.mxu0 0
      %3039 = vmatpush1.bf16.msra.mxu0 %v3026
      %3040 = vmatprep.subr.bf16.mxu0 0
      %3041 = vmatpush1.bf16.msra.mxu0 %v3025
      %3042 = vmatprep.subr.bf16.mxu0 0
      %3043 = vmatpush1.bf16.msra.mxu0 %v3024
      %3044 = vmatprep.subr.bf16.mxu0 0
      %3045 = vmatpush1.bf16.msra.mxu0 %v3023
      %3046 = vmatprep.subr.bf16.mxu0 0
      %3047 = vmatpush1.bf16.msra.mxu0 %v3022
      %3048 = vmatprep.subr.bf16.mxu0 0
      %3049 = vmatpush1.bf16.msra.mxu0 %v3021
      %3050 = vmatprep.subr.bf16.mxu0 0
      %3051 = vmatpush1.bf16.msra.mxu0 %v3020
      %3052 = vmatprep.subr.bf16.mxu0 0
      %3053 = vmatpush2.bf16.msra.mxu0 0
      %3054 = vmatprep.subr.bf16.mxu0 0
      %3055 = vmatpush2.bf16.msra.mxu0 0
      %3056 = vmatprep.subr.bf16.mxu0 0
      %3057 = vmatpush2.bf16.msra.mxu0 0
      %3058 = vmatprep.subr.bf16.mxu0 0
      %3059 = vmatpush2.bf16.msra.mxu0 0
      %3060 = vmatprep.subr.bf16.mxu0 0
      %3061 = vmatpush2.bf16.msra.mxu0 0
      %3062 = vmatprep.subr.bf16.mxu0 0
      %3063 = vmatpush2.bf16.msra.mxu0 0
      %3064 = vmatprep.subr.bf16.mxu0 0
      %3065 = vmatpush2.bf16.msra.mxu0 0
      %3066 = vmatprep.subr.bf16.mxu0 0
      %3067 = vmatpush2.bf16.msra.mxu0 0
      %3068 = vmatprep.mubr.bf16.mxu0 0
      %3069 = vmatmul.mubr.bf16.gmra.mxu0 %v2987
      %v3070 = vpop.f32.mrf.mxu0
      %v3071 = vadd.f32 0.0, %v3070
      %v3072 = vpop.f32.mrf.mxu0
      %v3073 = vpop.f32.mrf.mxu0
      %v3074 = vpop.f32.mrf.mxu0
      %3075 = vdwg.mxu0
      %3076 = vst [vmem:[#allocation2] sm:$0xff] %v3071
    $region113: #{tpu_custom_call.1} parent=1 // pred_fallthru
      _
    %v3077 = vld [vmem:[#allocation2] sm:$0xff]
    %v3078 = vpack.c.bf16 %v3077, %v3077
    %3079 = vmatprep.subr.bf16.mxu0 %v1846
    %3080 = vmatpush1.bf16.msra.mxu0 %v1845
    %3081 = vmatprep.subr.bf16.mxu0 %v1842
    %3082 = vmatpush1.bf16.msra.mxu0 %v1841
    %3083 = vmatprep.subr.bf16.mxu0 %v1838
    %3084 = vmatpush1.bf16.msra.mxu0 %v1837
    %3085 = vmatprep.subr.bf16.mxu0 %v1834
    %3086 = vmatpush1.bf16.msra.mxu0 %v1833
    %3087 = vmatprep.subr.bf16.mxu0 %v1830
    %3088 = vmatpush1.bf16.msra.mxu0 %v1829
    %3089 = vmatprep.subr.bf16.mxu0 %v1826
    %3090 = vmatpush1.bf16.msra.mxu0 %v1825
    %3091 = vmatprep.subr.bf16.mxu0 %v1822
    %3092 = vmatpush1.bf16.msra.mxu0 %v1821
    %3093 = vmatprep.subr.bf16.mxu0 %v1818
    %3094 = vmatpush1.bf16.msra.mxu0 %v1817
    %3095 = vmatprep.subr.bf16.mxu0 %v1878
    %3096 = vmatpush2.bf16.msra.mxu0 %v1877
    %3097 = vmatprep.subr.bf16.mxu0 %v1874
    %3098 = vmatpush2.bf16.msra.mxu0 %v1873
    %3099 = vmatprep.subr.bf16.mxu0 %v1870
    %3100 = vmatpush2.bf16.msra.mxu0 %v1869
    %3101 = vmatprep.subr.bf16.mxu0 %v1866
    %3102 = vmatpush2.bf16.msra.mxu0 %v1865
    %3103 = vmatprep.subr.bf16.mxu0 %v1862
    %3104 = vmatpush2.bf16.msra.mxu0 %v1861
    %3105 = vmatprep.subr.bf16.mxu0 %v1858
    %3106 = vmatpush2.bf16.msra.mxu0 %v1857
    %3107 = vmatprep.subr.bf16.mxu0 %v1854
    %3108 = vmatpush2.bf16.msra.mxu0 %v1853
    %3109 = vmatprep.subr.bf16.mxu0 %v1850
    %3110 = vmatpush2.bf16.msra.mxu0 %v1849
    %3111 = vmatprep.mubr.bf16.mxu0 %v2910
    %3112 = vmatmul.mubr.bf16.gmra.mxu0 %v3078
    %v3113 = vpop.f32.mrf.mxu0
    %v3114 = vadd.f32 %v1608, %v3113
    %v3115 = vpop.f32.mrf.mxu0
    %v3116 = vadd.f32 %v1612, %v3115
    %v3117 = vpop.f32.mrf.mxu0
    %v3118 = vpop.f32.mrf.mxu0
    %3119 = vdwg.mxu0
    %3120 = vmatprep.subr.bf16.mxu0 %v1848
    %3121 = vmatpush1.bf16.msra.mxu0 %v1847
    %3122 = vmatprep.subr.bf16.mxu0 %v1844
    %3123 = vmatpush1.bf16.msra.mxu0 %v1843
    %3124 = vmatprep.subr.bf16.mxu0 %v1840
    %3125 = vmatpush1.bf16.msra.mxu0 %v1839
    %3126 = vmatprep.subr.bf16.mxu0 %v1836
    %3127 = vmatpush1.bf16.msra.mxu0 %v1835
    %3128 = vmatprep.subr.bf16.mxu0 %v1832
    %3129 = vmatpush1.bf16.msra.mxu0 %v1831
    %3130 = vmatprep.subr.bf16.mxu0 %v1828
    %3131 = vmatpush1.bf16.msra.mxu0 %v1827
    %3132 = vmatprep.subr.bf16.mxu0 %v1824
    %3133 = vmatpush1.bf16.msra.mxu0 %v1823
    %3134 = vmatprep.subr.bf16.mxu0 %v1820
    %3135 = vmatpush1.bf16.msra.mxu0 %v1819
    %3136 = vmatprep.subr.bf16.mxu0 %v1880
    %3137 = vmatpush2.bf16.msra.mxu0 %v1879
    %3138 = vmatprep.subr.bf16.mxu0 %v1876
    %3139 = vmatpush2.bf16.msra.mxu0 %v1875
    %3140 = vmatprep.subr.bf16.mxu0 %v1872
    %3141 = vmatpush2.bf16.msra.mxu0 %v1871
    %3142 = vmatprep.subr.bf16.mxu0 %v1868
    %3143 = vmatpush2.bf16.msra.mxu0 %v1867
    %3144 = vmatprep.subr.bf16.mxu0 %v1864
    %3145 = vmatpush2.bf16.msra.mxu0 %v1863
    %3146 = vmatprep.subr.bf16.mxu0 %v1860
    %3147 = vmatpush2.bf16.msra.mxu0 %v1859
    %3148 = vmatprep.subr.bf16.mxu0 %v1856
    %3149 = vmatpush2.bf16.msra.mxu0 %v1855
    %3150 = vmatprep.subr.bf16.mxu0 %v1852
    %3151 = vmatpush2.bf16.msra.mxu0 %v1851
    %3152 = vmatprep.mubr.bf16.mxu0 %v2910
    %3153 = vmatmul.mubr.bf16.gmra.mxu0 %v3078
    %v3154 = vpop.f32.mrf.mxu0
    %v3155 = vadd.f32 %v1616, %v3154
    %v3156 = vpop.f32.mrf.mxu0
    %v3157 = vadd.f32 %v1620, %v3156
    %v3158 = vpop.f32.mrf.mxu0
    %v3159 = vpop.f32.mrf.mxu0
    %3160 = vdwg.mxu0
    %v3161 = vxor.u32 %v3114, 2147483648
    %v3162 = vmul.f32 %v3161, 1.442695
    %v3163 = vpow.pop %v3162
    %v3164 = vadd.f32 %v3163, 1.0
    %v3165 = vrcp.pop %v3164
    %v3166 = vmul.f32 1.0, %v3165
    %v3167 = vxor.u32 %v3116, 2147483648
    %v3168 = vmul.f32 %v3167, 1.442695
    %v3169 = vpow.pop %v3168
    %v3170 = vadd.f32 %v3169, 1.0
    %v3171 = vrcp.pop %v3170
    %v3172 = vmul.f32 1.0, %v3171
    %v3173 = vmul.f32 %v3166, %v3157
    %v3174 = vadd.f32 %v3155, %v3173
    %v3175 = vtanh.pop %v3174
    %v3176 = vsub.f32 1.0, %v3172
    %v3177 = vmul.f32 %v3176, %v3175
    %v3178 = vmul.f32 %v3172, %v2909
    %v3179 = vadd.f32 %v3177, %v3178
    %v3180 = vpack.c.bf16 %v3179, %v3179
    %3181 = vmatprep.subr.bf16.mxu0 0
    %3182 = vmatpush1.bf16.msra.mxu0 %v2092
    %3183 = vmatprep.subr.bf16.mxu0 0
    %3184 = vmatpush1.bf16.msra.mxu0 %v2091
    %3185 = vmatprep.subr.bf16.mxu0 0
    %3186 = vmatpush1.bf16.msra.mxu0 %v2090
    %3187 = vmatprep.subr.bf16.mxu0 0
    %3188 = vmatpush1.bf16.msra.mxu0 %v2089
    %3189 = vmatprep.subr.bf16.mxu0 0
    %3190 = vmatpush1.bf16.msra.mxu0 %v2088
    %3191 = vmatprep.subr.bf16.mxu0 0
    %3192 = vmatpush1.bf16.msra.mxu0 %v2087
    %3193 = vmatprep.subr.bf16.mxu0 0
    %3194 = vmatpush1.bf16.msra.mxu0 %v2086
    %3195 = vmatprep.subr.bf16.mxu0 0
    %3196 = vmatpush1.bf16.msra.mxu0 %v2085
    %3197 = vmatprep.subr.bf16.mxu0 0
    %3198 = vmatpush2.bf16.msra.mxu0 0
    %3199 = vmatprep.subr.bf16.mxu0 0
    %3200 = vmatpush2.bf16.msra.mxu0 0
    %3201 = vmatprep.subr.bf16.mxu0 0
    %3202 = vmatpush2.bf16.msra.mxu0 0
    %3203 = vmatprep.subr.bf16.mxu0 0
    %3204 = vmatpush2.bf16.msra.mxu0 0
    %3205 = vmatprep.subr.bf16.mxu0 0
    %3206 = vmatpush2.bf16.msra.mxu0 0
    %3207 = vmatprep.subr.bf16.mxu0 0
    %3208 = vmatpush2.bf16.msra.mxu0 0
    %3209 = vmatprep.subr.bf16.mxu0 0
    %3210 = vmatpush2.bf16.msra.mxu0 0
    %3211 = vmatprep.subr.bf16.mxu0 0
    %3212 = vmatpush2.bf16.msra.mxu0 0
    %3213 = vmatprep.mubr.bf16.mxu0 0
    %3214 = vmatmul.mubr.bf16.gmra.mxu0 %v3180
    %v3215 = vpop.f32.mrf.mxu0
    %v3216 = vadd.f32 %v2051, %v3215
    %v3217 = vpop.f32.mrf.mxu0
    %v3218 = vpop.f32.mrf.mxu0
    %v3219 = vpop.f32.mrf.mxu0
    %3220 = vdwg.mxu0
    %s3221 = scalar_lea.vmem [#allocation17], 40
    %3222 = vst [vmem:[%s3221] sm:$0xff] %v3216
    %s3223 = sld [smem:[#allocation3 + $0x5]]
    %p3224 = scmp.eq.s32.totalorder %s3223, 1
    // Predicated region
    $region114: #{tpu_custom_call.1} parent=1 // pred_check
      %p3225 = pneg %p3224
    $region115: #{tpu_custom_call.1} parent=1 // pred_check_branch
      %3227 = sbr.rel (%p3225) target = $region117
    $region116: #{tpu_custom_call.1} parent=1 // pred_region
      %v3228 = vld [vmem:[#allocation8 + $0x14] sm:$0xf]
      %v3229 = vunpack.c.l.bf16 %v3228
      %3230 = vst [vmem:[#allocation2] sm:$0xff] %v3229
    $region117: #{tpu_custom_call.1} parent=1 // pred_fallthru
      _
    %p3231 = scmp.eq.s32.totalorder %s3223, 0
    // Predicated region
    $region118: #{tpu_custom_call.1} parent=1 // pred_check
      %p3232 = pneg %p3231
    $region119: #{tpu_custom_call.1} parent=1 // pred_check_branch
      %3234 = sbr.rel (%p3232) target = $region121
    $region120: #{tpu_custom_call.1} parent=1 // pred_region
      %v3235 = vsel %vm1597, %v3216, -1e+30
      %3236 = vmax.xlane.f32.xlu0 %v3235
      %v3237 = vpop.xlane.xlu0 %3236
      %vm3238 = vcmp.eq.f32.partialorder %v3235, %v3237
      %v3239 = vsel %vm3238, %v1596, 128
      %v3240 = vand.u32 %v3239, 65535
      %v3241 = vshra.s32 %v3239, 16
      %v3242 = vcvt.s32.f32 %v3240
      %v3243 = vcvt.s32.f32 %v3241
      %3244 = vmin.xlane.f32.xlu0 %v3243
      %v3245 = vpop.xlane.xlu0 %3244
      %vm3246 = vcmp.eq.f32.partialorder %v3243, %v3245
      %v3247 = vsel %vm3246, %v3242, inf
      %3248 = vmin.xlane.f32.xlu0 %v3247
      %v3249 = vpop.xlane.xlu0 %3248
      %v3250 = vcvt.f32.s32 %v3249
      %v3251 = vcvt.f32.s32 %v3245
      %v3252 = vshll.u32 %v3251, 16
      %v3253 = vadd.s32 %v3252, %v3250
      %vm3254 = vcmp.eq.s32.totalorder %v1596, %v3253
      %v3255 = vsel %vm3254, 1, 0
      %v3256 = vcvt.s32.f32 %v3255
      %v3257 = vpack.c.bf16 %v3256, %v3256
      %v3274 = vunpack.c.l.b16 %v182
      %v3275 = vunpack.c.l.b16 %v183
      %v3276 = vunpack.c.l.b16 %v184
      %v3277 = vunpack.c.l.b16 %v185
      %v3278 = vunpack.c.l.b16 %v186
      %v3279 = vunpack.c.l.b16 %v187
      %v3280 = vunpack.c.l.b16 %v188
      %v3281 = vunpack.c.l.b16 %v189
      %v3282 = vunpack.c.l.b16 %v190
      %v3283 = vunpack.c.l.b16 %v191
      %v3284 = vunpack.c.l.b16 %v192
      %v3285 = vunpack.c.l.b16 %v193
      %v3286 = vunpack.c.l.b16 %v194
      %v3287 = vunpack.c.l.b16 %v195
      %v3288 = vunpack.c.l.b16 %v196
      %v3289 = vunpack.c.l.b16 %v197
      %v3290 = vpack.c.b16 %v3275, %v3274
      %v3291 = vpack.c.b16 %v3277, %v3276
      %v3292 = vpack.c.b16 %v3279, %v3278
      %v3293 = vpack.c.b16 %v3281, %v3280
      %v3294 = vpack.c.b16 %v3283, %v3282
      %v3295 = vpack.c.b16 %v3285, %v3284
      %v3296 = vpack.c.b16 %v3287, %v3286
      %v3297 = vpack.c.b16 %v3289, %v3288
      %3306 = vmatprep.subr.bf16.mxu0 0
      %3307 = vmatpush1.bf16.msra.mxu0 %v3297
      %3308 = vmatprep.subr.bf16.mxu0 0
      %3309 = vmatpush1.bf16.msra.mxu0 %v3296
      %3310 = vmatprep.subr.bf16.mxu0 0
      %3311 = vmatpush1.bf16.msra.mxu0 %v3295
      %3312 = vmatprep.subr.bf16.mxu0 0
      %3313 = vmatpush1.bf16.msra.mxu0 %v3294
      %3314 = vmatprep.subr.bf16.mxu0 0
      %3315 = vmatpush1.bf16.msra.mxu0 %v3293
      %3316 = vmatprep.subr.bf16.mxu0 0
      %3317 = vmatpush1.bf16.msra.mxu0 %v3292
      %3318 = vmatprep.subr.bf16.mxu0 0
      %3319 = vmatpush1.bf16.msra.mxu0 %v3291
      %3320 = vmatprep.subr.bf16.mxu0 0
      %3321 = vmatpush1.bf16.msra.mxu0 %v3290
      %3322 = vmatprep.subr.bf16.mxu0 0
      %3323 = vmatpush2.bf16.msra.mxu0 0
      %3324 = vmatprep.subr.bf16.mxu0 0
      %3325 = vmatpush2.bf16.msra.mxu0 0
      %3326 = vmatprep.subr.bf16.mxu0 0
      %3327 = vmatpush2.bf16.msra.mxu0 0
      %3328 = vmatprep.subr.bf16.mxu0 0
      %3329 = vmatpush2.bf16.msra.mxu0 0
      %3330 = vmatprep.subr.bf16.mxu0 0
      %3331 = vmatpush2.bf16.msra.mxu0 0
      %3332 = vmatprep.subr.bf16.mxu0 0
      %3333 = vmatpush2.bf16.msra.mxu0 0
      %3334 = vmatprep.subr.bf16.mxu0 0
      %3335 = vmatpush2.bf16.msra.mxu0 0
      %3336 = vmatprep.subr.bf16.mxu0 0
      %3337 = vmatpush2.bf16.msra.mxu0 0
      %3338 = vmatprep.mubr.bf16.mxu0 0
      %3339 = vmatmul.mubr.bf16.gmra.mxu0 %v3257
      %v3340 = vpop.f32.mrf.mxu0
      %v3341 = vadd.f32 0.0, %v3340
      %v3342 = vpop.f32.mrf.mxu0
      %v3343 = vpop.f32.mrf.mxu0
      %v3344 = vpop.f32.mrf.mxu0
      %3345 = vdwg.mxu0
      %3346 = vst [vmem:[#allocation2] sm:$0xff] %v3341
    $region121: #{tpu_custom_call.1} parent=1 // pred_fallthru
      _
    %v3347 = vld [vmem:[#allocation2] sm:$0xff]
    %v3348 = vpack.c.bf16 %v3347, %v3347
    %3349 = vmatprep.subr.bf16.mxu0 %v1846
    %3350 = vmatpush1.bf16.msra.mxu0 %v1845
    %3351 = vmatprep.subr.bf16.mxu0 %v1842
    %3352 = vmatpush1.bf16.msra.mxu0 %v1841
    %3353 = vmatprep.subr.bf16.mxu0 %v1838
    %3354 = vmatpush1.bf16.msra.mxu0 %v1837
    %3355 = vmatprep.subr.bf16.mxu0 %v1834
    %3356 = vmatpush1.bf16.msra.mxu0 %v1833
    %3357 = vmatprep.subr.bf16.mxu0 %v1830
    %3358 = vmatpush1.bf16.msra.mxu0 %v1829
    %3359 = vmatprep.subr.bf16.mxu0 %v1826
    %3360 = vmatpush1.bf16.msra.mxu0 %v1825
    %3361 = vmatprep.subr.bf16.mxu0 %v1822
    %3362 = vmatpush1.bf16.msra.mxu0 %v1821
    %3363 = vmatprep.subr.bf16.mxu0 %v1818
    %3364 = vmatpush1.bf16.msra.mxu0 %v1817
    %3365 = vmatprep.subr.bf16.mxu0 %v1878
    %3366 = vmatpush2.bf16.msra.mxu0 %v1877
    %3367 = vmatprep.subr.bf16.mxu0 %v1874
    %3368 = vmatpush2.bf16.msra.mxu0 %v1873
    %3369 = vmatprep.subr.bf16.mxu0 %v1870
    %3370 = vmatpush2.bf16.msra.mxu0 %v1869
    %3371 = vmatprep.subr.bf16.mxu0 %v1866
    %3372 = vmatpush2.bf16.msra.mxu0 %v1865
    %3373 = vmatprep.subr.bf16.mxu0 %v1862
    %3374 = vmatpush2.bf16.msra.mxu0 %v1861
    %3375 = vmatprep.subr.bf16.mxu0 %v1858
    %3376 = vmatpush2.bf16.msra.mxu0 %v1857
    %3377 = vmatprep.subr.bf16.mxu0 %v1854
    %3378 = vmatpush2.bf16.msra.mxu0 %v1853
    %3379 = vmatprep.subr.bf16.mxu0 %v1850
    %3380 = vmatpush2.bf16.msra.mxu0 %v1849
    %3381 = vmatprep.mubr.bf16.mxu0 %v3180
    %3382 = vmatmul.mubr.bf16.gmra.mxu0 %v3348
    %v3383 = vpop.f32.mrf.mxu0
    %v3384 = vadd.f32 %v1608, %v3383
    %v3385 = vpop.f32.mrf.mxu0
    %v3386 = vadd.f32 %v1612, %v3385
    %v3387 = vpop.f32.mrf.mxu0
    %v3388 = vpop.f32.mrf.mxu0
    %3389 = vdwg.mxu0
    %3390 = vmatprep.subr.bf16.mxu0 %v1848
    %3391 = vmatpush1.bf16.msra.mxu0 %v1847
    %3392 = vmatprep.subr.bf16.mxu0 %v1844
    %3393 = vmatpush1.bf16.msra.mxu0 %v1843
    %3394 = vmatprep.subr.bf16.mxu0 %v1840
    %3395 = vmatpush1.bf16.msra.mxu0 %v1839
    %3396 = vmatprep.subr.bf16.mxu0 %v1836
    %3397 = vmatpush1.bf16.msra.mxu0 %v1835
    %3398 = vmatprep.subr.bf16.mxu0 %v1832
    %3399 = vmatpush1.bf16.msra.mxu0 %v1831
    %3400 = vmatprep.subr.bf16.mxu0 %v1828
    %3401 = vmatpush1.bf16.msra.mxu0 %v1827
    %3402 = vmatprep.subr.bf16.mxu0 %v1824
    %3403 = vmatpush1.bf16.msra.mxu0 %v1823
    %3404 = vmatprep.subr.bf16.mxu0 %v1820
    %3405 = vmatpush1.bf16.msra.mxu0 %v1819
    %3406 = vmatprep.subr.bf16.mxu0 %v1880
    %3407 = vmatpush2.bf16.msra.mxu0 %v1879
    %3408 = vmatprep.subr.bf16.mxu0 %v1876
    %3409 = vmatpush2.bf16.msra.mxu0 %v1875
    %3410 = vmatprep.subr.bf16.mxu0 %v1872
    %3411 = vmatpush2.bf16.msra.mxu0 %v1871
    %3412 = vmatprep.subr.bf16.mxu0 %v1868
    %3413 = vmatpush2.bf16.msra.mxu0 %v1867
    %3414 = vmatprep.subr.bf16.mxu0 %v1864
    %3415 = vmatpush2.bf16.msra.mxu0 %v1863
    %3416 = vmatprep.subr.bf16.mxu0 %v1860
    %3417 = vmatpush2.bf16.msra.mxu0 %v1859
    %3418 = vmatprep.subr.bf16.mxu0 %v1856
    %3419 = vmatpush2.bf16.msra.mxu0 %v1855
    %3420 = vmatprep.subr.bf16.mxu0 %v1852
    %3421 = vmatpush2.bf16.msra.mxu0 %v1851
    %3422 = vmatprep.mubr.bf16.mxu0 %v3180
    %3423 = vmatmul.mubr.bf16.gmra.mxu0 %v3348
    %v3424 = vpop.f32.mrf.mxu0
    %v3425 = vadd.f32 %v1616, %v3424
    %v3426 = vpop.f32.mrf.mxu0
    %v3427 = vadd.f32 %v1620, %v3426
    %v3428 = vpop.f32.mrf.mxu0
    %v3429 = vpop.f32.mrf.mxu0
    %3430 = vdwg.mxu0
    %v3431 = vxor.u32 %v3384, 2147483648
    %v3432 = vmul.f32 %v3431, 1.442695
    %v3433 = vpow.pop %v3432
    %v3434 = vadd.f32 %v3433, 1.0
    %v3435 = vrcp.pop %v3434
    %v3436 = vmul.f32 1.0, %v3435
    %v3437 = vxor.u32 %v3386, 2147483648
    %v3438 = vmul.f32 %v3437, 1.442695
    %v3439 = vpow.pop %v3438
    %v3440 = vadd.f32 %v3439, 1.0
    %v3441 = vrcp.pop %v3440
    %v3442 = vmul.f32 1.0, %v3441
    %v3443 = vmul.f32 %v3436, %v3427
    %v3444 = vadd.f32 %v3425, %v3443
    %v3445 = vtanh.pop %v3444
    %v3446 = vsub.f32 1.0, %v3442
    %v3447 = vmul.f32 %v3446, %v3445
    %v3448 = vmul.f32 %v3442, %v3179
    %v3449 = vadd.f32 %v3447, %v3448
    %v3450 = vpack.c.bf16 %v3449, %v3449
    %3451 = vmatprep.subr.bf16.mxu0 0
    %3452 = vmatpush1.bf16.msra.mxu0 %v2092
    %3453 = vmatprep.subr.bf16.mxu0 0
    %3454 = vmatpush1.bf16.msra.mxu0 %v2091
    %3455 = vmatprep.subr.bf16.mxu0 0
    %3456 = vmatpush1.bf16.msra.mxu0 %v2090
    %3457 = vmatprep.subr.bf16.mxu0 0
    %3458 = vmatpush1.bf16.msra.mxu0 %v2089
    %3459 = vmatprep.subr.bf16.mxu0 0
    %3460 = vmatpush1.bf16.msra.mxu0 %v2088
    %3461 = vmatprep.subr.bf16.mxu0 0
    %3462 = vmatpush1.bf16.msra.mxu0 %v2087
    %3463 = vmatprep.subr.bf16.mxu0 0
    %3464 = vmatpush1.bf16.msra.mxu0 %v2086
    %3465 = vmatprep.subr.bf16.mxu0 0
    %3466 = vmatpush1.bf16.msra.mxu0 %v2085
    %3467 = vmatprep.subr.bf16.mxu0 0
    %3468 = vmatpush2.bf16.msra.mxu0 0
    %3469 = vmatprep.subr.bf16.mxu0 0
    %3470 = vmatpush2.bf16.msra.mxu0 0
    %3471 = vmatprep.subr.bf16.mxu0 0
    %3472 = vmatpush2.bf16.msra.mxu0 0
    %3473 = vmatprep.subr.bf16.mxu0 0
    %3474 = vmatpush2.bf16.msra.mxu0 0
    %3475 = vmatprep.subr.bf16.mxu0 0
    %3476 = vmatpush2.bf16.msra.mxu0 0
    %3477 = vmatprep.subr.bf16.mxu0 0
    %3478 = vmatpush2.bf16.msra.mxu0 0
    %3479 = vmatprep.subr.bf16.mxu0 0
    %3480 = vmatpush2.bf16.msra.mxu0 0
    %3481 = vmatprep.subr.bf16.mxu0 0
    %3482 = vmatpush2.bf16.msra.mxu0 0
    %3483 = vmatprep.mubr.bf16.mxu0 0
    %3484 = vmatmul.mubr.bf16.gmra.mxu0 %v3450
    %v3485 = vpop.f32.mrf.mxu0
    %v3486 = vadd.f32 %v2051, %v3485
    %v3487 = vpop.f32.mrf.mxu0
    %v3488 = vpop.f32.mrf.mxu0
    %v3489 = vpop.f32.mrf.mxu0
    %3490 = vdwg.mxu0
    %s3491 = scalar_lea.vmem [#allocation17], 48
    %3492 = vst [vmem:[%s3491] sm:$0xff] %v3486
    %s3493 = sld [smem:[#allocation3 + $0x6]]
    %p3494 = scmp.eq.s32.totalorder %s3493, 1
    // Predicated region
    $region122: #{tpu_custom_call.1} parent=1 // pred_check
      %p3495 = pneg %p3494
    $region123: #{tpu_custom_call.1} parent=1 // pred_check_branch
      %3497 = sbr.rel (%p3495) target = $region125
    $region124: #{tpu_custom_call.1} parent=1 // pred_region
      %v3498 = vld [vmem:[#allocation8 + $0x18] sm:$0xf]
      %v3499 = vunpack.c.l.bf16 %v3498
      %3500 = vst [vmem:[#allocation2] sm:$0xff] %v3499
    $region125: #{tpu_custom_call.1} parent=1 // pred_fallthru
      _
    %p3501 = scmp.eq.s32.totalorder %s3493, 0
    // Predicated region
    $region126: #{tpu_custom_call.1} parent=1 // pred_check
      %p3502 = pneg %p3501
    $region127: #{tpu_custom_call.1} parent=1 // pred_check_branch
      %3504 = sbr.rel (%p3502) target = $region129
    $region128: #{tpu_custom_call.1} parent=1 // pred_region
      %v3505 = vsel %vm1597, %v3486, -1e+30
      %3506 = vmax.xlane.f32.xlu0 %v3505
      %v3507 = vpop.xlane.xlu0 %3506
      %vm3508 = vcmp.eq.f32.partialorder %v3505, %v3507
      %v3509 = vsel %vm3508, %v1596, 128
      %v3510 = vand.u32 %v3509, 65535
      %v3511 = vshra.s32 %v3509, 16
      %v3512 = vcvt.s32.f32 %v3510
      %v3513 = vcvt.s32.f32 %v3511
      %3514 = vmin.xlane.f32.xlu0 %v3513
      %v3515 = vpop.xlane.xlu0 %3514
      %vm3516 = vcmp.eq.f32.partialorder %v3513, %v3515
      %v3517 = vsel %vm3516, %v3512, inf
      %3518 = vmin.xlane.f32.xlu0 %v3517
      %v3519 = vpop.xlane.xlu0 %3518
      %v3520 = vcvt.f32.s32 %v3519
      %v3521 = vcvt.f32.s32 %v3515
      %v3522 = vshll.u32 %v3521, 16
      %v3523 = vadd.s32 %v3522, %v3520
      %vm3524 = vcmp.eq.s32.totalorder %v1596, %v3523
      %v3525 = vsel %vm3524, 1, 0
      %v3526 = vcvt.s32.f32 %v3525
      %v3527 = vpack.c.bf16 %v3526, %v3526
      %v3544 = vunpack.c.l.b16 %v182
      %v3545 = vunpack.c.l.b16 %v183
      %v3546 = vunpack.c.l.b16 %v184
      %v3547 = vunpack.c.l.b16 %v185
      %v3548 = vunpack.c.l.b16 %v186
      %v3549 = vunpack.c.l.b16 %v187
      %v3550 = vunpack.c.l.b16 %v188
      %v3551 = vunpack.c.l.b16 %v189
      %v3552 = vunpack.c.l.b16 %v190
      %v3553 = vunpack.c.l.b16 %v191
      %v3554 = vunpack.c.l.b16 %v192
      %v3555 = vunpack.c.l.b16 %v193
      %v3556 = vunpack.c.l.b16 %v194
      %v3557 = vunpack.c.l.b16 %v195
      %v3558 = vunpack.c.l.b16 %v196
      %v3559 = vunpack.c.l.b16 %v197
      %v3560 = vpack.c.b16 %v3545, %v3544
      %v3561 = vpack.c.b16 %v3547, %v3546
      %v3562 = vpack.c.b16 %v3549, %v3548
      %v3563 = vpack.c.b16 %v3551, %v3550
      %v3564 = vpack.c.b16 %v3553, %v3552
      %v3565 = vpack.c.b16 %v3555, %v3554
      %v3566 = vpack.c.b16 %v3557, %v3556
      %v3567 = vpack.c.b16 %v3559, %v3558
      %3576 = vmatprep.subr.bf16.mxu0 0
      %3577 = vmatpush1.bf16.msra.mxu0 %v3567
      %3578 = vmatprep.subr.bf16.mxu0 0
      %3579 = vmatpush1.bf16.msra.mxu0 %v3566
      %3580 = vmatprep.subr.bf16.mxu0 0
      %3581 = vmatpush1.bf16.msra.mxu0 %v3565
      %3582 = vmatprep.subr.bf16.mxu0 0
      %3583 = vmatpush1.bf16.msra.mxu0 %v3564
      %3584 = vmatprep.subr.bf16.mxu0 0
      %3585 = vmatpush1.bf16.msra.mxu0 %v3563
      %3586 = vmatprep.subr.bf16.mxu0 0
      %3587 = vmatpush1.bf16.msra.mxu0 %v3562
      %3588 = vmatprep.subr.bf16.mxu0 0
      %3589 = vmatpush1.bf16.msra.mxu0 %v3561
      %3590 = vmatprep.subr.bf16.mxu0 0
      %3591 = vmatpush1.bf16.msra.mxu0 %v3560
      %3592 = vmatprep.subr.bf16.mxu0 0
      %3593 = vmatpush2.bf16.msra.mxu0 0
      %3594 = vmatprep.subr.bf16.mxu0 0
      %3595 = vmatpush2.bf16.msra.mxu0 0
      %3596 = vmatprep.subr.bf16.mxu0 0
      %3597 = vmatpush2.bf16.msra.mxu0 0
      %3598 = vmatprep.subr.bf16.mxu0 0
      %3599 = vmatpush2.bf16.msra.mxu0 0
      %3600 = vmatprep.subr.bf16.mxu0 0
      %3601 = vmatpush2.bf16.msra.mxu0 0
      %3602 = vmatprep.subr.bf16.mxu0 0
      %3603 = vmatpush2.bf16.msra.mxu0 0
      %3604 = vmatprep.subr.bf16.mxu0 0
      %3605 = vmatpush2.bf16.msra.mxu0 0
      %3606 = vmatprep.subr.bf16.mxu0 0
      %3607 = vmatpush2.bf16.msra.mxu0 0
      %3608 = vmatprep.mubr.bf16.mxu0 0
      %3609 = vmatmul.mubr.bf16.gmra.mxu0 %v3527
      %v3610 = vpop.f32.mrf.mxu0
      %v3611 = vadd.f32 0.0, %v3610
      %v3612 = vpop.f32.mrf.mxu0
      %v3613 = vpop.f32.mrf.mxu0
      %v3614 = vpop.f32.mrf.mxu0
      %3615 = vdwg.mxu0
      %3616 = vst [vmem:[#allocation2] sm:$0xff] %v3611
    $region129: #{tpu_custom_call.1} parent=1 // pred_fallthru
      _
    %v3617 = vld [vmem:[#allocation2] sm:$0xff]
    %v3618 = vpack.c.bf16 %v3617, %v3617
    %3619 = vmatprep.subr.bf16.mxu0 %v1846
    %3620 = vmatpush1.bf16.msra.mxu0 %v1845
    %3621 = vmatprep.subr.bf16.mxu0 %v1842
    %3622 = vmatpush1.bf16.msra.mxu0 %v1841
    %3623 = vmatprep.subr.bf16.mxu0 %v1838
    %3624 = vmatpush1.bf16.msra.mxu0 %v1837
    %3625 = vmatprep.subr.bf16.mxu0 %v1834
    %3626 = vmatpush1.bf16.msra.mxu0 %v1833
    %3627 = vmatprep.subr.bf16.mxu0 %v1830
    %3628 = vmatpush1.bf16.msra.mxu0 %v1829
    %3629 = vmatprep.subr.bf16.mxu0 %v1826
    %3630 = vmatpush1.bf16.msra.mxu0 %v1825
    %3631 = vmatprep.subr.bf16.mxu0 %v1822
    %3632 = vmatpush1.bf16.msra.mxu0 %v1821
    %3633 = vmatprep.subr.bf16.mxu0 %v1818
    %3634 = vmatpush1.bf16.msra.mxu0 %v1817
    %3635 = vmatprep.subr.bf16.mxu0 %v1878
    %3636 = vmatpush2.bf16.msra.mxu0 %v1877
    %3637 = vmatprep.subr.bf16.mxu0 %v1874
    %3638 = vmatpush2.bf16.msra.mxu0 %v1873
    %3639 = vmatprep.subr.bf16.mxu0 %v1870
    %3640 = vmatpush2.bf16.msra.mxu0 %v1869
    %3641 = vmatprep.subr.bf16.mxu0 %v1866
    %3642 = vmatpush2.bf16.msra.mxu0 %v1865
    %3643 = vmatprep.subr.bf16.mxu0 %v1862
    %3644 = vmatpush2.bf16.msra.mxu0 %v1861
    %3645 = vmatprep.subr.bf16.mxu0 %v1858
    %3646 = vmatpush2.bf16.msra.mxu0 %v1857
    %3647 = vmatprep.subr.bf16.mxu0 %v1854
    %3648 = vmatpush2.bf16.msra.mxu0 %v1853
    %3649 = vmatprep.subr.bf16.mxu0 %v1850
    %3650 = vmatpush2.bf16.msra.mxu0 %v1849
    %3651 = vmatprep.mubr.bf16.mxu0 %v3450
    %3652 = vmatmul.mubr.bf16.gmra.mxu0 %v3618
    %v3653 = vpop.f32.mrf.mxu0
    %v3654 = vadd.f32 %v1608, %v3653
    %v3655 = vpop.f32.mrf.mxu0
    %v3656 = vadd.f32 %v1612, %v3655
    %v3657 = vpop.f32.mrf.mxu0
    %v3658 = vpop.f32.mrf.mxu0
    %3659 = vdwg.mxu0
    %3660 = vmatprep.subr.bf16.mxu0 %v1848
    %3661 = vmatpush1.bf16.msra.mxu0 %v1847
    %3662 = vmatprep.subr.bf16.mxu0 %v1844
    %3663 = vmatpush1.bf16.msra.mxu0 %v1843
    %3664 = vmatprep.subr.bf16.mxu0 %v1840
    %3665 = vmatpush1.bf16.msra.mxu0 %v1839
    %3666 = vmatprep.subr.bf16.mxu0 %v1836
    %3667 = vmatpush1.bf16.msra.mxu0 %v1835
    %3668 = vmatprep.subr.bf16.mxu0 %v1832
    %3669 = vmatpush1.bf16.msra.mxu0 %v1831
    %3670 = vmatprep.subr.bf16.mxu0 %v1828
    %3671 = vmatpush1.bf16.msra.mxu0 %v1827
    %3672 = vmatprep.subr.bf16.mxu0 %v1824
    %3673 = vmatpush1.bf16.msra.mxu0 %v1823
    %3674 = vmatprep.subr.bf16.mxu0 %v1820
    %3675 = vmatpush1.bf16.msra.mxu0 %v1819
    %3676 = vmatprep.subr.bf16.mxu0 %v1880
    %3677 = vmatpush2.bf16.msra.mxu0 %v1879
    %3678 = vmatprep.subr.bf16.mxu0 %v1876
    %3679 = vmatpush2.bf16.msra.mxu0 %v1875
    %3680 = vmatprep.subr.bf16.mxu0 %v1872
    %3681 = vmatpush2.bf16.msra.mxu0 %v1871
    %3682 = vmatprep.subr.bf16.mxu0 %v1868
    %3683 = vmatpush2.bf16.msra.mxu0 %v1867
    %3684 = vmatprep.subr.bf16.mxu0 %v1864
    %3685 = vmatpush2.bf16.msra.mxu0 %v1863
    %3686 = vmatprep.subr.bf16.mxu0 %v1860
    %3687 = vmatpush2.bf16.msra.mxu0 %v1859
    %3688 = vmatprep.subr.bf16.mxu0 %v1856
    %3689 = vmatpush2.bf16.msra.mxu0 %v1855
    %3690 = vmatprep.subr.bf16.mxu0 %v1852
    %3691 = vmatpush2.bf16.msra.mxu0 %v1851
    %3692 = vmatprep.mubr.bf16.mxu0 %v3450
    %3693 = vmatmul.mubr.bf16.gmra.mxu0 %v3618
    %v3694 = vpop.f32.mrf.mxu0
    %v3695 = vadd.f32 %v1616, %v3694
    %v3696 = vpop.f32.mrf.mxu0
    %v3697 = vadd.f32 %v1620, %v3696
    %v3698 = vpop.f32.mrf.mxu0
    %v3699 = vpop.f32.mrf.mxu0
    %3700 = vdwg.mxu0
    %v3701 = vxor.u32 %v3654, 2147483648
    %v3702 = vmul.f32 %v3701, 1.442695
    %v3703 = vpow.pop %v3702
    %v3704 = vadd.f32 %v3703, 1.0
    %v3705 = vrcp.pop %v3704
    %v3706 = vmul.f32 1.0, %v3705
    %v3707 = vxor.u32 %v3656, 2147483648
    %v3708 = vmul.f32 %v3707, 1.442695
    %v3709 = vpow.pop %v3708
    %v3710 = vadd.f32 %v3709, 1.0
    %v3711 = vrcp.pop %v3710
    %v3712 = vmul.f32 1.0, %v3711
    %v3713 = vmul.f32 %v3706, %v3697
    %v3714 = vadd.f32 %v3695, %v3713
    %v3715 = vtanh.pop %v3714
    %v3716 = vsub.f32 1.0, %v3712
    %v3717 = vmul.f32 %v3716, %v3715
    %v3718 = vmul.f32 %v3712, %v3449
    %v3719 = vadd.f32 %v3717, %v3718
    %v3720 = vpack.c.bf16 %v3719, %v3719
    %3721 = vmatprep.subr.bf16.mxu0 0
    %3722 = vmatpush1.bf16.msra.mxu0 %v2092
    %3723 = vmatprep.subr.bf16.mxu0 0
    %3724 = vmatpush1.bf16.msra.mxu0 %v2091
    %3725 = vmatprep.subr.bf16.mxu0 0
    %3726 = vmatpush1.bf16.msra.mxu0 %v2090
    %3727 = vmatprep.subr.bf16.mxu0 0
    %3728 = vmatpush1.bf16.msra.mxu0 %v2089
    %3729 = vmatprep.subr.bf16.mxu0 0
    %3730 = vmatpush1.bf16.msra.mxu0 %v2088
    %3731 = vmatprep.subr.bf16.mxu0 0
    %3732 = vmatpush1.bf16.msra.mxu0 %v2087
    %3733 = vmatprep.subr.bf16.mxu0 0
    %3734 = vmatpush1.bf16.msra.mxu0 %v2086
    %3735 = vmatprep.subr.bf16.mxu0 0
    %3736 = vmatpush1.bf16.msra.mxu0 %v2085
    %3737 = vmatprep.subr.bf16.mxu0 0
    %3738 = vmatpush2.bf16.msra.mxu0 0
    %3739 = vmatprep.subr.bf16.mxu0 0
    %3740 = vmatpush2.bf16.msra.mxu0 0
    %3741 = vmatprep.subr.bf16.mxu0 0
    %3742 = vmatpush2.bf16.msra.mxu0 0
    %3743 = vmatprep.subr.bf16.mxu0 0
    %3744 = vmatpush2.bf16.msra.mxu0 0
    %3745 = vmatprep.subr.bf16.mxu0 0
    %3746 = vmatpush2.bf16.msra.mxu0 0
    %3747 = vmatprep.subr.bf16.mxu0 0
    %3748 = vmatpush2.bf16.msra.mxu0 0
    %3749 = vmatprep.subr.bf16.mxu0 0
    %3750 = vmatpush2.bf16.msra.mxu0 0
    %3751 = vmatprep.subr.bf16.mxu0 0
    %3752 = vmatpush2.bf16.msra.mxu0 0
    %3753 = vmatprep.mubr.bf16.mxu0 0
    %3754 = vmatmul.mubr.bf16.gmra.mxu0 %v3720
    %v3755 = vpop.f32.mrf.mxu0
    %v3756 = vadd.f32 %v2051, %v3755
    %v3757 = vpop.f32.mrf.mxu0
    %v3758 = vpop.f32.mrf.mxu0
    %v3759 = vpop.f32.mrf.mxu0
    %3760 = vdwg.mxu0
    %s3761 = scalar_lea.vmem [#allocation17], 56
    %3762 = vst [vmem:[%s3761] sm:$0xff] %v3756
    %s3763 = sld [smem:[#allocation3 + $0x7]]
    %p3764 = scmp.eq.s32.totalorder %s3763, 1
    // Predicated region
    $region130: #{tpu_custom_call.1} parent=1 // pred_check
      %p3765 = pneg %p3764
    $region131: #{tpu_custom_call.1} parent=1 // pred_check_branch
      %3767 = sbr.rel (%p3765) target = $region133
    $region132: #{tpu_custom_call.1} parent=1 // pred_region
      %v3768 = vld [vmem:[#allocation8 + $0x1c] sm:$0xf]
      %v3769 = vunpack.c.l.bf16 %v3768
      %3770 = vst [vmem:[#allocation2] sm:$0xff] %v3769
    $region133: #{tpu_custom_call.1} parent=1 // pred_fallthru
      _
    %p3771 = scmp.eq.s32.totalorder %s3763, 0
    // Predicated region
    $region134: #{tpu_custom_call.1} parent=1 // pred_check
      %p3772 = pneg %p3771
    $region135: #{tpu_custom_call.1} parent=1 // pred_check_branch
      %3774 = sbr.rel (%p3772) target = $region137
    $region136: #{tpu_custom_call.1} parent=1 // pred_region
      %v3775 = vsel %vm1597, %v3756, -1e+30
      %3776 = vmax.xlane.f32.xlu0 %v3775
      %v3777 = vpop.xlane.xlu0 %3776
      %vm3778 = vcmp.eq.f32.partialorder %v3775, %v3777
      %v3779 = vsel %vm3778, %v1596, 128
      %v3780 = vand.u32 %v3779, 65535
      %v3781 = vshra.s32 %v3779, 16
      %v3782 = vcvt.s32.f32 %v3780
      %v3783 = vcvt.s32.f32 %v3781
      %3784 = vmin.xlane.f32.xlu0 %v3783
      %v3785 = vpop.xlane.xlu0 %3784
      %vm3786 = vcmp.eq.f32.partialorder %v3783, %v3785
      %v3787 = vsel %vm3786, %v3782, inf
      %3788 = vmin.xlane.f32.xlu0 %v3787
      %v3789 = vpop.xlane.xlu0 %3788
      %v3790 = vcvt.f32.s32 %v3789
      %v3791 = vcvt.f32.s32 %v3785
      %v3792 = vshll.u32 %v3791, 16
      %v3793 = vadd.s32 %v3792, %v3790
      %vm3794 = vcmp.eq.s32.totalorder %v1596, %v3793
      %v3795 = vsel %vm3794, 1, 0
      %v3796 = vcvt.s32.f32 %v3795
      %v3797 = vpack.c.bf16 %v3796, %v3796
      %v3814 = vunpack.c.l.b16 %v182
      %v3815 = vunpack.c.l.b16 %v183
      %v3816 = vunpack.c.l.b16 %v184
      %v3817 = vunpack.c.l.b16 %v185
      %v3818 = vunpack.c.l.b16 %v186
      %v3819 = vunpack.c.l.b16 %v187
      %v3820 = vunpack.c.l.b16 %v188
      %v3821 = vunpack.c.l.b16 %v189
      %v3822 = vunpack.c.l.b16 %v190
      %v3823 = vunpack.c.l.b16 %v191
      %v3824 = vunpack.c.l.b16 %v192
      %v3825 = vunpack.c.l.b16 %v193
      %v3826 = vunpack.c.l.b16 %v194
      %v3827 = vunpack.c.l.b16 %v195
      %v3828 = vunpack.c.l.b16 %v196
      %v3829 = vunpack.c.l.b16 %v197
      %v3830 = vpack.c.b16 %v3815, %v3814
      %v3831 = vpack.c.b16 %v3817, %v3816
      %v3832 = vpack.c.b16 %v3819, %v3818
      %v3833 = vpack.c.b16 %v3821, %v3820
      %v3834 = vpack.c.b16 %v3823, %v3822
      %v3835 = vpack.c.b16 %v3825, %v3824
      %v3836 = vpack.c.b16 %v3827, %v3826
      %v3837 = vpack.c.b16 %v3829, %v3828
      %3846 = vmatprep.subr.bf16.mxu0 0
      %3847 = vmatpush1.bf16.msra.mxu0 %v3837
      %3848 = vmatprep.subr.bf16.mxu0 0
      %3849 = vmatpush1.bf16.msra.mxu0 %v3836
      %3850 = vmatprep.subr.bf16.mxu0 0
      %3851 = vmatpush1.bf16.msra.mxu0 %v3835
      %3852 = vmatprep.subr.bf16.mxu0 0
      %3853 = vmatpush1.bf16.msra.mxu0 %v3834
      %3854 = vmatprep.subr.bf16.mxu0 0
      %3855 = vmatpush1.bf16.msra.mxu0 %v3833
      %3856 = vmatprep.subr.bf16.mxu0 0
      %3857 = vmatpush1.bf16.msra.mxu0 %v3832
      %3858 = vmatprep.subr.bf16.mxu0 0
      %3859 = vmatpush1.bf16.msra.mxu0 %v3831
      %3860 = vmatprep.subr.bf16.mxu0 0
      %3861 = vmatpush1.bf16.msra.mxu0 %v3830
      %3862 = vmatprep.subr.bf16.mxu0 0
      %3863 = vmatpush2.bf16.msra.mxu0 0
      %3864 = vmatprep.subr.bf16.mxu0 0
      %3865 = vmatpush2.bf16.msra.mxu0 0
      %3866 = vmatprep.subr.bf16.mxu0 0
      %3867 = vmatpush2.bf16.msra.mxu0 0
      %3868 = vmatprep.subr.bf16.mxu0 0
      %3869 = vmatpush2.bf16.msra.mxu0 0
      %3870 = vmatprep.subr.bf16.mxu0 0
      %3871 = vmatpush2.bf16.msra.mxu0 0
      %3872 = vmatprep.subr.bf16.mxu0 0
      %3873 = vmatpush2.bf16.msra.mxu0 0
      %3874 = vmatprep.subr.bf16.mxu0 0
      %3875 = vmatpush2.bf16.msra.mxu0 0
      %3876 = vmatprep.subr.bf16.mxu0 0
      %3877 = vmatpush2.bf16.msra.mxu0 0
      %3878 = vmatprep.mubr.bf16.mxu0 0
      %3879 = vmatmul.mubr.bf16.gmra.mxu0 %v3797
      %v3880 = vpop.f32.mrf.mxu0
      %v3881 = vadd.f32 0.0, %v3880
      %v3882 = vpop.f32.mrf.mxu0
      %v3883 = vpop.f32.mrf.mxu0
      %v3884 = vpop.f32.mrf.mxu0
      %3885 = vdwg.mxu0
      %3886 = vst [vmem:[#allocation2] sm:$0xff] %v3881
    $region137: #{tpu_custom_call.1} parent=1 // pred_fallthru
      _
    // Predicated region
    $region138: #{tpu_custom_call.1} parent=1 // pred_check
      _
    $region139: #{tpu_custom_call.1} parent=1 // pred_check_branch
      %3888 = sbr.rel (0) target = $region141
    $region140: #{tpu_custom_call.1} parent=1 // pred_region
      %s3890 = ssub.s32 1024, 1024
      %3891 = vsyncadd [#allocation5], %s3890
      %s3892 = sshll.u32 [#allocation17], 4
      %s3893 = int_to_ptr.vmem [resolvable:$true] %s3892
      %3898 = dma.vmem_to_hbm [thread:$0]  %s3893, 1024, %s12, [#allocation5], 128, 128, 8
    $region141: #{tpu_custom_call.1} parent=1 // pred_fallthru
      _
    // Predicated region
    $region142: #{tpu_custom_call.1} parent=1 // pred_check
      _
    $region143: #{tpu_custom_call.1} parent=1 // pred_check_branch
      %3900 = sbr.rel (0) target = $region145
    $region144: #{tpu_custom_call.1} parent=1 // pred_region
      %3901 = dma.done [#allocation5], 1024
    $region145: #{tpu_custom_call.1} parent=1 // pred_fallthru
      _
    %3902 = vsyncpa [#allocation4], 1
    %3903 = vsyncpa [#allocation9], 1
    %3904 = vsyncpa [#allocation12], 1
    %3905 = vsyncpa [#allocation15], 1
    %3906 = vsyncpa [#allocation5], 1
    %3907 = vsyncpa [#allocation6], 1

</llo_original>
